<compile_context>
chip_gen: v7x
topology: tpu7x:2x2x1
jax: 0.10.0
libtpu: 0.0.40
codegen_flags: <defaults>
</compile_context>

<pallas_src>
import functools
import math

import jax
import jax.numpy as jnp
from jax import lax
from jax.experimental import pallas as pl
from jax.experimental.pallas import tpu as pltpu


_SQRT1_2 = 1.0 / math.sqrt(2.0)


def _mxu(a, w):
    """MXU matmul: bf16 operands, f32 accumulation."""
    return jnp.dot(a.astype(jnp.bfloat16), w.astype(jnp.bfloat16),
                   preferred_element_type=jnp.float32)


def _gelu(x):                                   # exact (erf) GELU = torch default
    return 0.5 * x * (1.0 + lax.erf(x * _SQRT1_2))


def _layernorm(x, g, b, eps):
    mu = jnp.mean(x, axis=-1, keepdims=True)
    xc = x - mu
    var = jnp.mean(xc * xc, axis=-1, keepdims=True)
    return xc * lax.rsqrt(var + eps) * g + b


def _fused_forward_kernel(
    # grid-invariant inputs
    sinu_ref, srcp_ref, bias_ref, pe_ref,
    t_w1_ref, t_b1_ref, t_w2_ref, t_b2_ref,
    emb_w_ref, emb_b_ref,
    # per-layer inputs (blocked along the layer grid axis)
    wqkv_ref, fc_ref, ln1_g_ref, ln1_b_ref,
    ffn_w1_ref, ffn_b1_ref, ffn_w2_ref, ffn_b2_ref,
    ln2_g_ref, ln2_b_ref,
    # epilogue weights
    out_w_ref, out_b_ref,
    # output
    out_ref,
    # VMEM scratch: resident flattened activation (bs*seq_pad, d_model)
    h_scr,
    *, bs, seq, seq_pad, nh, dk, dv, eps):
    layer = pl.program_id(0)
    scale = 1.0 / math.sqrt(dk)

    # ---- prologue (layer 0): time-MLP + input embedding + PE -> h0 ----------
    @pl.when(layer == 0)
    def _():
        h1 = _mxu(sinu_ref[...], t_w1_ref[...]) + t_b1_ref[...]
        t_emb = _mxu(_gelu(h1), t_w2_ref[...]) + t_b2_ref[...]        # (bs, dm)
        pe = pe_ref[...]                                              # (seq_pad, dm)
        # one embedding matmul for the whole flattened slab (padded rows are 0)
        emb = _mxu(srcp_ref[...], emb_w_ref[...]) + emb_b_ref[...]    # (R, dm)
        h_scr[...] = emb + jnp.concatenate([pe] * bs, axis=0)
        # overwrite the time-token row of each batch segment
        for b in range(bs):
            h_scr[b * seq_pad:b * seq_pad + 1, :] = t_emb[b:b + 1, :] + pe[0:1, :]

    # ---- one decoder layer (runs at every grid step) ------------------------
    wqkv = wqkv_ref[0]                      # (dm, nh*(2*dk+dv)) bf16, fused QKV
    fc_w = fc_ref[0]                        # (nh*dv, dm) bf16
    g1, b1 = ln1_g_ref[0], ln1_b_ref[0]
    w1, fb1 = ffn_w1_ref[0], ffn_b1_ref[0]
    w2, fb2 = ffn_w2_ref[0], ffn_b2_ref[0]
    g2, b2 = ln2_g_ref[0], ln2_b_ref[0]
    bias_all = bias_ref[...]                # (bs, seq_pad) additive key-mask bias

    h = h_scr[...]                          # (R, dm) f32, R = bs*seq_pad
    qkv = _mxu(h, wqkv)                     # single whole-slab QKV matmul

    # attention: per-batch / per-head (tiny, statically unrolled); heads are
    # folded through per-head slices of the output projection (no concat).
    for b in range(bs):
        r0 = b * seq_pad
        qkv_b = qkv[r0:r0 + seq_pad, :]
        bias_b = bias_all[b:b + 1, :]                          # (1, seq_pad)
        attn_b = None
        for n in range(nh):
            q = qkv_b[:, n * dk:(n + 1) * dk]
            k = qkv_b[:, nh * dk + n * dk: nh * dk + (n + 1) * dk]
            v = qkv_b[:, 2 * nh * dk + n * dv: 2 * nh * dk + (n + 1) * dv]
            s = lax.dot_general(
                q.astype(jnp.bfloat16), k.astype(jnp.bfloat16),
                (((1,), (1,)), ((), ())),
                preferred_element_type=jnp.float32) * scale + bias_b
            s = s - jnp.max(s, axis=-1, keepdims=True)
            p = jnp.exp(s)
            p = p * pl.reciprocal(jnp.sum(p, axis=-1, keepdims=True), approx=True)
            o = _mxu(p, v)                                     # (seq_pad, dv)
            contrib = _mxu(o, fc_w[n * dv:(n + 1) * dv, :])
            attn_b = contrib if attn_b is None else attn_b + contrib
        # aligned store of residual + attention into the resident slab
        h_scr[r0:r0 + seq_pad, :] = h[r0:r0 + seq_pad, :] + attn_b

    # post-LN + FFN on the whole flattened slab (single matmuls)
    h2 = _layernorm(h_scr[...], g1, b1, eps)
    f = jnp.maximum(_mxu(h2, w1) + fb1, 0.0)
    f = _mxu(f, w2) + fb2
    h_scr[...] = _layernorm(h2 + f, g2, b2, eps)

    # ---- epilogue (last layer): drop time token, project to d_feats ---------
    @pl.when(layer == pl.num_programs(0) - 1)
    def _():
        proj = _mxu(h_scr[...], out_w_ref[...]) + out_b_ref[...]     # (R, df)
        for b in range(bs):
            r0 = b * seq_pad
            out_ref[b] = proj[r0 + 1:r0 + seq, :]                    # (seq-1, df)


# ------------------------------ model pieces --------------------------------

def sinusoid_pe_table(n_position, d_model):
    pos = jnp.arange(n_position, dtype=jnp.float32)[:, None]
    i = jnp.arange(d_model)[None, :]
    angle = pos / jnp.power(10000.0, (2.0 * (i // 2)).astype(jnp.float32) / d_model)
    return jnp.where(i % 2 == 0, jnp.sin(angle), jnp.cos(angle)).astype(jnp.float32)


def init_params(key, cfg):
    def dense(k, fan_in, fan_out):
        return (0.02 * jax.random.normal(k, (fan_in, fan_out), jnp.float32)
                ).astype(jnp.bfloat16)          # bf16 weights: half the DMA bytes

    dm, dk, dv, nh = cfg["d_model"], cfg["d_k"], cfg["d_v"], cfg["n_head"]
    di, dc = cfg["d_inner"], cfg["d_condfeat"]
    df, L = cfg["d_feats"], cfg["n_dec_layers"]
    keys = iter(jax.random.split(key, 8 + 4 * L))
    p = {
        # time_mlp: Linear(64,256) -> GELU -> Linear(256,d_model)
        "t_w1": dense(next(keys), 64, 256), "t_b1": jnp.zeros((1, 256), jnp.float32),
        "t_w2": dense(next(keys), 256, dm), "t_b2": jnp.zeros((1, dm), jnp.float32),
        # decoder input embedding and output head
        "emb_w": dense(next(keys), dc, dm), "emb_b": jnp.zeros((1, dm), jnp.float32),
        "out_w": dense(next(keys), dm, df), "out_b": jnp.zeros((1, df), jnp.float32),
        # per-layer weights stacked on a leading (layer) axis; QKV fused.
        "wqkv": jnp.stack([dense(next(keys), dm, nh * (2 * dk + dv)) for _ in range(L)]),
        "fc": jnp.stack([dense(next(keys), nh * dv, dm) for _ in range(L)]),
        "ln1_g": jnp.ones((L, 1, dm), jnp.float32),
        "ln1_b": jnp.zeros((L, 1, dm), jnp.float32),
        "ffn_w1": jnp.stack([dense(next(keys), dm, di) for _ in range(L)]),
        "ffn_b1": jnp.zeros((L, 1, di), jnp.float32),
        "ffn_w2": jnp.stack([dense(next(keys), di, dm) for _ in range(L)]),
        "ffn_b2": jnp.zeros((L, 1, dm), jnp.float32),
        "ln2_g": jnp.ones((L, 1, dm), jnp.float32),
        "ln2_b": jnp.zeros((L, 1, dm), jnp.float32),
        # positional-encoding table precomputed once (depends only on cfg)
        "pe_table": sinusoid_pe_table(cfg["max_timesteps"] + 2, dm),
    }
    return p


# TODO(synk): the reference `Decoder` class source was not provided; it is
# reconstructed (as in the accepted previous version) as an OMOMO-style
# decoder: linear input embedding -> prepend time-embedding token ->
# sinusoidal PE gathered at pos_vec -> post-LN self-attention + FFN layers
# (d_inner=2*d_model).  Dropout is omitted (inference semantics).
def transformer_diffusion_forward(params, src, noise_t, cfg, padding_mask=None):
    bs, t_steps, dc = src.shape
    seq = t_steps + 1
    seq_pad = ((seq + 7) // 8) * 8           # sublane-aligned per-batch segment
    dm, nh, dk, dv = cfg["d_model"], cfg["n_head"], cfg["d_k"], cfg["d_v"]
    di, df, n_layers = cfg["d_inner"], cfg["d_feats"], cfg["n_dec_layers"]

    # SinusoidalPosEmb(dim=64) on noise_t (pure trig, stays in XLA)
    half = 32
    freq = jnp.exp(jnp.arange(half, dtype=jnp.float32)
                   * (-math.log(10000.0) / (half - 1)))
    e = noise_t[:, None].astype(jnp.float32) * freq[None, :]
    sinu = jnp.concatenate([jnp.sin(e), jnp.cos(e)], axis=-1)        # (bs, 64)

    # src flattened with a zero time-token row and zero sublane padding
    srcp = jnp.zeros((bs, seq_pad, dc), jnp.float32)
    srcp = srcp.at[:, 1:seq, :].set(src.astype(jnp.float32))
    srcp_flat = srcp.reshape(bs * seq_pad, dc)

    # additive attention mask bias: 0 keep, -1e9 masked (padded keys masked)
    if padding_mask is None:
        padding_mask = jnp.ones((bs, 1, seq), jnp.bool_)
    pm = padding_mask.astype(jnp.float32).reshape(bs, seq)
    pm = jnp.pad(pm, ((0, 0), (0, seq_pad - seq)))                   # 0 on pad
    mask_bias = (pm - 1.0) * 1e9                                     # (bs, seq_pad)

    # positional encoding gathered at pos_vec = arange(seq) + 1, zero-padded
    pe = jnp.zeros((seq_pad, dm), jnp.float32)
    pe = pe.at[:seq].set(params["pe_table"][1:seq + 1])

    def const_spec(shape):
        return pl.BlockSpec(shape, lambda l, nd=len(shape): (0,) * nd)

    def layer_spec(shape):
        return pl.BlockSpec((1,) + shape,
                            lambda l, nd=len(shape): (l,) + (0,) * nd)

    f_qkv = nh * (2 * dk + dv)
    kernel = functools.partial(_fused_forward_kernel,
                               bs=bs, seq=seq, seq_pad=seq_pad,
                               nh=nh, dk=dk, dv=dv, eps=1e-5)

    return pl.pallas_call(
        kernel,
        out_shape=jax.ShapeDtypeStruct((bs, t_steps, df), jnp.float32),
        grid=(n_layers,),
        in_specs=[
            const_spec((bs, 64)),             # sinu
            const_spec((bs * seq_pad, dc)),   # flattened padded src
            const_spec((bs, seq_pad)),        # additive mask bias
            const_spec((seq_pad, dm)),        # positional encoding
            const_spec((64, 256)),            # t_w1
            const_spec((1, 256)),             # t_b1
            const_spec((256, dm)),            # t_w2
            const_spec((1, dm)),              # t_b2
            const_spec((dc, dm)),             # emb_w
            const_spec((1, dm)),              # emb_b
            layer_spec((dm, f_qkv)),          # wqkv (fused)
            layer_spec((nh * dv, dm)),        # fc
            layer_spec((1, dm)),              # ln1_g
            layer_spec((1, dm)),              # ln1_b
            layer_spec((dm, di)),             # ffn_w1
            layer_spec((1, di)),              # ffn_b1
            layer_spec((di, dm)),             # ffn_w2
            layer_spec((1, dm)),              # ffn_b2
            layer_spec((1, dm)),              # ln2_g
            layer_spec((1, dm)),              # ln2_b
            const_spec((dm, df)),             # out_w
            const_spec((1, df)),              # out_b
        ],
        out_specs=pl.BlockSpec((bs, t_steps, df), lambda l: (0, 0, 0)),
        scratch_shapes=[pltpu.VMEM((bs * seq_pad, dm), jnp.float32)],
        compiler_params=pltpu.CompilerParams(
            dimension_semantics=("arbitrary",)),   # layers are sequential
    )(
        sinu, srcp_flat, mask_bias, pe,
        params["t_w1"], params["t_b1"], params["t_w2"], params["t_b2"],
        params["emb_w"], params["emb_b"],
        params["wqkv"], params["fc"], params["ln1_g"], params["ln1_b"],
        params["ffn_w1"], params["ffn_b1"], params["ffn_w2"], params["ffn_b2"],
        params["ln2_g"], params["ln2_b"],
        params["out_w"], params["out_b"],
    )


# --------------------------------- driver -----------------------------------

if __name__ == "__main__":
    cfg = dict(d_feats=16, d_condfeat=20, d_model=32, n_dec_layers=2,
               n_head=2, d_k=16, d_v=16, max_timesteps=32, d_inner=64)
    bs, T = 2, 8

    key = jax.random.PRNGKey(0)
    k_src, k_t, k_param = jax.random.split(key, 3)
    src = jax.random.normal(k_src, (bs, T, cfg["d_condfeat"]), jnp.float32)
    noise_t = jax.random.randint(k_t, (bs,), 0, 1000).astype(jnp.float32)

    params = init_params(k_param, cfg)

    fwd = jax.jit(functools.partial(transformer_diffusion_forward, cfg=cfg))
    out = jax.block_until_ready(fwd(params, src, noise_t))
    assert out.shape == (bs, T, cfg["d_feats"]), out.shape
    assert bool(jnp.all(jnp.isfinite(out)))
    print("KERNEL_OK")
</pallas_src>

<mosaic_0001>
module attributes {stable_mosaic.version = 11 : i64} {
  func.func @_fused_forward_kernel(%arg0: i32, %arg1: memref<2x64xf32, #tpu.memory_space<vmem>>, %arg2: memref<32x20xf32, #tpu.memory_space<vmem>>, %arg3: memref<2x16xf32, #tpu.memory_space<vmem>>, %arg4: memref<16x32xf32, #tpu.memory_space<vmem>>, %arg5: memref<64x256xbf16, #tpu.memory_space<vmem>>, %arg6: memref<1x256xf32, #tpu.memory_space<vmem>>, %arg7: memref<256x32xbf16, #tpu.memory_space<vmem>>, %arg8: memref<1x32xf32, #tpu.memory_space<vmem>>, %arg9: memref<20x32xbf16, #tpu.memory_space<vmem>>, %arg10: memref<1x32xf32, #tpu.memory_space<vmem>>, %arg11: memref<1x32x96xbf16, #tpu.memory_space<vmem>>, %arg12: memref<1x32x32xbf16, #tpu.memory_space<vmem>>, %arg13: memref<1x1x32xf32, #tpu.memory_space<vmem>>, %arg14: memref<1x1x32xf32, #tpu.memory_space<vmem>>, %arg15: memref<1x32x64xbf16, #tpu.memory_space<vmem>>, %arg16: memref<1x1x64xf32, #tpu.memory_space<vmem>>, %arg17: memref<1x64x32xbf16, #tpu.memory_space<vmem>>, %arg18: memref<1x1x32xf32, #tpu.memory_space<vmem>>, %arg19: memref<1x1x32xf32, #tpu.memory_space<vmem>>, %arg20: memref<1x1x32xf32, #tpu.memory_space<vmem>>, %arg21: memref<32x16xbf16, #tpu.memory_space<vmem>>, %arg22: memref<1x16xf32, #tpu.memory_space<vmem>>, %arg23: memref<2x8x16xf32, #tpu.memory_space<vmem>>, %arg24: memref<32x32xf32, #tpu.memory_space<vmem>>) attributes {dimension_semantics = [#tpu.dimension_semantics<arbitrary>], iteration_bounds = array<i64: 2>, scalar_prefetch = 0 : i64, scratch_operands = 1 : i64, tpu.core_type = #tpu.core_type<tc>, window_params = [{pipeline_mode = #tpu.pipeline_mode<synchronous>, transform_indices = @transform_0, window_bounds = array<i64: 2, 64>}, {pipeline_mode = #tpu.pipeline_mode<synchronous>, transform_indices = @transform_1, window_bounds = array<i64: 32, 20>}, {pipeline_mode = #tpu.pipeline_mode<synchronous>, transform_indices = @transform_2, window_bounds = array<i64: 2, 16>}, {pipeline_mode = #tpu.pipeline_mode<synchronous>, transform_indices = @transform_3, window_bounds = array<i64: 16, 32>}, {pipeline_mode = #tpu.pipeline_mode<synchronous>, transform_indices = @transform_4, window_bounds = array<i64: 64, 256>}, {pipeline_mode = #tpu.pipeline_mode<synchronous>, transform_indices = @transform_5, window_bounds = array<i64: 1, 256>}, {pipeline_mode = #tpu.pipeline_mode<synchronous>, transform_indices = @transform_6, window_bounds = array<i64: 256, 32>}, {pipeline_mode = #tpu.pipeline_mode<synchronous>, transform_indices = @transform_7, window_bounds = array<i64: 1, 32>}, {pipeline_mode = #tpu.pipeline_mode<synchronous>, transform_indices = @transform_8, window_bounds = array<i64: 20, 32>}, {pipeline_mode = #tpu.pipeline_mode<synchronous>, transform_indices = @transform_9, window_bounds = array<i64: 1, 32>}, {transform_indices = @transform_10, window_bounds = array<i64: 1, 32, 96>}, {transform_indices = @transform_11, window_bounds = array<i64: 1, 32, 32>}, {transform_indices = @transform_12, window_bounds = array<i64: 1, 1, 32>}, {transform_indices = @transform_13, window_bounds = array<i64: 1, 1, 32>}, {transform_indices = @transform_14, window_bounds = array<i64: 1, 32, 64>}, {transform_indices = @transform_15, window_bounds = array<i64: 1, 1, 64>}, {transform_indices = @transform_16, window_bounds = array<i64: 1, 64, 32>}, {transform_indices = @transform_17, window_bounds = array<i64: 1, 1, 32>}, {transform_indices = @transform_18, window_bounds = array<i64: 1, 1, 32>}, {transform_indices = @transform_19, window_bounds = array<i64: 1, 1, 32>}, {pipeline_mode = #tpu.pipeline_mode<synchronous>, transform_indices = @transform_20, window_bounds = array<i64: 32, 16>}, {pipeline_mode = #tpu.pipeline_mode<synchronous>, transform_indices = @transform_21, window_bounds = array<i64: 1, 16>}, {pipeline_mode = #tpu.pipeline_mode<synchronous>, transform_indices = @transform_22, window_bounds = array<i64: 2, 8, 16>}]} {
    %c0_i32 = arith.constant 0 : i32
    %0 = arith.cmpi eq, %arg0, %c0_i32 : i32
    %1 = arith.extui %0 : i1 to i32
    %c0_i32_0 = arith.constant 0 : i32
    %2 = arith.cmpi ne, %1, %c0_i32_0 : i32
    scf.if %2 {
      %c0_79 = arith.constant 0 : index
      %c0_80 = arith.constant 0 : index
      %199 = vector.load %arg1[%c0_79, %c0_80] : memref<2x64xf32, #tpu.memory_space<vmem>>, vector<2x64xf32>
      %c0_81 = arith.constant 0 : index
      %c0_82 = arith.constant 0 : index
      %200 = vector.load %arg5[%c0_81, %c0_82] : memref<64x256xbf16, #tpu.memory_space<vmem>>, vector<64x256xbf16>
      %201 = arith.truncf %199 : vector<2x64xf32> to vector<2x64xbf16>
      %cst_83 = arith.constant dense<0.000000e+00> : vector<2x256xf32>
      %202 = tpu.matmul %201, %200, %cst_83 {dimension_numbers = #tpu.dot_dimension_numbers<[1], [0], [0], [1], [0, 0, 1, 1], [], []>} : vector<2x64xbf16>, vector<64x256xbf16>, vector<2x256xf32> -> vector<2x256xf32>
      %c0_84 = arith.constant 0 : index
      %c0_85 = arith.constant 0 : index
      %203 = vector.load %arg6[%c0_84, %c0_85] : memref<1x256xf32, #tpu.memory_space<vmem>>, vector<1x256xf32>
      %204 = vector.broadcast %203 : vector<1x256xf32> to vector<2x256xf32>
      %205 = arith.addf %202, %204 : vector<2x256xf32>
      %cst_86 = arith.constant 5.000000e-01 : f32
      %206 = vector.broadcast %cst_86 : f32 to vector<2x256xf32>
      %207 = arith.mulf %206, %205 : vector<2x256xf32>
      %cst_87 = arith.constant 0.707106769 : f32
      %208 = vector.broadcast %cst_87 : f32 to vector<2x256xf32>
      %209 = arith.mulf %205, %208 : vector<2x256xf32>
      %210 = math.erf %209 : vector<2x256xf32>
      %cst_88 = arith.constant 1.000000e+00 : f32
      %211 = vector.broadcast %cst_88 : f32 to vector<2x256xf32>
      %212 = arith.addf %211, %210 : vector<2x256xf32>
      %213 = arith.mulf %207, %212 : vector<2x256xf32>
      %c0_89 = arith.constant 0 : index
      %c0_90 = arith.constant 0 : index
      %214 = vector.load %arg7[%c0_89, %c0_90] : memref<256x32xbf16, #tpu.memory_space<vmem>>, vector<256x32xbf16>
      %215 = arith.truncf %213 : vector<2x256xf32> to vector<2x256xbf16>
      %cst_91 = arith.constant dense<0.000000e+00> : vector<2x32xf32>
      %216 = tpu.matmul %215, %214, %cst_91 {dimension_numbers = #tpu.dot_dimension_numbers<[1], [0], [0], [1], [0, 0, 1, 1], [], []>} : vector<2x256xbf16>, vector<256x32xbf16>, vector<2x32xf32> -> vector<2x32xf32>
      %c0_92 = arith.constant 0 : index
      %c0_93 = arith.constant 0 : index
      %217 = vector.load %arg8[%c0_92, %c0_93] : memref<1x32xf32, #tpu.memory_space<vmem>>, vector<1x32xf32>
      %218 = vector.broadcast %217 : vector<1x32xf32> to vector<2x32xf32>
      %219 = arith.addf %216, %218 : vector<2x32xf32>
      %c0_94 = arith.constant 0 : index
      %c0_95 = arith.constant 0 : index
      %220 = vector.load %arg4[%c0_94, %c0_95] : memref<16x32xf32, #tpu.memory_space<vmem>>, vector<16x32xf32>
      %c0_96 = arith.constant 0 : index
      %c0_97 = arith.constant 0 : index
      %221 = vector.load %arg2[%c0_96, %c0_97] : memref<32x20xf32, #tpu.memory_space<vmem>>, vector<32x20xf32>
      %c0_98 = arith.constant 0 : index
      %c0_99 = arith.constant 0 : index
      %222 = vector.load %arg9[%c0_98, %c0_99] : memref<20x32xbf16, #tpu.memory_space<vmem>>, vector<20x32xbf16>
      %223 = arith.truncf %221 : vector<32x20xf32> to vector<32x20xbf16>
      %cst_100 = arith.constant dense<0.000000e+00> : vector<32x32xf32>
      %224 = tpu.matmul %223, %222, %cst_100 {dimension_numbers = #tpu.dot_dimension_numbers<[1], [0], [0], [1], [0, 0, 1, 1], [], []>} : vector<32x20xbf16>, vector<20x32xbf16>, vector<32x32xf32> -> vector<32x32xf32>
      %c0_101 = arith.constant 0 : index
      %c0_102 = arith.constant 0 : index
      %225 = vector.load %arg10[%c0_101, %c0_102] : memref<1x32xf32, #tpu.memory_space<vmem>>, vector<1x32xf32>
      %226 = vector.broadcast %225 : vector<1x32xf32> to vector<32x32xf32>
      %227 = arith.addf %224, %226 : vector<32x32xf32>
      %228 = tpu.concatenate %220, %220 in 0 : vector<16x32xf32>, vector<16x32xf32> -> vector<32x32xf32>
      %229 = arith.addf %227, %228 : vector<32x32xf32>
      %c0_103 = arith.constant 0 : index
      %c0_104 = arith.constant 0 : index
      %230 = vector.load %arg24[%c0_103, %c0_104] : memref<32x32xf32, #tpu.memory_space<vmem>>, vector<32x32xf32>
      tpu.vector_store %arg24[%c0_103, %c0_104], %229 {strides = array<i32>} : memref<32x32xf32, #tpu.memory_space<vmem>>, vector<32x32xf32>,
      %231 = vector.extract_strided_slice %219 {offsets = [0, 0], sizes = [1, 32], strides = [1, 1]} : vector<2x32xf32> to vector<1x32xf32>
      %232 = vector.extract_strided_slice %220 {offsets = [0, 0], sizes = [1, 32], strides = [1, 1]} : vector<16x32xf32> to vector<1x32xf32>
      %233 = arith.addf %231, %232 : vector<1x32xf32>
      %c0_105 = arith.constant 0 : index
      %c0_106 = arith.constant 0 : index
      %234 = vector.load %arg24[%c0_105, %c0_106] : memref<32x32xf32, #tpu.memory_space<vmem>>, vector<1x32xf32>
      tpu.vector_store %arg24[%c0_105, %c0_106], %233 {strides = array<i32>} : memref<32x32xf32, #tpu.memory_space<vmem>>, vector<1x32xf32>,
      %235 = vector.extract_strided_slice %219 {offsets = [1, 0], sizes = [1, 32], strides = [1, 1]} : vector<2x32xf32> to vector<1x32xf32>
      %236 = vector.extract_strided_slice %220 {offsets = [0, 0], sizes = [1, 32], strides = [1, 1]} : vector<16x32xf32> to vector<1x32xf32>
      %237 = arith.addf %235, %236 : vector<1x32xf32>
      %c16_107 = arith.constant 16 : index
      %c0_108 = arith.constant 0 : index
      %238 = vector.load %arg24[%c16_107, %c0_108] : memref<32x32xf32, #tpu.memory_space<vmem>>, vector<1x32xf32>
      tpu.vector_store %arg24[%c16_107, %c0_108], %237 {strides = array<i32>} : memref<32x32xf32, #tpu.memory_space<vmem>>, vector<1x32xf32>,
    } else {
    }
    %c0 = arith.constant 0 : index
    %c0_1 = arith.constant 0 : index
    %c0_2 = arith.constant 0 : index
    %3 = vector.load %arg11[%c0, %c0_1, %c0_2] : memref<1x32x96xbf16, #tpu.memory_space<vmem>>, vector<1x32x96xbf16>
    %4 = vector.shape_cast %3 : vector<1x32x96xbf16> to vector<32x96xbf16>
    %c0_3 = arith.constant 0 : index
    %c0_4 = arith.constant 0 : index
    %c0_5 = arith.constant 0 : index
    %5 = vector.load %arg12[%c0_3, %c0_4, %c0_5] : memref<1x32x32xbf16, #tpu.memory_space<vmem>>, vector<1x32x32xbf16>
    %6 = vector.shape_cast %5 : vector<1x32x32xbf16> to vector<32x32xbf16>
    %c0_6 = arith.constant 0 : index
    %c0_7 = arith.constant 0 : index
    %c0_8 = arith.constant 0 : index
    %7 = vector.load %arg13[%c0_6, %c0_7, %c0_8] : memref<1x1x32xf32, #tpu.memory_space<vmem>>, vector<1x1x32xf32>
    %8 = vector.shape_cast %7 : vector<1x1x32xf32> to vector<1x32xf32>
    %c0_9 = arith.constant 0 : index
    %c0_10 = arith.constant 0 : index
    %c0_11 = arith.constant 0 : index
    %9 = vector.load %arg14[%c0_9, %c0_10, %c0_11] : memref<1x1x32xf32, #tpu.memory_space<vmem>>, vector<1x1x32xf32>
    %10 = vector.shape_cast %9 : vector<1x1x32xf32> to vector<1x32xf32>
    %c0_12 = arith.constant 0 : index
    %c0_13 = arith.constant 0 : index
    %c0_14 = arith.constant 0 : index
    %11 = vector.load %arg15[%c0_12, %c0_13, %c0_14] : memref<1x32x64xbf16, #tpu.memory_space<vmem>>, vector<1x32x64xbf16>
    %12 = vector.shape_cast %11 : vector<1x32x64xbf16> to vector<32x64xbf16>
    %c0_15 = arith.constant 0 : index
    %c0_16 = arith.constant 0 : index
    %c0_17 = arith.constant 0 : index
    %13 = vector.load %arg16[%c0_15, %c0_16, %c0_17] : memref<1x1x64xf32, #tpu.memory_space<vmem>>, vector<1x1x64xf32>
    %14 = vector.shape_cast %13 : vector<1x1x64xf32> to vector<1x64xf32>
    %c0_18 = arith.constant 0 : index
    %c0_19 = arith.constant 0 : index
    %c0_20 = arith.constant 0 : index
    %15 = vector.load %arg17[%c0_18, %c0_19, %c0_20] : memref<1x64x32xbf16, #tpu.memory_space<vmem>>, vector<1x64x32xbf16>
    %16 = vector.shape_cast %15 : vector<1x64x32xbf16> to vector<64x32xbf16>
    %c0_21 = arith.constant 0 : index
    %c0_22 = arith.constant 0 : index
    %c0_23 = arith.constant 0 : index
    %17 = vector.load %arg18[%c0_21, %c0_22, %c0_23] : memref<1x1x32xf32, #tpu.memory_space<vmem>>, vector<1x1x32xf32>
    %18 = vector.shape_cast %17 : vector<1x1x32xf32> to vector<1x32xf32>
    %c0_24 = arith.constant 0 : index
    %c0_25 = arith.constant 0 : index
    %c0_26 = arith.constant 0 : index
    %19 = vector.load %arg19[%c0_24, %c0_25, %c0_26] : memref<1x1x32xf32, #tpu.memory_space<vmem>>, vector<1x1x32xf32>
    %20 = vector.shape_cast %19 : vector<1x1x32xf32> to vector<1x32xf32>
    %c0_27 = arith.constant 0 : index
    %c0_28 = arith.constant 0 : index
    %c0_29 = arith.constant 0 : index
    %21 = vector.load %arg20[%c0_27, %c0_28, %c0_29] : memref<1x1x32xf32, #tpu.memory_space<vmem>>, vector<1x1x32xf32>
    %22 = vector.shape_cast %21 : vector<1x1x32xf32> to vector<1x32xf32>
    %c0_30 = arith.constant 0 : index
    %c0_31 = arith.constant 0 : index
    %23 = vector.load %arg3[%c0_30, %c0_31] : memref<2x16xf32, #tpu.memory_space<vmem>>, vector<2x16xf32>
    %c0_32 = arith.constant 0 : index
    %c0_33 = arith.constant 0 : index
    %24 = vector.load %arg24[%c0_32, %c0_33] : memref<32x32xf32, #tpu.memory_space<vmem>>, vector<32x32xf32>
    %25 = arith.truncf %24 : vector<32x32xf32> to vector<32x32xbf16>
    %cst = arith.constant dense<0.000000e+00> : vector<32x96xf32>
    %26 = tpu.matmul %25, %4, %cst {dimension_numbers = #tpu.dot_dimension_numbers<[1], [0], [0], [1], [0, 0, 1, 1], [], []>} : vector<32x32xbf16>, vector<32x96xbf16>, vector<32x96xf32> -> vector<32x96xf32>
    %27 = vector.extract_strided_slice %26 {offsets = [0, 0], sizes = [16, 96], strides = [1, 1]} : vector<32x96xf32> to vector<16x96xf32>
    %28 = vector.extract_strided_slice %23 {offsets = [0, 0], sizes = [1, 16], strides = [1, 1]} : vector<2x16xf32> to vector<1x16xf32>
    %29 = vector.extract_strided_slice %27 {offsets = [0, 0], sizes = [16, 16], strides = [1, 1]} : vector<16x96xf32> to vector<16x16xf32>
    %30 = vector.extract_strided_slice %27 {offsets = [0, 32], sizes = [16, 16], strides = [1, 1]} : vector<16x96xf32> to vector<16x16xf32>
    %31 = vector.extract_strided_slice %27 {offsets = [0, 64], sizes = [16, 16], strides = [1, 1]} : vector<16x96xf32> to vector<16x16xf32>
    %32 = arith.truncf %29 : vector<16x16xf32> to vector<16x16xbf16>
    %33 = arith.truncf %30 : vector<16x16xf32> to vector<16x16xbf16>
    %cst_34 = arith.constant dense<0.000000e+00> : vector<16x16xf32>
    %34 = tpu.matmul %32, %33, %cst_34 {dimension_numbers = #tpu.dot_dimension_numbers<[1], [1], [0], [0], [0, 0, 1, 0], [], []>} : vector<16x16xbf16>, vector<16x16xbf16>, vector<16x16xf32> -> vector<16x16xf32>
    %cst_35 = arith.constant 2.500000e-01 : f32
    %35 = vector.broadcast %cst_35 : f32 to vector<16x16xf32>
    %36 = arith.mulf %34, %35 : vector<16x16xf32>
    %37 = vector.broadcast %28 : vector<1x16xf32> to vector<16x16xf32>
    %38 = arith.addf %36, %37 : vector<16x16xf32>
    %cst_36 = arith.constant dense<0xFF800000> : vector<16xf32>
    %39 = vector.multi_reduction <maximumf>, %38, %cst_36 [1] : vector<16x16xf32> to vector<16xf32>
    %40 = vector.shape_cast %39 : vector<16xf32> to vector<16x1xf32>
    %41 = vector.broadcast %40 : vector<16x1xf32> to vector<16x16xf32>
    %42 = arith.subf %38, %41 : vector<16x16xf32>
    %43 = math.exp %42 : vector<16x16xf32>
    %cst_37 = arith.constant dense<0.000000e+00> : vector<16xf32>
    %44 = vector.multi_reduction <add>, %43, %cst_37 [1] : vector<16x16xf32> to vector<16xf32>
    %45 = vector.shape_cast %44 : vector<16xf32> to vector<16x1xf32>
    %46 = tpu.reciprocal %45 {approx = true} : vector<16x1xf32> -> vector<16x1xf32>
    %47 = vector.broadcast %46 : vector<16x1xf32> to vector<16x16xf32>
    %48 = arith.mulf %43, %47 : vector<16x16xf32>
    %49 = arith.truncf %48 : vector<16x16xf32> to vector<16x16xbf16>
    %50 = arith.truncf %31 : vector<16x16xf32> to vector<16x16xbf16>
    %cst_38 = arith.constant dense<0.000000e+00> : vector<16x16xf32>
    %51 = tpu.matmul %49, %50, %cst_38 {dimension_numbers = #tpu.dot_dimension_numbers<[1], [0], [0], [1], [0, 0, 1, 1], [], []>} : vector<16x16xbf16>, vector<16x16xbf16>, vector<16x16xf32> -> vector<16x16xf32>
    %52 = vector.extract_strided_slice %6 {offsets = [0, 0], sizes = [16, 32], strides = [1, 1]} : vector<32x32xbf16> to vector<16x32xbf16>
    %53 = arith.truncf %51 : vector<16x16xf32> to vector<16x16xbf16>
    %cst_39 = arith.constant dense<0.000000e+00> : vector<16x32xf32>
    %54 = tpu.matmul %53, %52, %cst_39 {dimension_numbers = #tpu.dot_dimension_numbers<[1], [0], [0], [1], [0, 0, 1, 1], [], []>} : vector<16x16xbf16>, vector<16x32xbf16>, vector<16x32xf32> -> vector<16x32xf32>
    %55 = vector.extract_strided_slice %27 {offsets = [0, 16], sizes = [16, 16], strides = [1, 1]} : vector<16x96xf32> to vector<16x16xf32>
    %56 = vector.extract_strided_slice %27 {offsets = [0, 48], sizes = [16, 16], strides = [1, 1]} : vector<16x96xf32> to vector<16x16xf32>
    %57 = vector.extract_strided_slice %27 {offsets = [0, 80], sizes = [16, 16], strides = [1, 1]} : vector<16x96xf32> to vector<16x16xf32>
    %58 = arith.truncf %55 : vector<16x16xf32> to vector<16x16xbf16>
    %59 = arith.truncf %56 : vector<16x16xf32> to vector<16x16xbf16>
    %cst_40 = arith.constant dense<0.000000e+00> : vector<16x16xf32>
    %60 = tpu.matmul %58, %59, %cst_40 {dimension_numbers = #tpu.dot_dimension_numbers<[1], [1], [0], [0], [0, 0, 1, 0], [], []>} : vector<16x16xbf16>, vector<16x16xbf16>, vector<16x16xf32> -> vector<16x16xf32>
    %cst_41 = arith.constant 2.500000e-01 : f32
    %61 = vector.broadcast %cst_41 : f32 to vector<16x16xf32>
    %62 = arith.mulf %60, %61 : vector<16x16xf32>
    %63 = vector.broadcast %28 : vector<1x16xf32> to vector<16x16xf32>
    %64 = arith.addf %62, %63 : vector<16x16xf32>
    %cst_42 = arith.constant dense<0xFF800000> : vector<16xf32>
    %65 = vector.multi_reduction <maximumf>, %64, %cst_42 [1] : vector<16x16xf32> to vector<16xf32>
    %66 = vector.shape_cast %65 : vector<16xf32> to vector<16x1xf32>
    %67 = vector.broadcast %66 : vector<16x1xf32> to vector<16x16xf32>
    %68 = arith.subf %64, %67 : vector<16x16xf32>
    %69 = math.exp %68 : vector<16x16xf32>
    %cst_43 = arith.constant dense<0.000000e+00> : vector<16xf32>
    %70 = vector.multi_reduction <add>, %69, %cst_43 [1] : vector<16x16xf32> to vector<16xf32>
    %71 = vector.shape_cast %70 : vector<16xf32> to vector<16x1xf32>
    %72 = tpu.reciprocal %71 {approx = true} : vector<16x1xf32> -> vector<16x1xf32>
    %73 = vector.broadcast %72 : vector<16x1xf32> to vector<16x16xf32>
    %74 = arith.mulf %69, %73 : vector<16x16xf32>
    %75 = arith.truncf %74 : vector<16x16xf32> to vector<16x16xbf16>
    %76 = arith.truncf %57 : vector<16x16xf32> to vector<16x16xbf16>
    %cst_44 = arith.constant dense<0.000000e+00> : vector<16x16xf32>
    %77 = tpu.matmul %75, %76, %cst_44 {dimension_numbers = #tpu.dot_dimension_numbers<[1], [0], [0], [1], [0, 0, 1, 1], [], []>} : vector<16x16xbf16>, vector<16x16xbf16>, vector<16x16xf32> -> vector<16x16xf32>
    %78 = vector.extract_strided_slice %6 {offsets = [16, 0], sizes = [16, 32], strides = [1, 1]} : vector<32x32xbf16> to vector<16x32xbf16>
    %79 = arith.truncf %77 : vector<16x16xf32> to vector<16x16xbf16>
    %cst_45 = arith.constant dense<0.000000e+00> : vector<16x32xf32>
    %80 = tpu.matmul %79, %78, %cst_45 {dimension_numbers = #tpu.dot_dimension_numbers<[1], [0], [0], [1], [0, 0, 1, 1], [], []>} : vector<16x16xbf16>, vector<16x32xbf16>, vector<16x32xf32> -> vector<16x32xf32>
    %81 = arith.addf %54, %80 : vector<16x32xf32>
    %82 = vector.extract_strided_slice %24 {offsets = [0, 0], sizes = [16, 32], strides = [1, 1]} : vector<32x32xf32> to vector<16x32xf32>
    %83 = arith.addf %82, %81 : vector<16x32xf32>
    %c0_46 = arith.constant 0 : index
    %c0_47 = arith.constant 0 : index
    %84 = vector.load %arg24[%c0_46, %c0_47] : memref<32x32xf32, #tpu.memory_space<vmem>>, vector<16x32xf32>
    tpu.vector_store %arg24[%c0_46, %c0_47], %83 {strides = array<i32>} : memref<32x32xf32, #tpu.memory_space<vmem>>, vector<16x32xf32>,
    %85 = vector.extract_strided_slice %26 {offsets = [16, 0], sizes = [16, 96], strides = [1, 1]} : vector<32x96xf32> to vector<16x96xf32>
    %86 = vector.extract_strided_slice %23 {offsets = [1, 0], sizes = [1, 16], strides = [1, 1]} : vector<2x16xf32> to vector<1x16xf32>
    %87 = vector.extract_strided_slice %85 {offsets = [0, 0], sizes = [16, 16], strides = [1, 1]} : vector<16x96xf32> to vector<16x16xf32>
    %88 = vector.extract_strided_slice %85 {offsets = [0, 32], sizes = [16, 16], strides = [1, 1]} : vector<16x96xf32> to vector<16x16xf32>
    %89 = vector.extract_strided_slice %85 {offsets = [0, 64], sizes = [16, 16], strides = [1, 1]} : vector<16x96xf32> to vector<16x16xf32>
    %90 = arith.truncf %87 : vector<16x16xf32> to vector<16x16xbf16>
    %91 = arith.truncf %88 : vector<16x16xf32> to vector<16x16xbf16>
    %cst_48 = arith.constant dense<0.000000e+00> : vector<16x16xf32>
    %92 = tpu.matmul %90, %91, %cst_48 {dimension_numbers = #tpu.dot_dimension_numbers<[1], [1], [0], [0], [0, 0, 1, 0], [], []>} : vector<16x16xbf16>, vector<16x16xbf16>, vector<16x16xf32> -> vector<16x16xf32>
    %cst_49 = arith.constant 2.500000e-01 : f32
    %93 = vector.broadcast %cst_49 : f32 to vector<16x16xf32>
    %94 = arith.mulf %92, %93 : vector<16x16xf32>
    %95 = vector.broadcast %86 : vector<1x16xf32> to vector<16x16xf32>
    %96 = arith.addf %94, %95 : vector<16x16xf32>
    %cst_50 = arith.constant dense<0xFF800000> : vector<16xf32>
    %97 = vector.multi_reduction <maximumf>, %96, %cst_50 [1] : vector<16x16xf32> to vector<16xf32>
    %98 = vector.shape_cast %97 : vector<16xf32> to vector<16x1xf32>
    %99 = vector.broadcast %98 : vector<16x1xf32> to vector<16x16xf32>
    %100 = arith.subf %96, %99 : vector<16x16xf32>
    %101 = math.exp %100 : vector<16x16xf32>
    %cst_51 = arith.constant dense<0.000000e+00> : vector<16xf32>
    %102 = vector.multi_reduction <add>, %101, %cst_51 [1] : vector<16x16xf32> to vector<16xf32>
    %103 = vector.shape_cast %102 : vector<16xf32> to vector<16x1xf32>
    %104 = tpu.reciprocal %103 {approx = true} : vector<16x1xf32> -> vector<16x1xf32>
    %105 = vector.broadcast %104 : vector<16x1xf32> to vector<16x16xf32>
    %106 = arith.mulf %101, %105 : vector<16x16xf32>
    %107 = arith.truncf %106 : vector<16x16xf32> to vector<16x16xbf16>
    %108 = arith.truncf %89 : vector<16x16xf32> to vector<16x16xbf16>
    %cst_52 = arith.constant dense<0.000000e+00> : vector<16x16xf32>
    %109 = tpu.matmul %107, %108, %cst_52 {dimension_numbers = #tpu.dot_dimension_numbers<[1], [0], [0], [1], [0, 0, 1, 1], [], []>} : vector<16x16xbf16>, vector<16x16xbf16>, vector<16x16xf32> -> vector<16x16xf32>
    %110 = vector.extract_strided_slice %6 {offsets = [0, 0], sizes = [16, 32], strides = [1, 1]} : vector<32x32xbf16> to vector<16x32xbf16>
    %111 = arith.truncf %109 : vector<16x16xf32> to vector<16x16xbf16>
    %cst_53 = arith.constant dense<0.000000e+00> : vector<16x32xf32>
    %112 = tpu.matmul %111, %110, %cst_53 {dimension_numbers = #tpu.dot_dimension_numbers<[1], [0], [0], [1], [0, 0, 1, 1], [], []>} : vector<16x16xbf16>, vector<16x32xbf16>, vector<16x32xf32> -> vector<16x32xf32>
    %113 = vector.extract_strided_slice %85 {offsets = [0, 16], sizes = [16, 16], strides = [1, 1]} : vector<16x96xf32> to vector<16x16xf32>
    %114 = vector.extract_strided_slice %85 {offsets = [0, 48], sizes = [16, 16], strides = [1, 1]} : vector<16x96xf32> to vector<16x16xf32>
    %115 = vector.extract_strided_slice %85 {offsets = [0, 80], sizes = [16, 16], strides = [1, 1]} : vector<16x96xf32> to vector<16x16xf32>
    %116 = arith.truncf %113 : vector<16x16xf32> to vector<16x16xbf16>
    %117 = arith.truncf %114 : vector<16x16xf32> to vector<16x16xbf16>
    %cst_54 = arith.constant dense<0.000000e+00> : vector<16x16xf32>
    %118 = tpu.matmul %116, %117, %cst_54 {dimension_numbers = #tpu.dot_dimension_numbers<[1], [1], [0], [0], [0, 0, 1, 0], [], []>} : vector<16x16xbf16>, vector<16x16xbf16>, vector<16x16xf32> -> vector<16x16xf32>
    %cst_55 = arith.constant 2.500000e-01 : f32
    %119 = vector.broadcast %cst_55 : f32 to vector<16x16xf32>
    %120 = arith.mulf %118, %119 : vector<16x16xf32>
    %121 = vector.broadcast %86 : vector<1x16xf32> to vector<16x16xf32>
    %122 = arith.addf %120, %121 : vector<16x16xf32>
    %cst_56 = arith.constant dense<0xFF800000> : vector<16xf32>
    %123 = vector.multi_reduction <maximumf>, %122, %cst_56 [1] : vector<16x16xf32> to vector<16xf32>
    %124 = vector.shape_cast %123 : vector<16xf32> to vector<16x1xf32>
    %125 = vector.broadcast %124 : vector<16x1xf32> to vector<16x16xf32>
    %126 = arith.subf %122, %125 : vector<16x16xf32>
    %127 = math.exp %126 : vector<16x16xf32>
    %cst_57 = arith.constant dense<0.000000e+00> : vector<16xf32>
    %128 = vector.multi_reduction <add>, %127, %cst_57 [1] : vector<16x16xf32> to vector<16xf32>
    %129 = vector.shape_cast %128 : vector<16xf32> to vector<16x1xf32>
    %130 = tpu.reciprocal %129 {approx = true} : vector<16x1xf32> -> vector<16x1xf32>
    %131 = vector.broadcast %130 : vector<16x1xf32> to vector<16x16xf32>
    %132 = arith.mulf %127, %131 : vector<16x16xf32>
    %133 = arith.truncf %132 : vector<16x16xf32> to vector<16x16xbf16>
    %134 = arith.truncf %115 : vector<16x16xf32> to vector<16x16xbf16>
    %cst_58 = arith.constant dense<0.000000e+00> : vector<16x16xf32>
    %135 = tpu.matmul %133, %134, %cst_58 {dimension_numbers = #tpu.dot_dimension_numbers<[1], [0], [0], [1], [0, 0, 1, 1], [], []>} : vector<16x16xbf16>, vector<16x16xbf16>, vector<16x16xf32> -> vector<16x16xf32>
    %136 = vector.extract_strided_slice %6 {offsets = [16, 0], sizes = [16, 32], strides = [1, 1]} : vector<32x32xbf16> to vector<16x32xbf16>
    %137 = arith.truncf %135 : vector<16x16xf32> to vector<16x16xbf16>
    %cst_59 = arith.constant dense<0.000000e+00> : vector<16x32xf32>
    %138 = tpu.matmul %137, %136, %cst_59 {dimension_numbers = #tpu.dot_dimension_numbers<[1], [0], [0], [1], [0, 0, 1, 1], [], []>} : vector<16x16xbf16>, vector<16x32xbf16>, vector<16x32xf32> -> vector<16x32xf32>
    %139 = arith.addf %112, %138 : vector<16x32xf32>
    %140 = vector.extract_strided_slice %24 {offsets = [16, 0], sizes = [16, 32], strides = [1, 1]} : vector<32x32xf32> to vector<16x32xf32>
    %141 = arith.addf %140, %139 : vector<16x32xf32>
    %c16 = arith.constant 16 : index
    %c0_60 = arith.constant 0 : index
    %142 = vector.load %arg24[%c16, %c0_60] : memref<32x32xf32, #tpu.memory_space<vmem>>, vector<16x32xf32>
    tpu.vector_store %arg24[%c16, %c0_60], %141 {strides = array<i32>} : memref<32x32xf32, #tpu.memory_space<vmem>>, vector<16x32xf32>,
    %c0_61 = arith.constant 0 : index
    %c0_62 = arith.constant 0 : index
    %143 = vector.load %arg24[%c0_61, %c0_62] : memref<32x32xf32, #tpu.memory_space<vmem>>, vector<32x32xf32>
    %cst_63 = arith.constant dense<0.000000e+00> : vector<32xf32>
    %144 = vector.multi_reduction <add>, %143, %cst_63 [1] : vector<32x32xf32> to vector<32xf32>
    %145 = vector.shape_cast %144 : vector<32xf32> to vector<32x1xf32>
    %cst_64 = arith.constant 3.200000e+01 : f32
    %146 = vector.broadcast %cst_64 : f32 to vector<32x1xf32>
    %147 = arith.divf %145, %146 : vector<32x1xf32>
    %148 = vector.broadcast %147 : vector<32x1xf32> to vector<32x32xf32>
    %149 = arith.subf %143, %148 : vector<32x32xf32>
    %150 = arith.mulf %149, %149 : vector<32x32xf32>
    %cst_65 = arith.constant dense<0.000000e+00> : vector<32xf32>
    %151 = vector.multi_reduction <add>, %150, %cst_65 [1] : vector<32x32xf32> to vector<32xf32>
    %152 = vector.shape_cast %151 : vector<32xf32> to vector<32x1xf32>
    %cst_66 = arith.constant 3.200000e+01 : f32
    %153 = vector.broadcast %cst_66 : f32 to vector<32x1xf32>
    %154 = arith.divf %152, %153 : vector<32x1xf32>
    %cst_67 = arith.constant 9.99999974E-6 : f32
    %155 = vector.broadcast %cst_67 : f32 to vector<32x1xf32>
    %156 = arith.addf %154, %155 : vector<32x1xf32>
    %157 = math.rsqrt %156 : vector<32x1xf32>
    %158 = vector.broadcast %157 : vector<32x1xf32> to vector<32x32xf32>
    %159 = arith.mulf %149, %158 : vector<32x32xf32>
    %160 = vector.broadcast %8 : vector<1x32xf32> to vector<32x32xf32>
    %161 = arith.mulf %159, %160 : vector<32x32xf32>
    %162 = vector.broadcast %10 : vector<1x32xf32> to vector<32x32xf32>
    %163 = arith.addf %161, %162 : vector<32x32xf32>
    %164 = arith.truncf %163 : vector<32x32xf32> to vector<32x32xbf16>
    %cst_68 = arith.constant dense<0.000000e+00> : vector<32x64xf32>
    %165 = tpu.matmul %164, %12, %cst_68 {dimension_numbers = #tpu.dot_dimension_numbers<[1], [0], [0], [1], [0, 0, 1, 1], [], []>} : vector<32x32xbf16>, vector<32x64xbf16>, vector<32x64xf32> -> vector<32x64xf32>
    %166 = vector.broadcast %14 : vector<1x64xf32> to vector<32x64xf32>
    %167 = arith.addf %165, %166 : vector<32x64xf32>
    %cst_69 = arith.constant 0.000000e+00 : f32
    %168 = vector.broadcast %cst_69 : f32 to vector<32x64xf32>
    %169 = arith.maximumf %167, %168 : vector<32x64xf32>
    %170 = arith.truncf %169 : vector<32x64xf32> to vector<32x64xbf16>
    %cst_70 = arith.constant dense<0.000000e+00> : vector<32x32xf32>
    %171 = tpu.matmul %170, %16, %cst_70 {dimension_numbers = #tpu.dot_dimension_numbers<[1], [0], [0], [1], [0, 0, 1, 1], [], []>} : vector<32x64xbf16>, vector<64x32xbf16>, vector<32x32xf32> -> vector<32x32xf32>
    %172 = vector.broadcast %18 : vector<1x32xf32> to vector<32x32xf32>
    %173 = arith.addf %171, %172 : vector<32x32xf32>
    %174 = arith.addf %163, %173 : vector<32x32xf32>
    %cst_71 = arith.constant dense<0.000000e+00> : vector<32xf32>
    %175 = vector.multi_reduction <add>, %174, %cst_71 [1] : vector<32x32xf32> to vector<32xf32>
    %176 = vector.shape_cast %175 : vector<32xf32> to vector<32x1xf32>
    %cst_72 = arith.constant 3.200000e+01 : f32
    %177 = vector.broadcast %cst_72 : f32 to vector<32x1xf32>
    %178 = arith.divf %176, %177 : vector<32x1xf32>
    %179 = vector.broadcast %178 : vector<32x1xf32> to vector<32x32xf32>
    %180 = arith.subf %174, %179 : vector<32x32xf32>
    %181 = arith.mulf %180, %180 : vector<32x32xf32>
    %cst_73 = arith.constant dense<0.000000e+00> : vector<32xf32>
    %182 = vector.multi_reduction <add>, %181, %cst_73 [1] : vector<32x32xf32> to vector<32xf32>
    %183 = vector.shape_cast %182 : vector<32xf32> to vector<32x1xf32>
    %cst_74 = arith.constant 3.200000e+01 : f32
    %184 = vector.broadcast %cst_74 : f32 to vector<32x1xf32>
    %185 = arith.divf %183, %184 : vector<32x1xf32>
    %cst_75 = arith.constant 9.99999974E-6 : f32
    %186 = vector.broadcast %cst_75 : f32 to vector<32x1xf32>
    %187 = arith.addf %185, %186 : vector<32x1xf32>
    %188 = math.rsqrt %187 : vector<32x1xf32>
    %189 = vector.broadcast %188 : vector<32x1xf32> to vector<32x32xf32>
    %190 = arith.mulf %180, %189 : vector<32x32xf32>
    %191 = vector.broadcast %20 : vector<1x32xf32> to vector<32x32xf32>
    %192 = arith.mulf %190, %191 : vector<32x32xf32>
    %193 = vector.broadcast %22 : vector<1x32xf32> to vector<32x32xf32>
    %194 = arith.addf %192, %193 : vector<32x32xf32>
    %c0_76 = arith.constant 0 : index
    %c0_77 = arith.constant 0 : index
    %195 = vector.load %arg24[%c0_76, %c0_77] : memref<32x32xf32, #tpu.memory_space<vmem>>, vector<32x32xf32>
    tpu.vector_store %arg24[%c0_76, %c0_77], %194 {strides = array<i32>} : memref<32x32xf32, #tpu.memory_space<vmem>>, vector<32x32xf32>,
    %c1_i32 = arith.constant 1 : i32
    %196 = arith.cmpi eq, %arg0, %c1_i32 : i32
    %197 = arith.extui %196 : i1 to i32
    %c0_i32_78 = arith.constant 0 : i32
    %198 = arith.cmpi ne, %197, %c0_i32_78 : i32
    scf.if %198 {
      %c0_79 = arith.constant 0 : index
      %c0_80 = arith.constant 0 : index
      %199 = vector.load %arg24[%c0_79, %c0_80] : memref<32x32xf32, #tpu.memory_space<vmem>>, vector<32x32xf32>
      %c0_81 = arith.constant 0 : index
      %c0_82 = arith.constant 0 : index
      %200 = vector.load %arg21[%c0_81, %c0_82] : memref<32x16xbf16, #tpu.memory_space<vmem>>, vector<32x16xbf16>
      %201 = arith.truncf %199 : vector<32x32xf32> to vector<32x32xbf16>
      %cst_83 = arith.constant dense<0.000000e+00> : vector<32x16xf32>
      %202 = tpu.matmul %201, %200, %cst_83 {dimension_numbers = #tpu.dot_dimension_numbers<[1], [0], [0], [1], [0, 0, 1, 1], [], []>} : vector<32x32xbf16>, vector<32x16xbf16>, vector<32x16xf32> -> vector<32x16xf32>
      %c0_84 = arith.constant 0 : index
      %c0_85 = arith.constant 0 : index
      %203 = vector.load %arg22[%c0_84, %c0_85] : memref<1x16xf32, #tpu.memory_space<vmem>>, vector<1x16xf32>
      %204 = vector.broadcast %203 : vector<1x16xf32> to vector<32x16xf32>
      %205 = arith.addf %202, %204 : vector<32x16xf32>
      %206 = vector.extract_strided_slice %205 {offsets = [1, 0], sizes = [8, 16], strides = [1, 1]} : vector<32x16xf32> to vector<8x16xf32>
      %c0_86 = arith.constant 0 : index
      %c0_87 = arith.constant 0 : index
      %c0_88 = arith.constant 0 : index
      %207 = vector.load %arg23[%c0_86, %c0_87, %c0_88] : memref<2x8x16xf32, #tpu.memory_space<vmem>>, vector<1x8x16xf32>
      %208 = vector.shape_cast %207 : vector<1x8x16xf32> to vector<8x16xf32>
      %209 = vector.shape_cast %206 : vector<8x16xf32> to vector<1x8x16xf32>
      tpu.vector_store %arg23[%c0_86, %c0_87, %c0_88], %209 {strides = array<i32>} : memref<2x8x16xf32, #tpu.memory_space<vmem>>, vector<1x8x16xf32>,
      %210 = vector.extract_strided_slice %205 {offsets = [17, 0], sizes = [8, 16], strides = [1, 1]} : vector<32x16xf32> to vector<8x16xf32>
      %c1 = arith.constant 1 : index
      %c0_89 = arith.constant 0 : index
      %c0_90 = arith.constant 0 : index
      %211 = vector.load %arg23[%c1, %c0_89, %c0_90] : memref<2x8x16xf32, #tpu.memory_space<vmem>>, vector<1x8x16xf32>
      %212 = vector.shape_cast %211 : vector<1x8x16xf32> to vector<8x16xf32>
      %213 = vector.shape_cast %210 : vector<8x16xf32> to vector<1x8x16xf32>
      tpu.vector_store %arg23[%c1, %c0_89, %c0_90], %213 {strides = array<i32>} : memref<2x8x16xf32, #tpu.memory_space<vmem>>, vector<1x8x16xf32>,
    } else {
    }
    return
  }
  func.func @transform_0(%arg0: i32) -> (i32, i32) {
    %c0_i32 = arith.constant 0 : i32
    %c0_i32_0 = arith.constant 0 : i32
    %c0_i32_1 = arith.constant 0 : i32
    return %c0_i32, %c0_i32_0 : i32, i32
  }
  func.func @transform_1(%arg0: i32) -> (i32, i32) {
    %c0_i32 = arith.constant 0 : i32
    %c0_i32_0 = arith.constant 0 : i32
    %c0_i32_1 = arith.constant 0 : i32
    return %c0_i32, %c0_i32_0 : i32, i32
  }
  func.func @transform_2(%arg0: i32) -> (i32, i32) {
    %c0_i32 = arith.constant 0 : i32
    %c0_i32_0 = arith.constant 0 : i32
    %c0_i32_1 = arith.constant 0 : i32
    return %c0_i32, %c0_i32_0 : i32, i32
  }
  func.func @transform_3(%arg0: i32) -> (i32, i32) {
    %c0_i32 = arith.constant 0 : i32
    %c0_i32_0 = arith.constant 0 : i32
    %c0_i32_1 = arith.constant 0 : i32
    return %c0_i32, %c0_i32_0 : i32, i32
  }
  func.func @transform_4(%arg0: i32) -> (i32, i32) {
    %c0_i32 = arith.constant 0 : i32
    %c0_i32_0 = arith.constant 0 : i32
    %c0_i32_1 = arith.constant 0 : i32
    return %c0_i32, %c0_i32_0 : i32, i32
  }
  func.func @transform_5(%arg0: i32) -> (i32, i32) {
    %c0_i32 = arith.constant 0 : i32
    %c0_i32_0 = arith.constant 0 : i32
    %c0_i32_1 = arith.constant 0 : i32
    return %c0_i32, %c0_i32_0 : i32, i32
  }
  func.func @transform_6(%arg0: i32) -> (i32, i32) {
    %c0_i32 = arith.constant 0 : i32
    %c0_i32_0 = arith.constant 0 : i32
    %c0_i32_1 = arith.constant 0 : i32
    return %c0_i32, %c0_i32_0 : i32, i32
  }
  func.func @transform_7(%arg0: i32) -> (i32, i32) {
    %c0_i32 = arith.constant 0 : i32
    %c0_i32_0 = arith.constant 0 : i32
    %c0_i32_1 = arith.constant 0 : i32
    return %c0_i32, %c0_i32_0 : i32, i32
  }
  func.func @transform_8(%arg0: i32) -> (i32, i32) {
    %c0_i32 = arith.constant 0 : i32
    %c0_i32_0 = arith.constant 0 : i32
    %c0_i32_1 = arith.constant 0 : i32
    return %c0_i32, %c0_i32_0 : i32, i32
  }
  func.func @transform_9(%arg0: i32) -> (i32, i32) {
    %c0_i32 = arith.constant 0 : i32
    %c0_i32_0 = arith.constant 0 : i32
    %c0_i32_1 = arith.constant 0 : i32
    return %c0_i32, %c0_i32_0 : i32, i32
  }
  func.func @transform_10(%arg0: i32) -> (i32, i32, i32) {
    %c0_i32 = arith.constant 0 : i32
    %c0_i32_0 = arith.constant 0 : i32
    %c0_i32_1 = arith.constant 0 : i32
    return %arg0, %c0_i32, %c0_i32_0 : i32, i32, i32
  }
  func.func @transform_11(%arg0: i32) -> (i32, i32, i32) {
    %c0_i32 = arith.constant 0 : i32
    %c0_i32_0 = arith.constant 0 : i32
    %c0_i32_1 = arith.constant 0 : i32
    return %arg0, %c0_i32, %c0_i32_0 : i32, i32, i32
  }
  func.func @transform_12(%arg0: i32) -> (i32, i32, i32) {
    %c0_i32 = arith.constant 0 : i32
    %c0_i32_0 = arith.constant 0 : i32
    %c0_i32_1 = arith.constant 0 : i32
    return %arg0, %c0_i32, %c0_i32_0 : i32, i32, i32
  }
  func.func @transform_13(%arg0: i32) -> (i32, i32, i32) {
    %c0_i32 = arith.constant 0 : i32
    %c0_i32_0 = arith.constant 0 : i32
    %c0_i32_1 = arith.constant 0 : i32
    return %arg0, %c0_i32, %c0_i32_0 : i32, i32, i32
  }
  func.func @transform_14(%arg0: i32) -> (i32, i32, i32) {
    %c0_i32 = arith.constant 0 : i32
    %c0_i32_0 = arith.constant 0 : i32
    %c0_i32_1 = arith.constant 0 : i32
    return %arg0, %c0_i32, %c0_i32_0 : i32, i32, i32
  }
  func.func @transform_15(%arg0: i32) -> (i32, i32, i32) {
    %c0_i32 = arith.constant 0 : i32
    %c0_i32_0 = arith.constant 0 : i32
    %c0_i32_1 = arith.constant 0 : i32
    return %arg0, %c0_i32, %c0_i32_0 : i32, i32, i32
  }
  func.func @transform_16(%arg0: i32) -> (i32, i32, i32) {
    %c0_i32 = arith.constant 0 : i32
    %c0_i32_0 = arith.constant 0 : i32
    %c0_i32_1 = arith.constant 0 : i32
    return %arg0, %c0_i32, %c0_i32_0 : i32, i32, i32
  }
  func.func @transform_17(%arg0: i32) -> (i32, i32, i32) {
    %c0_i32 = arith.constant 0 : i32
    %c0_i32_0 = arith.constant 0 : i32
    %c0_i32_1 = arith.constant 0 : i32
    return %arg0, %c0_i32, %c0_i32_0 : i32, i32, i32
  }
  func.func @transform_18(%arg0: i32) -> (i32, i32, i32) {
    %c0_i32 = arith.constant 0 : i32
    %c0_i32_0 = arith.constant 0 : i32
    %c0_i32_1 = arith.constant 0 : i32
    return %arg0, %c0_i32, %c0_i32_0 : i32, i32, i32
  }
  func.func @transform_19(%arg0: i32) -> (i32, i32, i32) {
    %c0_i32 = arith.constant 0 : i32
    %c0_i32_0 = arith.constant 0 : i32
    %c0_i32_1 = arith.constant 0 : i32
    return %arg0, %c0_i32, %c0_i32_0 : i32, i32, i32
  }
  func.func @transform_20(%arg0: i32) -> (i32, i32) {
    %c0_i32 = arith.constant 0 : i32
    %c0_i32_0 = arith.constant 0 : i32
    %c0_i32_1 = arith.constant 0 : i32
    return %c0_i32, %c0_i32_0 : i32, i32
  }
  func.func @transform_21(%arg0: i32) -> (i32, i32) {
    %c0_i32 = arith.constant 0 : i32
    %c0_i32_0 = arith.constant 0 : i32
    %c0_i32_1 = arith.constant 0 : i32
    return %c0_i32, %c0_i32_0 : i32, i32
  }
  func.func @transform_22(%arg0: i32) -> (i32, i32, i32) {
    %c0_i32 = arith.constant 0 : i32
    %c0_i32_0 = arith.constant 0 : i32
    %c0_i32_1 = arith.constant 0 : i32
    %c0_i32_2 = arith.constant 0 : i32
    return %c0_i32, %c0_i32_0, %c0_i32_1 : i32, i32, i32
  }
}

</mosaic_0001>

<llo_original>
// kernel: transformer_diffusion_forward.1
$region0: #{transformer_diffusion_forward.1}
  #allocation0 [shape = 'u32[]', space=smem, size = 0x4, offset = 0x4, fixed_abs, tag = 'smem constant byte address 0x4 - core index']
  #allocation1 [shape = 'u32[144,128]{1,0:T(1,128)}', space=vmem, size = 0x12000, scoped, tag = 'internal scratch']
  #allocation2 [shape = 'f32[32,32]{1,0:T(8,128)}', space=vmem, size = 0x4000, scoped, tag = 'scratch operand']
  %s0 = inlined_call_operand.vmem [shape: f32[2,64], index: 0, kind: input, shape index: {}]
  %s1 = inlined_call_operand.vmem [shape: f32[32,20], index: 1, kind: input, shape index: {}]
  %s2 = inlined_call_operand.vmem [shape: f32[2,16], index: 2, kind: input, shape index: {}]
  %s3 = inlined_call_operand.vmem [shape: f32[16,32], index: 3, kind: input, shape index: {}]
  %s4 = inlined_call_operand.vmem [shape: bf16[64,256], index: 4, kind: input, shape index: {}]
  %s5 = inlined_call_operand.vmem [shape: f32[1,256], index: 5, kind: input, shape index: {}]
  %s6 = inlined_call_operand.vmem [shape: bf16[256,32], index: 6, kind: input, shape index: {}]
  %s7 = inlined_call_operand.vmem [shape: f32[1,32], index: 7, kind: input, shape index: {}]
  %s8 = inlined_call_operand.vmem [shape: bf16[20,32], index: 8, kind: input, shape index: {}]
  %s9 = inlined_call_operand.vmem [shape: f32[1,32], index: 9, kind: input, shape index: {}]
  %s10 = inlined_call_operand.vmem [shape: bf16[2,32,96], index: 10, kind: input, shape index: {}]
  %s11 = inlined_call_operand.vmem [shape: bf16[2,32,32], index: 11, kind: input, shape index: {}]
  %s12 = inlined_call_operand.vmem [shape: f32[2,1,32], index: 12, kind: input, shape index: {}]
  %s13 = inlined_call_operand.vmem [shape: f32[2,1,32], index: 13, kind: input, shape index: {}]
  %s14 = inlined_call_operand.vmem [shape: bf16[2,32,64], index: 14, kind: input, shape index: {}]
  %s15 = inlined_call_operand.vmem [shape: f32[2,1,64], index: 15, kind: input, shape index: {}]
  %s16 = inlined_call_operand.vmem [shape: bf16[2,64,32], index: 16, kind: input, shape index: {}]
  %s17 = inlined_call_operand.vmem [shape: f32[2,1,32], index: 17, kind: input, shape index: {}]
  %s18 = inlined_call_operand.vmem [shape: f32[2,1,32], index: 18, kind: input, shape index: {}]
  %s19 = inlined_call_operand.vmem [shape: f32[2,1,32], index: 19, kind: input, shape index: {}]
  %s20 = inlined_call_operand.vmem [shape: bf16[32,16], index: 20, kind: input, shape index: {}]
  %s21 = inlined_call_operand.vmem [shape: f32[1,16], index: 21, kind: input, shape index: {}]
  %s22 = inlined_call_operand.hbm [shape: f32[2,8,16], index: 22, kind: output, shape index: {}]
  %s23 = sld [smem:[#allocation0]]
  $region129: #{transformer_diffusion_forward.1} parent=0
    _
  %s25 = ssub.s32 1, %s23
  %s26 = scalar_select 0, %s25, %s23
  $region1: #{transformer_diffusion_forward.1} parent=0
    #allocation3 [shape = 'u8[8192]{0}', space=vmem, size = 0x2000, scoped, tag = 'output window, operand 0, single buffered']
    #allocation4 [shape = 's32[2]{0}', space=sflag, size = 0x8, scoped, tag = 'scoped memory for transformer_diffusion_forward.1']
    %27 = vsyncpa [#allocation4], 0
    loop: start=0, step=1, limit=4
    $region2: #{transformer_diffusion_forward.1} parent=1 // loop_pre_header
      _
    $region3: #{transformer_diffusion_forward.1} parent=1 // loop_header
      %s29 = sphi 0, %s33
      %p30 = scmp.ge.s32.totalorder %s29, 4
      %s37 = sphi 0, %s37
      %s39 = sphi 0, %s37
      %s40 = sphi 0, %s39
      %s54 = sphi 0, %s40
      %s58 = sphi 0, %s58
      %s60 = sphi 0, %s58
      %s61 = sphi 0, %s60
      %s75 = sphi 0, %s61
      %s79 = sphi 0, %s79
      %s81 = sphi 0, %s79
      %s82 = sphi 0, %s81
      %s96 = sphi 0, %s82
      %s100 = sphi 0, %s100
      %s102 = sphi 0, %s100
      %s103 = sphi 0, %s102
      %s117 = sphi 0, %s103
      %s121 = sphi 0, %s121
      %s123 = sphi 0, %s121
      %s124 = sphi 0, %s123
      %s138 = sphi 0, %s124
      %s142 = sphi 0, %s142
      %s144 = sphi 0, %s142
      %s145 = sphi 0, %s144
      %s159 = sphi 0, %s145
      %s163 = sphi 0, %s163
      %s165 = sphi 0, %s163
      %s166 = sphi 0, %s165
      %s180 = sphi 0, %s166
      %s184 = sphi 0, %s184
      %s186 = sphi 0, %s184
      %s187 = sphi 0, %s186
      %s201 = sphi 0, %s187
      %s205 = sphi 0, %s205
      %s207 = sphi 0, %s205
      %s208 = sphi 0, %s207
      %s222 = sphi 0, %s208
      %s226 = sphi 0, %s226
      %s228 = sphi 0, %s226
      %s229 = sphi 0, %s228
      %s243 = sphi 0, %s229
      %s249 = sphi 0, %s251
      %s252 = sphi 0, %s249
      %s253 = sphi 0, %s252
      %s269 = sphi 0, %s253
      %s275 = sphi 0, %s277
      %s278 = sphi 0, %s275
      %s279 = sphi 0, %s278
      %s295 = sphi 0, %s279
      %s301 = sphi 0, %s303
      %s304 = sphi 0, %s301
      %s305 = sphi 0, %s304
      %s321 = sphi 0, %s305
      %s327 = sphi 0, %s329
      %s330 = sphi 0, %s327
      %s331 = sphi 0, %s330
      %s347 = sphi 0, %s331
      %s353 = sphi 0, %s355
      %s356 = sphi 0, %s353
      %s357 = sphi 0, %s356
      %s373 = sphi 0, %s357
      %s379 = sphi 0, %s381
      %s382 = sphi 0, %s379
      %s383 = sphi 0, %s382
      %s399 = sphi 0, %s383
      %s405 = sphi 0, %s407
      %s408 = sphi 0, %s405
      %s409 = sphi 0, %s408
      %s425 = sphi 0, %s409
      %s431 = sphi 0, %s433
      %s434 = sphi 0, %s431
      %s435 = sphi 0, %s434
      %s451 = sphi 0, %s435
      %s457 = sphi 0, %s459
      %s460 = sphi 0, %s457
      %s461 = sphi 0, %s460
      %s477 = sphi 0, %s461
      %s483 = sphi 0, %s485
      %s486 = sphi 0, %s483
      %s487 = sphi 0, %s486
      %s503 = sphi 0, %s487
      %s507 = sphi 0, %s507
      %s509 = sphi 0, %s507
      %s510 = sphi 0, %s509
      %s524 = sphi 0, %s510
      %s528 = sphi 0, %s528
      %s530 = sphi 0, %s528
      %s531 = sphi 0, %s530
      %s545 = sphi 0, %s531
      %s549 = sphi 0, %s549
      %s551 = sphi 0, %s549
      %s552 = sphi 0, %s551
      %s566 = sphi 0, %s552
    $region4: #{transformer_diffusion_forward.1} parent=1 // loop_header_branch
      %32 = sbr.rel (%p30) target = $region8
    $region5: #{transformer_diffusion_forward.1} parent=1 // loop_body
      %s34 = ssub.s32 %s29, 1
      %s35 = ssub.s32 %s29, 2
      %s36 = sadd.s32 %s29, 1
      %s38 = sadd.s32 %s37, 1
      %p41 = scmp.eq.s32.totalorder %s29, 1
      %p42 = scmp.ne.s32.totalorder %s37, %s39
      %p43 = scmp.eq.s32.totalorder %s29, 0
      %p44 = por %p42, %p43
      %p45 = scmp.ne.s32.totalorder %s37, %s39
      %p46 = scmp.eq.s32.totalorder %s34, 1
      %p47 = por %p45, %p46
      %p48 = scmp.ne.s32.totalorder %s39, %s40
      %p49 = scmp.eq.s32.totalorder %s34, 0
      %p50 = por %p48, %p49
      %p51 = scmp.ne.s32.totalorder %s39, %s40
      %p52 = scmp.eq.s32.totalorder %s35, 1
      %p53 = por %p51, %p52
      %p55 = scmp.ne.s32.totalorder %s40, %s54
      %p56 = scmp.eq.s32.totalorder %s35, 0
      %p57 = por %p55, %p56
      %s59 = sadd.s32 %s58, 1
      %p62 = scmp.eq.s32.totalorder %s29, 1
      %p63 = scmp.ne.s32.totalorder %s58, %s60
      %p64 = scmp.eq.s32.totalorder %s29, 0
      %p65 = por %p63, %p64
      %p66 = scmp.ne.s32.totalorder %s58, %s60
      %p67 = scmp.eq.s32.totalorder %s34, 1
      %p68 = por %p66, %p67
      %p69 = scmp.ne.s32.totalorder %s60, %s61
      %p70 = scmp.eq.s32.totalorder %s34, 0
      %p71 = por %p69, %p70
      %p72 = scmp.ne.s32.totalorder %s60, %s61
      %p73 = scmp.eq.s32.totalorder %s35, 1
      %p74 = por %p72, %p73
      %p76 = scmp.ne.s32.totalorder %s61, %s75
      %p77 = scmp.eq.s32.totalorder %s35, 0
      %p78 = por %p76, %p77
      %s80 = sadd.s32 %s79, 1
      %p83 = scmp.eq.s32.totalorder %s29, 1
      %p84 = scmp.ne.s32.totalorder %s79, %s81
      %p85 = scmp.eq.s32.totalorder %s29, 0
      %p86 = por %p84, %p85
      %p87 = scmp.ne.s32.totalorder %s79, %s81
      %p88 = scmp.eq.s32.totalorder %s34, 1
      %p89 = por %p87, %p88
      %p90 = scmp.ne.s32.totalorder %s81, %s82
      %p91 = scmp.eq.s32.totalorder %s34, 0
      %p92 = por %p90, %p91
      %p93 = scmp.ne.s32.totalorder %s81, %s82
      %p94 = scmp.eq.s32.totalorder %s35, 1
      %p95 = por %p93, %p94
      %p97 = scmp.ne.s32.totalorder %s82, %s96
      %p98 = scmp.eq.s32.totalorder %s35, 0
      %p99 = por %p97, %p98
      %s101 = sadd.s32 %s100, 1
      %p104 = scmp.eq.s32.totalorder %s29, 1
      %p105 = scmp.ne.s32.totalorder %s100, %s102
      %p106 = scmp.eq.s32.totalorder %s29, 0
      %p107 = por %p105, %p106
      %p108 = scmp.ne.s32.totalorder %s100, %s102
      %p109 = scmp.eq.s32.totalorder %s34, 1
      %p110 = por %p108, %p109
      %p111 = scmp.ne.s32.totalorder %s102, %s103
      %p112 = scmp.eq.s32.totalorder %s34, 0
      %p113 = por %p111, %p112
      %p114 = scmp.ne.s32.totalorder %s102, %s103
      %p115 = scmp.eq.s32.totalorder %s35, 1
      %p116 = por %p114, %p115
      %p118 = scmp.ne.s32.totalorder %s103, %s117
      %p119 = scmp.eq.s32.totalorder %s35, 0
      %p120 = por %p118, %p119
      %s122 = sadd.s32 %s121, 1
      %p125 = scmp.eq.s32.totalorder %s29, 1
      %p126 = scmp.ne.s32.totalorder %s121, %s123
      %p127 = scmp.eq.s32.totalorder %s29, 0
      %p128 = por %p126, %p127
      %p129 = scmp.ne.s32.totalorder %s121, %s123
      %p130 = scmp.eq.s32.totalorder %s34, 1
      %p131 = por %p129, %p130
      %p132 = scmp.ne.s32.totalorder %s123, %s124
      %p133 = scmp.eq.s32.totalorder %s34, 0
      %p134 = por %p132, %p133
      %p135 = scmp.ne.s32.totalorder %s123, %s124
      %p136 = scmp.eq.s32.totalorder %s35, 1
      %p137 = por %p135, %p136
      %p139 = scmp.ne.s32.totalorder %s124, %s138
      %p140 = scmp.eq.s32.totalorder %s35, 0
      %p141 = por %p139, %p140
      %s143 = sadd.s32 %s142, 1
      %p146 = scmp.eq.s32.totalorder %s29, 1
      %p147 = scmp.ne.s32.totalorder %s142, %s144
      %p148 = scmp.eq.s32.totalorder %s29, 0
      %p149 = por %p147, %p148
      %p150 = scmp.ne.s32.totalorder %s142, %s144
      %p151 = scmp.eq.s32.totalorder %s34, 1
      %p152 = por %p150, %p151
      %p153 = scmp.ne.s32.totalorder %s144, %s145
      %p154 = scmp.eq.s32.totalorder %s34, 0
      %p155 = por %p153, %p154
      %p156 = scmp.ne.s32.totalorder %s144, %s145
      %p157 = scmp.eq.s32.totalorder %s35, 1
      %p158 = por %p156, %p157
      %p160 = scmp.ne.s32.totalorder %s145, %s159
      %p161 = scmp.eq.s32.totalorder %s35, 0
      %p162 = por %p160, %p161
      %s164 = sadd.s32 %s163, 1
      %p167 = scmp.eq.s32.totalorder %s29, 1
      %p168 = scmp.ne.s32.totalorder %s163, %s165
      %p169 = scmp.eq.s32.totalorder %s29, 0
      %p170 = por %p168, %p169
      %p171 = scmp.ne.s32.totalorder %s163, %s165
      %p172 = scmp.eq.s32.totalorder %s34, 1
      %p173 = por %p171, %p172
      %p174 = scmp.ne.s32.totalorder %s165, %s166
      %p175 = scmp.eq.s32.totalorder %s34, 0
      %p176 = por %p174, %p175
      %p177 = scmp.ne.s32.totalorder %s165, %s166
      %p178 = scmp.eq.s32.totalorder %s35, 1
      %p179 = por %p177, %p178
      %p181 = scmp.ne.s32.totalorder %s166, %s180
      %p182 = scmp.eq.s32.totalorder %s35, 0
      %p183 = por %p181, %p182
      %s185 = sadd.s32 %s184, 1
      %p188 = scmp.eq.s32.totalorder %s29, 1
      %p189 = scmp.ne.s32.totalorder %s184, %s186
      %p190 = scmp.eq.s32.totalorder %s29, 0
      %p191 = por %p189, %p190
      %p192 = scmp.ne.s32.totalorder %s184, %s186
      %p193 = scmp.eq.s32.totalorder %s34, 1
      %p194 = por %p192, %p193
      %p195 = scmp.ne.s32.totalorder %s186, %s187
      %p196 = scmp.eq.s32.totalorder %s34, 0
      %p197 = por %p195, %p196
      %p198 = scmp.ne.s32.totalorder %s186, %s187
      %p199 = scmp.eq.s32.totalorder %s35, 1
      %p200 = por %p198, %p199
      %p202 = scmp.ne.s32.totalorder %s187, %s201
      %p203 = scmp.eq.s32.totalorder %s35, 0
      %p204 = por %p202, %p203
      %s206 = sadd.s32 %s205, 1
      %p209 = scmp.eq.s32.totalorder %s29, 1
      %p210 = scmp.ne.s32.totalorder %s205, %s207
      %p211 = scmp.eq.s32.totalorder %s29, 0
      %p212 = por %p210, %p211
      %p213 = scmp.ne.s32.totalorder %s205, %s207
      %p214 = scmp.eq.s32.totalorder %s34, 1
      %p215 = por %p213, %p214
      %p216 = scmp.ne.s32.totalorder %s207, %s208
      %p217 = scmp.eq.s32.totalorder %s34, 0
      %p218 = por %p216, %p217
      %p219 = scmp.ne.s32.totalorder %s207, %s208
      %p220 = scmp.eq.s32.totalorder %s35, 1
      %p221 = por %p219, %p220
      %p223 = scmp.ne.s32.totalorder %s208, %s222
      %p224 = scmp.eq.s32.totalorder %s35, 0
      %p225 = por %p223, %p224
      %s227 = sadd.s32 %s226, 1
      %p230 = scmp.eq.s32.totalorder %s29, 1
      %p231 = scmp.ne.s32.totalorder %s226, %s228
      %p232 = scmp.eq.s32.totalorder %s29, 0
      %p233 = por %p231, %p232
      %p234 = scmp.ne.s32.totalorder %s226, %s228
      %p235 = scmp.eq.s32.totalorder %s34, 1
      %p236 = por %p234, %p235
      %p237 = scmp.ne.s32.totalorder %s228, %s229
      %p238 = scmp.eq.s32.totalorder %s34, 0
      %p239 = por %p237, %p238
      %p240 = scmp.ne.s32.totalorder %s228, %s229
      %p241 = scmp.eq.s32.totalorder %s35, 1
      %p242 = por %p240, %p241
      %p244 = scmp.ne.s32.totalorder %s229, %s243
      %p245 = scmp.eq.s32.totalorder %s35, 0
      %p246 = por %p244, %p245
      %s247 = ssub.s32 %s29, %s36
      %p248 = scmp.eq.s32.totalorder %s247, 0
      %s250 = sadd.s32 %s249, 1
      %s251 = scalar_select %p248, %s249, %s250
      %p254 = pneg %p248
      %p255 = scmp.eq.s32.totalorder %s29, 1
      %p256 = por %p254, %p255
      %p257 = scmp.ne.s32.totalorder %s249, %s252
      %p258 = scmp.eq.s32.totalorder %s29, 0
      %p259 = por %p257, %p258
      %p260 = scmp.ne.s32.totalorder %s249, %s252
      %p261 = scmp.eq.s32.totalorder %s34, 1
      %p262 = por %p260, %p261
      %p263 = scmp.ne.s32.totalorder %s252, %s253
      %p264 = scmp.eq.s32.totalorder %s34, 0
      %p265 = por %p263, %p264
      %p266 = scmp.ne.s32.totalorder %s252, %s253
      %p267 = scmp.eq.s32.totalorder %s35, 1
      %p268 = por %p266, %p267
      %p270 = scmp.ne.s32.totalorder %s253, %s269
      %p271 = scmp.eq.s32.totalorder %s35, 0
      %p272 = por %p270, %p271
      %s273 = ssub.s32 %s29, %s36
      %p274 = scmp.eq.s32.totalorder %s273, 0
      %s276 = sadd.s32 %s275, 1
      %s277 = scalar_select %p274, %s275, %s276
      %p280 = pneg %p274
      %p281 = scmp.eq.s32.totalorder %s29, 1
      %p282 = por %p280, %p281
      %p283 = scmp.ne.s32.totalorder %s275, %s278
      %p284 = scmp.eq.s32.totalorder %s29, 0
      %p285 = por %p283, %p284
      %p286 = scmp.ne.s32.totalorder %s275, %s278
      %p287 = scmp.eq.s32.totalorder %s34, 1
      %p288 = por %p286, %p287
      %p289 = scmp.ne.s32.totalorder %s278, %s279
      %p290 = scmp.eq.s32.totalorder %s34, 0
      %p291 = por %p289, %p290
      %p292 = scmp.ne.s32.totalorder %s278, %s279
      %p293 = scmp.eq.s32.totalorder %s35, 1
      %p294 = por %p292, %p293
      %p296 = scmp.ne.s32.totalorder %s279, %s295
      %p297 = scmp.eq.s32.totalorder %s35, 0
      %p298 = por %p296, %p297
      %s299 = ssub.s32 %s29, %s36
      %p300 = scmp.eq.s32.totalorder %s299, 0
      %s302 = sadd.s32 %s301, 1
      %s303 = scalar_select %p300, %s301, %s302
      %p306 = pneg %p300
      %p307 = scmp.eq.s32.totalorder %s29, 1
      %p308 = por %p306, %p307
      %p309 = scmp.ne.s32.totalorder %s301, %s304
      %p310 = scmp.eq.s32.totalorder %s29, 0
      %p311 = por %p309, %p310
      %p312 = scmp.ne.s32.totalorder %s301, %s304
      %p313 = scmp.eq.s32.totalorder %s34, 1
      %p314 = por %p312, %p313
      %p315 = scmp.ne.s32.totalorder %s304, %s305
      %p316 = scmp.eq.s32.totalorder %s34, 0
      %p317 = por %p315, %p316
      %p318 = scmp.ne.s32.totalorder %s304, %s305
      %p319 = scmp.eq.s32.totalorder %s35, 1
      %p320 = por %p318, %p319
      %p322 = scmp.ne.s32.totalorder %s305, %s321
      %p323 = scmp.eq.s32.totalorder %s35, 0
      %p324 = por %p322, %p323
      %s325 = ssub.s32 %s29, %s36
      %p326 = scmp.eq.s32.totalorder %s325, 0
      %s328 = sadd.s32 %s327, 1
      %s329 = scalar_select %p326, %s327, %s328
      %p332 = pneg %p326
      %p333 = scmp.eq.s32.totalorder %s29, 1
      %p334 = por %p332, %p333
      %p335 = scmp.ne.s32.totalorder %s327, %s330
      %p336 = scmp.eq.s32.totalorder %s29, 0
      %p337 = por %p335, %p336
      %p338 = scmp.ne.s32.totalorder %s327, %s330
      %p339 = scmp.eq.s32.totalorder %s34, 1
      %p340 = por %p338, %p339
      %p341 = scmp.ne.s32.totalorder %s330, %s331
      %p342 = scmp.eq.s32.totalorder %s34, 0
      %p343 = por %p341, %p342
      %p344 = scmp.ne.s32.totalorder %s330, %s331
      %p345 = scmp.eq.s32.totalorder %s35, 1
      %p346 = por %p344, %p345
      %p348 = scmp.ne.s32.totalorder %s331, %s347
      %p349 = scmp.eq.s32.totalorder %s35, 0
      %p350 = por %p348, %p349
      %s351 = ssub.s32 %s29, %s36
      %p352 = scmp.eq.s32.totalorder %s351, 0
      %s354 = sadd.s32 %s353, 1
      %s355 = scalar_select %p352, %s353, %s354
      %p358 = pneg %p352
      %p359 = scmp.eq.s32.totalorder %s29, 1
      %p360 = por %p358, %p359
      %p361 = scmp.ne.s32.totalorder %s353, %s356
      %p362 = scmp.eq.s32.totalorder %s29, 0
      %p363 = por %p361, %p362
      %p364 = scmp.ne.s32.totalorder %s353, %s356
      %p365 = scmp.eq.s32.totalorder %s34, 1
      %p366 = por %p364, %p365
      %p367 = scmp.ne.s32.totalorder %s356, %s357
      %p368 = scmp.eq.s32.totalorder %s34, 0
      %p369 = por %p367, %p368
      %p370 = scmp.ne.s32.totalorder %s356, %s357
      %p371 = scmp.eq.s32.totalorder %s35, 1
      %p372 = por %p370, %p371
      %p374 = scmp.ne.s32.totalorder %s357, %s373
      %p375 = scmp.eq.s32.totalorder %s35, 0
      %p376 = por %p374, %p375
      %s377 = ssub.s32 %s29, %s36
      %p378 = scmp.eq.s32.totalorder %s377, 0
      %s380 = sadd.s32 %s379, 1
      %s381 = scalar_select %p378, %s379, %s380
      %p384 = pneg %p378
      %p385 = scmp.eq.s32.totalorder %s29, 1
      %p386 = por %p384, %p385
      %p387 = scmp.ne.s32.totalorder %s379, %s382
      %p388 = scmp.eq.s32.totalorder %s29, 0
      %p389 = por %p387, %p388
      %p390 = scmp.ne.s32.totalorder %s379, %s382
      %p391 = scmp.eq.s32.totalorder %s34, 1
      %p392 = por %p390, %p391
      %p393 = scmp.ne.s32.totalorder %s382, %s383
      %p394 = scmp.eq.s32.totalorder %s34, 0
      %p395 = por %p393, %p394
      %p396 = scmp.ne.s32.totalorder %s382, %s383
      %p397 = scmp.eq.s32.totalorder %s35, 1
      %p398 = por %p396, %p397
      %p400 = scmp.ne.s32.totalorder %s383, %s399
      %p401 = scmp.eq.s32.totalorder %s35, 0
      %p402 = por %p400, %p401
      %s403 = ssub.s32 %s29, %s36
      %p404 = scmp.eq.s32.totalorder %s403, 0
      %s406 = sadd.s32 %s405, 1
      %s407 = scalar_select %p404, %s405, %s406
      %p410 = pneg %p404
      %p411 = scmp.eq.s32.totalorder %s29, 1
      %p412 = por %p410, %p411
      %p413 = scmp.ne.s32.totalorder %s405, %s408
      %p414 = scmp.eq.s32.totalorder %s29, 0
      %p415 = por %p413, %p414
      %p416 = scmp.ne.s32.totalorder %s405, %s408
      %p417 = scmp.eq.s32.totalorder %s34, 1
      %p418 = por %p416, %p417
      %p419 = scmp.ne.s32.totalorder %s408, %s409
      %p420 = scmp.eq.s32.totalorder %s34, 0
      %p421 = por %p419, %p420
      %p422 = scmp.ne.s32.totalorder %s408, %s409
      %p423 = scmp.eq.s32.totalorder %s35, 1
      %p424 = por %p422, %p423
      %p426 = scmp.ne.s32.totalorder %s409, %s425
      %p427 = scmp.eq.s32.totalorder %s35, 0
      %p428 = por %p426, %p427
      %s429 = ssub.s32 %s29, %s36
      %p430 = scmp.eq.s32.totalorder %s429, 0
      %s432 = sadd.s32 %s431, 1
      %s433 = scalar_select %p430, %s431, %s432
      %p436 = pneg %p430
      %p437 = scmp.eq.s32.totalorder %s29, 1
      %p438 = por %p436, %p437
      %p439 = scmp.ne.s32.totalorder %s431, %s434
      %p440 = scmp.eq.s32.totalorder %s29, 0
      %p441 = por %p439, %p440
      %p442 = scmp.ne.s32.totalorder %s431, %s434
      %p443 = scmp.eq.s32.totalorder %s34, 1
      %p444 = por %p442, %p443
      %p445 = scmp.ne.s32.totalorder %s434, %s435
      %p446 = scmp.eq.s32.totalorder %s34, 0
      %p447 = por %p445, %p446
      %p448 = scmp.ne.s32.totalorder %s434, %s435
      %p449 = scmp.eq.s32.totalorder %s35, 1
      %p450 = por %p448, %p449
      %p452 = scmp.ne.s32.totalorder %s435, %s451
      %p453 = scmp.eq.s32.totalorder %s35, 0
      %p454 = por %p452, %p453
      %s455 = ssub.s32 %s29, %s36
      %p456 = scmp.eq.s32.totalorder %s455, 0
      %s458 = sadd.s32 %s457, 1
      %s459 = scalar_select %p456, %s457, %s458
      %p462 = pneg %p456
      %p463 = scmp.eq.s32.totalorder %s29, 1
      %p464 = por %p462, %p463
      %p465 = scmp.ne.s32.totalorder %s457, %s460
      %p466 = scmp.eq.s32.totalorder %s29, 0
      %p467 = por %p465, %p466
      %p468 = scmp.ne.s32.totalorder %s457, %s460
      %p469 = scmp.eq.s32.totalorder %s34, 1
      %p470 = por %p468, %p469
      %p471 = scmp.ne.s32.totalorder %s460, %s461
      %p472 = scmp.eq.s32.totalorder %s34, 0
      %p473 = por %p471, %p472
      %p474 = scmp.ne.s32.totalorder %s460, %s461
      %p475 = scmp.eq.s32.totalorder %s35, 1
      %p476 = por %p474, %p475
      %p478 = scmp.ne.s32.totalorder %s461, %s477
      %p479 = scmp.eq.s32.totalorder %s35, 0
      %p480 = por %p478, %p479
      %s481 = ssub.s32 %s29, %s36
      %p482 = scmp.eq.s32.totalorder %s481, 0
      %s484 = sadd.s32 %s483, 1
      %s485 = scalar_select %p482, %s483, %s484
      %p488 = pneg %p482
      %p489 = scmp.eq.s32.totalorder %s29, 1
      %p490 = por %p488, %p489
      %p491 = scmp.ne.s32.totalorder %s483, %s486
      %p492 = scmp.eq.s32.totalorder %s29, 0
      %p493 = por %p491, %p492
      %p494 = scmp.ne.s32.totalorder %s483, %s486
      %p495 = scmp.eq.s32.totalorder %s34, 1
      %p496 = por %p494, %p495
      %p497 = scmp.ne.s32.totalorder %s486, %s487
      %p498 = scmp.eq.s32.totalorder %s34, 0
      %p499 = por %p497, %p498
      %p500 = scmp.ne.s32.totalorder %s486, %s487
      %p501 = scmp.eq.s32.totalorder %s35, 1
      %p502 = por %p500, %p501
      %p504 = scmp.ne.s32.totalorder %s487, %s503
      %p505 = scmp.eq.s32.totalorder %s35, 0
      %p506 = por %p504, %p505
      %s508 = sadd.s32 %s507, 1
      %p511 = scmp.eq.s32.totalorder %s29, 1
      %p512 = scmp.ne.s32.totalorder %s507, %s509
      %p513 = scmp.eq.s32.totalorder %s29, 0
      %p514 = por %p512, %p513
      %p515 = scmp.ne.s32.totalorder %s507, %s509
      %p516 = scmp.eq.s32.totalorder %s34, 1
      %p517 = por %p515, %p516
      %p518 = scmp.ne.s32.totalorder %s509, %s510
      %p519 = scmp.eq.s32.totalorder %s34, 0
      %p520 = por %p518, %p519
      %p521 = scmp.ne.s32.totalorder %s509, %s510
      %p522 = scmp.eq.s32.totalorder %s35, 1
      %p523 = por %p521, %p522
      %p525 = scmp.ne.s32.totalorder %s510, %s524
      %p526 = scmp.eq.s32.totalorder %s35, 0
      %p527 = por %p525, %p526
      %s529 = sadd.s32 %s528, 1
      %p532 = scmp.eq.s32.totalorder %s29, 1
      %p533 = scmp.ne.s32.totalorder %s528, %s530
      %p534 = scmp.eq.s32.totalorder %s29, 0
      %p535 = por %p533, %p534
      %p536 = scmp.ne.s32.totalorder %s528, %s530
      %p537 = scmp.eq.s32.totalorder %s34, 1
      %p538 = por %p536, %p537
      %p539 = scmp.ne.s32.totalorder %s530, %s531
      %p540 = scmp.eq.s32.totalorder %s34, 0
      %p541 = por %p539, %p540
      %p542 = scmp.ne.s32.totalorder %s530, %s531
      %p543 = scmp.eq.s32.totalorder %s35, 1
      %p544 = por %p542, %p543
      %p546 = scmp.ne.s32.totalorder %s531, %s545
      %p547 = scmp.eq.s32.totalorder %s35, 0
      %p548 = por %p546, %p547
      %s550 = sadd.s32 %s549, 1
      %p553 = scmp.eq.s32.totalorder %s29, 1
      %p554 = scmp.ne.s32.totalorder %s549, %s551
      %p555 = scmp.eq.s32.totalorder %s29, 0
      %p556 = por %p554, %p555
      %p557 = scmp.ne.s32.totalorder %s549, %s551
      %p558 = scmp.eq.s32.totalorder %s34, 1
      %p559 = por %p557, %p558
      %p560 = scmp.ne.s32.totalorder %s551, %s552
      %p561 = scmp.eq.s32.totalorder %s34, 0
      %p562 = por %p560, %p561
      %p563 = scmp.ne.s32.totalorder %s551, %s552
      %p564 = scmp.eq.s32.totalorder %s35, 1
      %p565 = por %p563, %p564
      %p567 = scmp.ne.s32.totalorder %s552, %s566
      %p568 = scmp.eq.s32.totalorder %s35, 0
      %p569 = por %p567, %p568
      %p570 = scmp.le.s32.totalorder 1, %s29
      %p571 = scmp.lt.s32.totalorder %s29, 3
      %p572 = pnand %p570, %p571
      %p573 = pneg %p572
      // Predicated region
      $region9: #{transformer_diffusion_forward.1} parent=5 // pred_check
        _
      $region10: #{transformer_diffusion_forward.1} parent=5 // pred_check_branch
        %575 = sbr.rel (%p572) target = $region12
      $region11: #{transformer_diffusion_forward.1} parent=5 // pred_region
        %s576 = ssub.s32 %s29, 1
        // Predicated region
        $region13: #{transformer_diffusion_forward.1} parent=11 // pred_check
          %p577 = pneg %p50
        $region14: #{transformer_diffusion_forward.1} parent=11 // pred_check_branch
          %579 = sbr.rel (%p577) target = $region16
        $region15: #{transformer_diffusion_forward.1} parent=11 // pred_region
          _
        $region16: #{transformer_diffusion_forward.1} parent=11 // pred_fallthru
          _
        // Predicated region
        $region17: #{transformer_diffusion_forward.1} parent=11 // pred_check
          %p580 = pneg %p71
        $region18: #{transformer_diffusion_forward.1} parent=11 // pred_check_branch
          %582 = sbr.rel (%p580) target = $region20
        $region19: #{transformer_diffusion_forward.1} parent=11 // pred_region
          _
        $region20: #{transformer_diffusion_forward.1} parent=11 // pred_fallthru
          _
        // Predicated region
        $region21: #{transformer_diffusion_forward.1} parent=11 // pred_check
          %p583 = pneg %p92
        $region22: #{transformer_diffusion_forward.1} parent=11 // pred_check_branch
          %585 = sbr.rel (%p583) target = $region24
        $region23: #{transformer_diffusion_forward.1} parent=11 // pred_region
          _
        $region24: #{transformer_diffusion_forward.1} parent=11 // pred_fallthru
          _
        // Predicated region
        $region25: #{transformer_diffusion_forward.1} parent=11 // pred_check
          %p586 = pneg %p113
        $region26: #{transformer_diffusion_forward.1} parent=11 // pred_check_branch
          %588 = sbr.rel (%p586) target = $region28
        $region27: #{transformer_diffusion_forward.1} parent=11 // pred_region
          _
        $region28: #{transformer_diffusion_forward.1} parent=11 // pred_fallthru
          _
        // Predicated region
        $region29: #{transformer_diffusion_forward.1} parent=11 // pred_check
          %p589 = pneg %p134
        $region30: #{transformer_diffusion_forward.1} parent=11 // pred_check_branch
          %591 = sbr.rel (%p589) target = $region32
        $region31: #{transformer_diffusion_forward.1} parent=11 // pred_region
          _
        $region32: #{transformer_diffusion_forward.1} parent=11 // pred_fallthru
          _
        // Predicated region
        $region33: #{transformer_diffusion_forward.1} parent=11 // pred_check
          %p592 = pneg %p155
        $region34: #{transformer_diffusion_forward.1} parent=11 // pred_check_branch
          %594 = sbr.rel (%p592) target = $region36
        $region35: #{transformer_diffusion_forward.1} parent=11 // pred_region
          _
        $region36: #{transformer_diffusion_forward.1} parent=11 // pred_fallthru
          _
        // Predicated region
        $region37: #{transformer_diffusion_forward.1} parent=11 // pred_check
          %p595 = pneg %p176
        $region38: #{transformer_diffusion_forward.1} parent=11 // pred_check_branch
          %597 = sbr.rel (%p595) target = $region40
        $region39: #{transformer_diffusion_forward.1} parent=11 // pred_region
          _
        $region40: #{transformer_diffusion_forward.1} parent=11 // pred_fallthru
          _
        // Predicated region
        $region41: #{transformer_diffusion_forward.1} parent=11 // pred_check
          %p598 = pneg %p197
        $region42: #{transformer_diffusion_forward.1} parent=11 // pred_check_branch
          %600 = sbr.rel (%p598) target = $region44
        $region43: #{transformer_diffusion_forward.1} parent=11 // pred_region
          _
        $region44: #{transformer_diffusion_forward.1} parent=11 // pred_fallthru
          _
        // Predicated region
        $region45: #{transformer_diffusion_forward.1} parent=11 // pred_check
          %p601 = pneg %p218
        $region46: #{transformer_diffusion_forward.1} parent=11 // pred_check_branch
          %603 = sbr.rel (%p601) target = $region48
        $region47: #{transformer_diffusion_forward.1} parent=11 // pred_region
          _
        $region48: #{transformer_diffusion_forward.1} parent=11 // pred_fallthru
          _
        // Predicated region
        $region49: #{transformer_diffusion_forward.1} parent=11 // pred_check
          %p604 = pneg %p239
        $region50: #{transformer_diffusion_forward.1} parent=11 // pred_check_branch
          %606 = sbr.rel (%p604) target = $region52
        $region51: #{transformer_diffusion_forward.1} parent=11 // pred_region
          _
        $region52: #{transformer_diffusion_forward.1} parent=11 // pred_fallthru
          _
        // Predicated region
        $region53: #{transformer_diffusion_forward.1} parent=11 // pred_check
          %p607 = pneg %p520
        $region54: #{transformer_diffusion_forward.1} parent=11 // pred_check_branch
          %609 = sbr.rel (%p607) target = $region56
        $region55: #{transformer_diffusion_forward.1} parent=11 // pred_region
          _
        $region56: #{transformer_diffusion_forward.1} parent=11 // pred_fallthru
          _
        // Predicated region
        $region57: #{transformer_diffusion_forward.1} parent=11 // pred_check
          %p610 = pneg %p541
        $region58: #{transformer_diffusion_forward.1} parent=11 // pred_check_branch
          %612 = sbr.rel (%p610) target = $region60
        $region59: #{transformer_diffusion_forward.1} parent=11 // pred_region
          _
        $region60: #{transformer_diffusion_forward.1} parent=11 // pred_fallthru
          _
      $region12: #{transformer_diffusion_forward.1} parent=5 // pred_fallthru
        _
      %p613 = scmp.lt.s32.totalorder %s29, 2
      // Predicated region
      $region61: #{transformer_diffusion_forward.1} parent=5 // pred_check
        %p614 = pneg %p613
      $region62: #{transformer_diffusion_forward.1} parent=5 // pred_check_branch
        %616 = sbr.rel (%p614) target = $region64
      $region63: #{transformer_diffusion_forward.1} parent=5 // pred_region
        // Predicated region
        $region65: #{transformer_diffusion_forward.1} parent=63 // pred_check
          %p617 = pneg %p259
        $region66: #{transformer_diffusion_forward.1} parent=63 // pred_check_branch
          %619 = sbr.rel (%p617) target = $region68
        $region67: #{transformer_diffusion_forward.1} parent=63 // pred_region
          %p620 = scmp.lt.s32.totalorder %s29, 1
          %s621 = scalar_select %p620, %s29, 1
          %s622 = smul.addr %s621, 4
          %s623 = smul.addr %s622, 4
          %s624 = scalar_lea.vmem %s10, %s623
        $region68: #{transformer_diffusion_forward.1} parent=63 // pred_fallthru
          _
        // Predicated region
        $region69: #{transformer_diffusion_forward.1} parent=63 // pred_check
          %p625 = pneg %p285
        $region70: #{transformer_diffusion_forward.1} parent=63 // pred_check_branch
          %627 = sbr.rel (%p625) target = $region72
        $region71: #{transformer_diffusion_forward.1} parent=63 // pred_region
          %p628 = scmp.lt.s32.totalorder %s29, 1
          %s629 = scalar_select %p628, %s29, 1
          %s630 = smul.addr %s629, 4
          %s631 = smul.addr %s630, 4
          %s632 = scalar_lea.vmem %s11, %s631
        $region72: #{transformer_diffusion_forward.1} parent=63 // pred_fallthru
          _
        // Predicated region
        $region73: #{transformer_diffusion_forward.1} parent=63 // pred_check
          %p633 = pneg %p311
        $region74: #{transformer_diffusion_forward.1} parent=63 // pred_check_branch
          %635 = sbr.rel (%p633) target = $region76
        $region75: #{transformer_diffusion_forward.1} parent=63 // pred_region
          %p636 = scmp.lt.s32.totalorder %s29, 1
          %s637 = scalar_select %p636, %s29, 1
          %s638 = scalar_lea.vmem %s12, %s637
        $region76: #{transformer_diffusion_forward.1} parent=63 // pred_fallthru
          _
        // Predicated region
        $region77: #{transformer_diffusion_forward.1} parent=63 // pred_check
          %p639 = pneg %p337
        $region78: #{transformer_diffusion_forward.1} parent=63 // pred_check_branch
          %641 = sbr.rel (%p639) target = $region80
        $region79: #{transformer_diffusion_forward.1} parent=63 // pred_region
          %p642 = scmp.lt.s32.totalorder %s29, 1
          %s643 = scalar_select %p642, %s29, 1
          %s644 = scalar_lea.vmem %s13, %s643
        $region80: #{transformer_diffusion_forward.1} parent=63 // pred_fallthru
          _
        // Predicated region
        $region81: #{transformer_diffusion_forward.1} parent=63 // pred_check
          %p645 = pneg %p363
        $region82: #{transformer_diffusion_forward.1} parent=63 // pred_check_branch
          %647 = sbr.rel (%p645) target = $region84
        $region83: #{transformer_diffusion_forward.1} parent=63 // pred_region
          %p648 = scmp.lt.s32.totalorder %s29, 1
          %s649 = scalar_select %p648, %s29, 1
          %s650 = smul.addr %s649, 4
          %s651 = smul.addr %s650, 4
          %s652 = scalar_lea.vmem %s14, %s651
        $region84: #{transformer_diffusion_forward.1} parent=63 // pred_fallthru
          _
        // Predicated region
        $region85: #{transformer_diffusion_forward.1} parent=63 // pred_check
          %p653 = pneg %p389
        $region86: #{transformer_diffusion_forward.1} parent=63 // pred_check_branch
          %655 = sbr.rel (%p653) target = $region88
        $region87: #{transformer_diffusion_forward.1} parent=63 // pred_region
          %p656 = scmp.lt.s32.totalorder %s29, 1
          %s657 = scalar_select %p656, %s29, 1
          %s658 = scalar_lea.vmem %s15, %s657
        $region88: #{transformer_diffusion_forward.1} parent=63 // pred_fallthru
          _
        // Predicated region
        $region89: #{transformer_diffusion_forward.1} parent=63 // pred_check
          %p659 = pneg %p415
        $region90: #{transformer_diffusion_forward.1} parent=63 // pred_check_branch
          %661 = sbr.rel (%p659) target = $region92
        $region91: #{transformer_diffusion_forward.1} parent=63 // pred_region
          %p662 = scmp.lt.s32.totalorder %s29, 1
          %s663 = scalar_select %p662, %s29, 1
          %s664 = smul.addr %s663, 8
          %s665 = smul.addr %s664, 4
          %s666 = scalar_lea.vmem %s16, %s665
        $region92: #{transformer_diffusion_forward.1} parent=63 // pred_fallthru
          _
        // Predicated region
        $region93: #{transformer_diffusion_forward.1} parent=63 // pred_check
          %p667 = pneg %p441
        $region94: #{transformer_diffusion_forward.1} parent=63 // pred_check_branch
          %669 = sbr.rel (%p667) target = $region96
        $region95: #{transformer_diffusion_forward.1} parent=63 // pred_region
          %p670 = scmp.lt.s32.totalorder %s29, 1
          %s671 = scalar_select %p670, %s29, 1
          %s672 = scalar_lea.vmem %s17, %s671
        $region96: #{transformer_diffusion_forward.1} parent=63 // pred_fallthru
          _
        // Predicated region
        $region97: #{transformer_diffusion_forward.1} parent=63 // pred_check
          %p673 = pneg %p467
        $region98: #{transformer_diffusion_forward.1} parent=63 // pred_check_branch
          %675 = sbr.rel (%p673) target = $region100
        $region99: #{transformer_diffusion_forward.1} parent=63 // pred_region
          %p676 = scmp.lt.s32.totalorder %s29, 1
          %s677 = scalar_select %p676, %s29, 1
          %s678 = scalar_lea.vmem %s18, %s677
        $region100: #{transformer_diffusion_forward.1} parent=63 // pred_fallthru
          _
        // Predicated region
        $region101: #{transformer_diffusion_forward.1} parent=63 // pred_check
          %p679 = pneg %p493
        $region102: #{transformer_diffusion_forward.1} parent=63 // pred_check_branch
          %681 = sbr.rel (%p679) target = $region104
        $region103: #{transformer_diffusion_forward.1} parent=63 // pred_region
          %p682 = scmp.lt.s32.totalorder %s29, 1
          %s683 = scalar_select %p682, %s29, 1
          %s684 = scalar_lea.vmem %s19, %s683
        $region104: #{transformer_diffusion_forward.1} parent=63 // pred_fallthru
          _
      $region64: #{transformer_diffusion_forward.1} parent=5 // pred_fallthru
        _
      %p685 = scmp.le.s32.totalorder 1, %s29
      %p686 = scmp.lt.s32.totalorder %s29, 3
      %p687 = pnand %p685, %p686
      %p688 = pneg %p687
      // Predicated region
      $region105: #{transformer_diffusion_forward.1} parent=5 // pred_check
        _
      $region106: #{transformer_diffusion_forward.1} parent=5 // pred_check_branch
        %690 = sbr.rel (%p687) target = $region108
      $region107: #{transformer_diffusion_forward.1} parent=5 // pred_region
        %s691 = ssub.s32 %s29, 1
        %p692 = pneg %p50
        %p693 = pneg %p47
        %p694 = pneg %p71
        %p695 = pneg %p68
        %p696 = pneg %p92
        %p697 = pneg %p89
        %p698 = pneg %p113
        %p699 = pneg %p110
        %p700 = pneg %p134
        %p701 = pneg %p131
        %p702 = pneg %p155
        %p703 = pneg %p152
        %p704 = pneg %p176
        %p705 = pneg %p173
        %p706 = pneg %p197
        %p707 = pneg %p194
        %p708 = pneg %p218
        %p709 = pneg %p215
        %p710 = pneg %p239
        %p711 = pneg %p236
        %p712 = scmp.lt.s32.totalorder %s34, 1
        %s713 = scalar_select %p712, %s34, 1
        %s714 = smul.addr %s713, 4
        %s715 = smul.addr %s714, 4
        %s716 = scalar_lea.vmem %s10, %s715
        %p717 = pneg %p265
        %p718 = pneg %p262
        %p719 = scmp.lt.s32.totalorder %s34, 1
        %s720 = scalar_select %p719, %s34, 1
        %s721 = smul.addr %s720, 4
        %s722 = smul.addr %s721, 4
        %s723 = scalar_lea.vmem %s11, %s722
        %p724 = pneg %p291
        %p725 = pneg %p288
        %p726 = scmp.lt.s32.totalorder %s34, 1
        %s727 = scalar_select %p726, %s34, 1
        %s728 = scalar_lea.vmem %s12, %s727
        %p729 = pneg %p317
        %p730 = pneg %p314
        %p731 = scmp.lt.s32.totalorder %s34, 1
        %s732 = scalar_select %p731, %s34, 1
        %s733 = scalar_lea.vmem %s13, %s732
        %p734 = pneg %p343
        %p735 = pneg %p340
        %p736 = scmp.lt.s32.totalorder %s34, 1
        %s737 = scalar_select %p736, %s34, 1
        %s738 = smul.addr %s737, 4
        %s739 = smul.addr %s738, 4
        %s740 = scalar_lea.vmem %s14, %s739
        %p741 = pneg %p369
        %p742 = pneg %p366
        %p743 = scmp.lt.s32.totalorder %s34, 1
        %s744 = scalar_select %p743, %s34, 1
        %s745 = scalar_lea.vmem %s15, %s744
        %p746 = pneg %p395
        %p747 = pneg %p392
        %p748 = scmp.lt.s32.totalorder %s34, 1
        %s749 = scalar_select %p748, %s34, 1
        %s750 = smul.addr %s749, 8
        %s751 = smul.addr %s750, 4
        %s752 = scalar_lea.vmem %s16, %s751
        %p753 = pneg %p421
        %p754 = pneg %p418
        %p755 = scmp.lt.s32.totalorder %s34, 1
        %s756 = scalar_select %p755, %s34, 1
        %s757 = scalar_lea.vmem %s17, %s756
        %p758 = pneg %p447
        %p759 = pneg %p444
        %p760 = scmp.lt.s32.totalorder %s34, 1
        %s761 = scalar_select %p760, %s34, 1
        %s762 = scalar_lea.vmem %s18, %s761
        %p763 = pneg %p473
        %p764 = pneg %p470
        %p765 = scmp.lt.s32.totalorder %s34, 1
        %s766 = scalar_select %p765, %s34, 1
        %s767 = scalar_lea.vmem %s19, %s766
        %p768 = pneg %p499
        %p769 = pneg %p496
        %p770 = pneg %p520
        %p771 = pneg %p517
        %p772 = pneg %p541
        %p773 = pneg %p538
        %p774 = pneg %p562
        %p775 = pneg %p559
        %p776 = scmp.lt.s32.totalorder %s34, 1
        %s777 = scalar_select %p776, %s34, 1
        %s778 = smul.addr %s777, 4
        %s779 = smul.addr %s778, 4
        %s780 = scalar_lea.vmem %s10, %s779
        %p781 = scmp.lt.s32.totalorder %s34, 1
        %s782 = scalar_select %p781, %s34, 1
        %s783 = smul.addr %s782, 4
        %s784 = smul.addr %s783, 4
        %s785 = scalar_lea.vmem %s11, %s784
        %p786 = scmp.lt.s32.totalorder %s34, 1
        %s787 = scalar_select %p786, %s34, 1
        %s788 = scalar_lea.vmem %s12, %s787
        %p789 = scmp.lt.s32.totalorder %s34, 1
        %s790 = scalar_select %p789, %s34, 1
        %s791 = scalar_lea.vmem %s13, %s790
        %p792 = scmp.lt.s32.totalorder %s34, 1
        %s793 = scalar_select %p792, %s34, 1
        %s794 = smul.addr %s793, 4
        %s795 = smul.addr %s794, 4
        %s796 = scalar_lea.vmem %s14, %s795
        %p797 = scmp.lt.s32.totalorder %s34, 1
        %s798 = scalar_select %p797, %s34, 1
        %s799 = scalar_lea.vmem %s15, %s798
        %p800 = scmp.lt.s32.totalorder %s34, 1
        %s801 = scalar_select %p800, %s34, 1
        %s802 = smul.addr %s801, 8
        %s803 = smul.addr %s802, 4
        %s804 = scalar_lea.vmem %s16, %s803
        %p805 = scmp.lt.s32.totalorder %s34, 1
        %s806 = scalar_select %p805, %s34, 1
        %s807 = scalar_lea.vmem %s17, %s806
        %p808 = scmp.lt.s32.totalorder %s34, 1
        %s809 = scalar_select %p808, %s34, 1
        %s810 = scalar_lea.vmem %s18, %s809
        %p811 = scmp.lt.s32.totalorder %s34, 1
        %s812 = scalar_select %p811, %s34, 1
        %s813 = scalar_lea.vmem %s19, %s812
        %p815 = scmp.eq.s32.totalorder %s34, 0
        // Predicated region
        $region109: #{transformer_diffusion_forward.1} parent=107 // pred_check
          %p816 = pneg %p815
        $region110: #{transformer_diffusion_forward.1} parent=107 // pred_check_branch
          %818 = sbr.rel (%p816) target = $region112
        $region111: #{transformer_diffusion_forward.1} parent=107 // pred_region
          %v819 = vld [vmem:[%s0] sm:$0x3]
          %v820 = vld [vmem:[%s4] sm:$0xff]
          %v821 = vld [vmem:[%s4 + $0x8] sm:$0xff]
          %v822 = vld [vmem:[%s4 + $0x10] sm:$0xff]
          %v823 = vld [vmem:[%s4 + $0x18] sm:$0xff]
          %v824 = vld [vmem:[%s4 + $0x20] sm:$0xff]
          %v825 = vld [vmem:[%s4 + $0x28] sm:$0xff]
          %v826 = vld [vmem:[%s4 + $0x30] sm:$0xff]
          %v827 = vld [vmem:[%s4 + $0x38] sm:$0xff]
          %v828 = vpack.c.bf16 %v819, %v819
          %v829 = vld [vmem:[%s5] sm:$0x3]
          %v831 = vlaneseq
          %v832 = vshrl.u32 %v831, 7
          %v833 = vsub.s32 0, %v832
          %v834 = vrot.slane %v829, %v833
          %v835 = vlaneseq
          %v836 = vshrl.u32 %v835, 7
          %v837 = vsub.s32 1, %v836
          %v838 = vrot.slane %v829, %v837
          %v849 = vunpack.c.l.b16 %v820
          %v850 = vunpack.c.h.b16 %v820
          %v851 = vunpack.c.l.b16 %v821
          %v852 = vunpack.c.h.b16 %v821
          %v853 = vunpack.c.l.b16 %v822
          %v854 = vunpack.c.h.b16 %v822
          %v855 = vunpack.c.l.b16 %v823
          %v856 = vunpack.c.h.b16 %v823
          %v857 = vunpack.c.l.b16 %v824
          %v858 = vunpack.c.h.b16 %v824
          %v859 = vunpack.c.l.b16 %v825
          %v860 = vunpack.c.h.b16 %v825
          %v861 = vunpack.c.l.b16 %v826
          %v862 = vunpack.c.h.b16 %v826
          %v863 = vunpack.c.l.b16 %v827
          %v864 = vunpack.c.h.b16 %v827
          %v865 = vpack.c.b16 %v851, %v849
          %v866 = vpack.c.b16 %v852, %v850
          %v867 = vpack.c.b16 %v855, %v853
          %v868 = vpack.c.b16 %v856, %v854
          %v869 = vpack.c.b16 %v859, %v857
          %v870 = vpack.c.b16 %v860, %v858
          %v871 = vpack.c.b16 %v863, %v861
          %v872 = vpack.c.b16 %v864, %v862
          %vm881 = vcmask 523264
          %v883 = vsel %vm881, %v828, 0
          %885 = vmatprep.subr.bf16.mxu0 %v866
          %886 = vmatpush1.bf16.msra.mxu0 %v865
          %887 = vmatprep.subr.bf16.mxu0 %v868
          %888 = vmatpush1.bf16.msra.mxu0 %v867
          %889 = vmatprep.subr.bf16.mxu0 %v870
          %890 = vmatpush1.bf16.msra.mxu0 %v869
          %891 = vmatprep.subr.bf16.mxu0 %v872
          %892 = vmatpush1.bf16.msra.mxu0 %v871
          %893 = vmatprep.subr.bf16.mxu0 0
          %894 = vmatpush1.bf16.msra.mxu0 0
          %895 = vmatprep.subr.bf16.mxu0 0
          %896 = vmatpush1.bf16.msra.mxu0 0
          %897 = vmatprep.subr.bf16.mxu0 0
          %898 = vmatpush1.bf16.msra.mxu0 0
          %899 = vmatprep.subr.bf16.mxu0 0
          %900 = vmatpush1.bf16.msra.mxu0 0
          %901 = vmatprep.subr.bf16.mxu0 0
          %902 = vmatpush1.bf16.msra.mxu0 0
          %903 = vmatprep.subr.bf16.mxu0 0
          %904 = vmatpush1.bf16.msra.mxu0 0
          %905 = vmatprep.subr.bf16.mxu0 0
          %906 = vmatpush1.bf16.msra.mxu0 0
          %907 = vmatprep.subr.bf16.mxu0 0
          %908 = vmatpush1.bf16.msra.mxu0 0
          %909 = vmatprep.subr.bf16.mxu0 0
          %910 = vmatpush1.bf16.msra.mxu0 0
          %911 = vmatprep.subr.bf16.mxu0 0
          %912 = vmatpush1.bf16.msra.mxu0 0
          %913 = vmatprep.subr.bf16.mxu0 0
          %914 = vmatpush1.bf16.msra.mxu0 0
          %915 = vmatprep.subr.bf16.mxu0 0
          %916 = vmatpush1.bf16.msra.mxu0 0
          %917 = vmatprep.mubr.bf16.mxu0 0
          %918 = vmatmul.mubr.bf16.gmra.mrb[0].mxu0 %v883
          %v919 = vpop.f32.mrb[0].mxu0
          %v920 = vadd.f32 %v834, %v919
          %v921 = vpop.f32.mrb[0].mxu0
          %v922 = vadd.f32 %v838, %v921
          %v923 = vpop.f32.mrb[0].mxu0
          %v924 = vpop.f32.mrb[0].mxu0
          %925 = vdwg.mxu0
          %v926 = vmul.f32 %v920, 0.5
          %v927 = vmul.f32 %v922, 0.5
          %v928 = vmul.f32 %v920, 0.70710677
          %v929 = vmul.f32 %v922, 0.70710677
          %v930 = verf.f32.pop %v928
          %v931 = verf.f32.pop %v929
          %v932 = vadd.f32 %v930, 1.0
          %v933 = vadd.f32 %v931, 1.0
          %v934 = vmul.f32 %v926, %v932
          %v935 = vmul.f32 %v927, %v933
          %v936 = vld [vmem:[%s6] sm:$0xf]
          %v937 = vld [vmem:[%s6 + $0x4] sm:$0xf]
          %v938 = vld [vmem:[%s6 + $0x8] sm:$0xf]
          %v939 = vld [vmem:[%s6 + $0xc] sm:$0xf]
          %v940 = vld [vmem:[%s6 + $0x10] sm:$0xf]
          %v941 = vld [vmem:[%s6 + $0x14] sm:$0xf]
          %v942 = vld [vmem:[%s6 + $0x18] sm:$0xf]
          %v943 = vld [vmem:[%s6 + $0x1c] sm:$0xf]
          %v944 = vld [vmem:[%s6 + $0x20] sm:$0xf]
          %v945 = vld [vmem:[%s6 + $0x24] sm:$0xf]
          %v946 = vld [vmem:[%s6 + $0x28] sm:$0xf]
          %v947 = vld [vmem:[%s6 + $0x2c] sm:$0xf]
          %v948 = vld [vmem:[%s6 + $0x30] sm:$0xf]
          %v949 = vld [vmem:[%s6 + $0x34] sm:$0xf]
          %v950 = vld [vmem:[%s6 + $0x38] sm:$0xf]
          %v951 = vld [vmem:[%s6 + $0x3c] sm:$0xf]
          %v952 = vld [vmem:[%s6 + $0x40] sm:$0xf]
          %v953 = vld [vmem:[%s6 + $0x44] sm:$0xf]
          %v954 = vld [vmem:[%s6 + $0x48] sm:$0xf]
          %v955 = vld [vmem:[%s6 + $0x4c] sm:$0xf]
          %v956 = vld [vmem:[%s6 + $0x50] sm:$0xf]
          %v957 = vld [vmem:[%s6 + $0x54] sm:$0xf]
          %v958 = vld [vmem:[%s6 + $0x58] sm:$0xf]
          %v959 = vld [vmem:[%s6 + $0x5c] sm:$0xf]
          %v960 = vld [vmem:[%s6 + $0x60] sm:$0xf]
          %v961 = vld [vmem:[%s6 + $0x64] sm:$0xf]
          %v962 = vld [vmem:[%s6 + $0x68] sm:$0xf]
          %v963 = vld [vmem:[%s6 + $0x6c] sm:$0xf]
          %v964 = vld [vmem:[%s6 + $0x70] sm:$0xf]
          %v965 = vld [vmem:[%s6 + $0x74] sm:$0xf]
          %v966 = vld [vmem:[%s6 + $0x78] sm:$0xf]
          %v967 = vld [vmem:[%s6 + $0x7c] sm:$0xf]
          %v968 = vpack.c.bf16 %v934, %v934
          %v969 = vpack.c.bf16 %v935, %v935
          %v970 = vld [vmem:[%s7] sm:$0x1]
          %v972 = vlaneseq
          %v973 = vshrl.u32 %v972, 7
          %v974 = vsub.s32 0, %v973
          %v975 = vrot.slane %v970, %v974
          %v1009 = vunpack.c.l.b16 %v936
          %v1010 = vunpack.c.l.b16 %v937
          %v1011 = vunpack.c.l.b16 %v938
          %v1012 = vunpack.c.l.b16 %v939
          %v1013 = vunpack.c.l.b16 %v940
          %v1014 = vunpack.c.l.b16 %v941
          %v1015 = vunpack.c.l.b16 %v942
          %v1016 = vunpack.c.l.b16 %v943
          %v1017 = vunpack.c.l.b16 %v944
          %v1018 = vunpack.c.l.b16 %v945
          %v1019 = vunpack.c.l.b16 %v946
          %v1020 = vunpack.c.l.b16 %v947
          %v1021 = vunpack.c.l.b16 %v948
          %v1022 = vunpack.c.l.b16 %v949
          %v1023 = vunpack.c.l.b16 %v950
          %v1024 = vunpack.c.l.b16 %v951
          %v1025 = vunpack.c.l.b16 %v952
          %v1026 = vunpack.c.l.b16 %v953
          %v1027 = vunpack.c.l.b16 %v954
          %v1028 = vunpack.c.l.b16 %v955
          %v1029 = vunpack.c.l.b16 %v956
          %v1030 = vunpack.c.l.b16 %v957
          %v1031 = vunpack.c.l.b16 %v958
          %v1032 = vunpack.c.l.b16 %v959
          %v1033 = vunpack.c.l.b16 %v960
          %v1034 = vunpack.c.l.b16 %v961
          %v1035 = vunpack.c.l.b16 %v962
          %v1036 = vunpack.c.l.b16 %v963
          %v1037 = vunpack.c.l.b16 %v964
          %v1038 = vunpack.c.l.b16 %v965
          %v1039 = vunpack.c.l.b16 %v966
          %v1040 = vunpack.c.l.b16 %v967
          %v1041 = vpack.c.b16 %v1010, %v1009
          %v1042 = vpack.c.b16 %v1012, %v1011
          %v1043 = vpack.c.b16 %v1014, %v1013
          %v1044 = vpack.c.b16 %v1016, %v1015
          %v1045 = vpack.c.b16 %v1018, %v1017
          %v1046 = vpack.c.b16 %v1020, %v1019
          %v1047 = vpack.c.b16 %v1022, %v1021
          %v1048 = vpack.c.b16 %v1024, %v1023
          %v1049 = vpack.c.b16 %v1026, %v1025
          %v1050 = vpack.c.b16 %v1028, %v1027
          %v1051 = vpack.c.b16 %v1030, %v1029
          %v1052 = vpack.c.b16 %v1032, %v1031
          %v1053 = vpack.c.b16 %v1034, %v1033
          %v1054 = vpack.c.b16 %v1036, %v1035
          %v1055 = vpack.c.b16 %v1038, %v1037
          %v1056 = vpack.c.b16 %v1040, %v1039
          %1073 = vmatprep.subr.bf16.mxu0 0
          %1074 = vmatpush1.bf16.msra.mxu0 %v1041
          %1075 = vmatprep.subr.bf16.mxu0 0
          %1076 = vmatpush1.bf16.msra.mxu0 %v1042
          %1077 = vmatprep.subr.bf16.mxu0 0
          %1078 = vmatpush1.bf16.msra.mxu0 %v1043
          %1079 = vmatprep.subr.bf16.mxu0 0
          %1080 = vmatpush1.bf16.msra.mxu0 %v1044
          %1081 = vmatprep.subr.bf16.mxu0 0
          %1082 = vmatpush1.bf16.msra.mxu0 %v1045
          %1083 = vmatprep.subr.bf16.mxu0 0
          %1084 = vmatpush1.bf16.msra.mxu0 %v1046
          %1085 = vmatprep.subr.bf16.mxu0 0
          %1086 = vmatpush1.bf16.msra.mxu0 %v1047
          %1087 = vmatprep.subr.bf16.mxu0 0
          %1088 = vmatpush1.bf16.msra.mxu0 %v1048
          %1089 = vmatprep.subr.bf16.mxu0 0
          %1090 = vmatpush1.bf16.msra.mxu0 %v1049
          %1091 = vmatprep.subr.bf16.mxu0 0
          %1092 = vmatpush1.bf16.msra.mxu0 %v1050
          %1093 = vmatprep.subr.bf16.mxu0 0
          %1094 = vmatpush1.bf16.msra.mxu0 %v1051
          %1095 = vmatprep.subr.bf16.mxu0 0
          %1096 = vmatpush1.bf16.msra.mxu0 %v1052
          %1097 = vmatprep.subr.bf16.mxu0 0
          %1098 = vmatpush1.bf16.msra.mxu0 %v1053
          %1099 = vmatprep.subr.bf16.mxu0 0
          %1100 = vmatpush1.bf16.msra.mxu0 %v1054
          %1101 = vmatprep.subr.bf16.mxu0 0
          %1102 = vmatpush1.bf16.msra.mxu0 %v1055
          %1103 = vmatprep.subr.bf16.mxu0 0
          %1104 = vmatpush1.bf16.msra.mxu0 %v1056
          %1105 = vmatprep.mubr.bf16.mxu0 %v969
          %1106 = vmatmul.mubr.bf16.gmra.mrb[0].mxu0 %v968
          %v1107 = vpop.f32.mrb[0].mxu0
          %v1108 = vadd.f32 %v975, %v1107
          %v1109 = vpop.f32.mrb[0].mxu0
          %v1110 = vpop.f32.mrb[0].mxu0
          %v1111 = vpop.f32.mrb[0].mxu0
          %1112 = vdwg.mxu0
          %v1113 = vld [vmem:[%s3] sm:$0xff]
          %v1114 = vld [vmem:[%s3 + $0x8] sm:$0xff]
          %v1115 = vld [vmem:[%s1] sm:$0xff]
          %v1116 = vld [vmem:[%s1 + $0x8] sm:$0xff]
          %v1117 = vld [vmem:[%s1 + $0x10] sm:$0xff]
          %v1118 = vld [vmem:[%s1 + $0x18] sm:$0xff]
          %v1119 = vld [vmem:[%s8] sm:$0xf]
          %v1120 = vld [vmem:[%s8 + $0x4] sm:$0xf]
          %v1121 = vld [vmem:[%s8 + $0x8] sm:$0x3]
          %v1122 = vpack.c.bf16 %v1116, %v1115
          %v1123 = vpack.c.bf16 %v1118, %v1117
          %v1124 = vld [vmem:[%s9] sm:$0x1]
          %v1126 = vlaneseq
          %v1127 = vshrl.u32 %v1126, 7
          %v1128 = vsub.s32 0, %v1127
          %v1129 = vrot.slane %v1124, %v1128
          %v1134 = vunpack.c.l.b16 %v1119
          %v1135 = vunpack.c.l.b16 %v1120
          %v1136 = vunpack.c.l.b16 %v1121
          %v1137 = vpack.c.b16 %v1135, %v1134
          %v1138 = vpack.c.b16 %v1136, %v1136
          %vm1140 = vcmask 162816
          %v1142 = vsel %vm1140, %v1122, 0
          %v1145 = vsel %vm1140, %v1123, 0
          %vm1147 = vcmask 1041408
          %v1149 = vsel %vm1147, %v1138, 0
          %1151 = vmatprep.subr.bf16.mxu0 0
          %1152 = vmatpush1.bf16.msra.mxu0 %v1137
          %1153 = vmatprep.subr.bf16.mxu0 0
          %1154 = vmatpush1.bf16.msra.mxu0 %v1149
          %1155 = vmatprep.subr.bf16.mxu0 0
          %1156 = vmatpush1.bf16.msra.mxu0 0
          %1157 = vmatprep.subr.bf16.mxu0 0
          %1158 = vmatpush1.bf16.msra.mxu0 0
          %1159 = vmatprep.subr.bf16.mxu0 0
          %1160 = vmatpush1.bf16.msra.mxu0 0
          %1161 = vmatprep.subr.bf16.mxu0 0
          %1162 = vmatpush1.bf16.msra.mxu0 0
          %1163 = vmatprep.subr.bf16.mxu0 0
          %1164 = vmatpush1.bf16.msra.mxu0 0
          %1165 = vmatprep.subr.bf16.mxu0 0
          %1166 = vmatpush1.bf16.msra.mxu0 0
          %1167 = vmatprep.subr.bf16.mxu0 0
          %1168 = vmatpush1.bf16.msra.mxu0 0
          %1169 = vmatprep.subr.bf16.mxu0 0
          %1170 = vmatpush1.bf16.msra.mxu0 0
          %1171 = vmatprep.subr.bf16.mxu0 0
          %1172 = vmatpush1.bf16.msra.mxu0 0
          %1173 = vmatprep.subr.bf16.mxu0 0
          %1174 = vmatpush1.bf16.msra.mxu0 0
          %1175 = vmatprep.subr.bf16.mxu0 0
          %1176 = vmatpush1.bf16.msra.mxu0 0
          %1177 = vmatprep.subr.bf16.mxu0 0
          %1178 = vmatpush1.bf16.msra.mxu0 0
          %1179 = vmatprep.subr.bf16.mxu0 0
          %1180 = vmatpush1.bf16.msra.mxu0 0
          %1181 = vmatprep.subr.bf16.mxu0 0
          %1182 = vmatpush1.bf16.msra.mxu0 0
          %1183 = vmatprep.mubr.bf16.mxu0 0
          %1184 = vmatmul.mubr.bf16.gmra.mrb[0].mxu0 %v1142
          %v1185 = vpop.f32.mrb[0].mxu0
          %v1186 = vadd.f32 %v1129, %v1185
          %v1187 = vpop.f32.mrb[0].mxu0
          %v1188 = vpop.f32.mrb[0].mxu0
          %v1189 = vadd.f32 %v1129, %v1188
          %v1190 = vpop.f32.mrb[0].mxu0
          %1191 = vmatprep.mubr.bf16.mxu0 0
          %1192 = vmatmul.mubr.bf16.gmra.mrb[0].mxu0 %v1145
          %v1193 = vpop.f32.mrb[0].mxu0
          %v1194 = vadd.f32 %v1129, %v1193
          %v1195 = vpop.f32.mrb[0].mxu0
          %v1196 = vpop.f32.mrb[0].mxu0
          %v1197 = vadd.f32 %v1129, %v1196
          %v1198 = vpop.f32.mrb[0].mxu0
          %1199 = vdwg.mxu0
          %v1200 = vadd.f32 %v1186, %v1113
          %v1201 = vadd.f32 %v1189, %v1114
          %v1202 = vadd.f32 %v1194, %v1113
          %v1203 = vadd.f32 %v1197, %v1114
          %vm1204 = vcmask 261120
          %1205 = vst.msk [vmem:[#allocation2] sm:$0xff] %vm1204, %v1200
          %1206 = vst.msk [vmem:[#allocation2 + $0x8] sm:$0xff] %vm1204, %v1201
          %1207 = vst.msk [vmem:[#allocation2 + $0x10] sm:$0xff] %vm1204, %v1202
          %1208 = vst.msk [vmem:[#allocation2 + $0x18] sm:$0xff] %vm1204, %v1203
          %v1209 = vadd.f32 %v1108, %v1113
          %vm1210 = vcmask 253952
          %1211 = vst.msk [vmem:[#allocation2] sm:$0x1] %vm1210, %v1209
          %v1213 = vrot.slane %v1113, 7
          %v1215 = vadd.f32 %v1108, %v1213
          %vm1216 = vcmask 254977
          %1217 = vst.msk [vmem:[#allocation2 + $0xf] sm:$0x2] %vm1216, %v1215
        $region112: #{transformer_diffusion_forward.1} parent=107 // pred_fallthru
          _
        %v1218 = vld [vmem:[%s780] sm:$0xf]
        %v1219 = vld [vmem:[%s780 + $0x4] sm:$0xf]
        %v1220 = vld [vmem:[%s780 + $0x8] sm:$0xf]
        %v1221 = vld [vmem:[%s780 + $0xc] sm:$0xf]
        %v1222 = vld [vmem:[%s785] sm:$0xf]
        %v1223 = vld [vmem:[%s785 + $0x4] sm:$0xf]
        %v1224 = vld [vmem:[%s785 + $0x8] sm:$0xf]
        %v1225 = vld [vmem:[%s785 + $0xc] sm:$0xf]
        %v1226 = vld [vmem:[%s788] sm:$0x1]
        %v1227 = vld [vmem:[%s791] sm:$0x1]
        %v1228 = vld [vmem:[%s796] sm:$0xf]
        %v1229 = vld [vmem:[%s796 + $0x4] sm:$0xf]
        %v1230 = vld [vmem:[%s796 + $0x8] sm:$0xf]
        %v1231 = vld [vmem:[%s796 + $0xc] sm:$0xf]
        %v1232 = vld [vmem:[%s799] sm:$0x1]
        %v1233 = vld [vmem:[%s804] sm:$0xf]
        %v1234 = vld [vmem:[%s804 + $0x4] sm:$0xf]
        %v1235 = vld [vmem:[%s804 + $0x8] sm:$0xf]
        %v1236 = vld [vmem:[%s804 + $0xc] sm:$0xf]
        %v1237 = vld [vmem:[%s804 + $0x10] sm:$0xf]
        %v1238 = vld [vmem:[%s804 + $0x14] sm:$0xf]
        %v1239 = vld [vmem:[%s804 + $0x18] sm:$0xf]
        %v1240 = vld [vmem:[%s804 + $0x1c] sm:$0xf]
        %v1241 = vld [vmem:[%s807] sm:$0x1]
        %v1242 = vld [vmem:[%s810] sm:$0x1]
        %v1243 = vld [vmem:[%s813] sm:$0x1]
        %v1244 = vld [vmem:[%s2] sm:$0x3]
        %v1245 = vld [vmem:[#allocation2] sm:$0xff]
        %v1246 = vld [vmem:[#allocation2 + $0x8] sm:$0xff]
        %v1247 = vld [vmem:[#allocation2 + $0x10] sm:$0xff]
        %v1248 = vld [vmem:[#allocation2 + $0x18] sm:$0xff]
        %v1249 = vpack.c.bf16 %v1246, %v1245
        %v1250 = vpack.c.bf16 %v1248, %v1247
        %v1255 = vunpack.c.l.b16 %v1218
        %v1256 = vunpack.c.l.b16 %v1219
        %v1257 = vunpack.c.l.b16 %v1220
        %v1258 = vunpack.c.l.b16 %v1221
        %v1259 = vpack.c.b16 %v1256, %v1255
        %v1260 = vpack.c.b16 %v1258, %v1257
        %vm1263 = vcmask 261120
        %v1265 = vsel %vm1263, %v1249, 0
        %v1268 = vsel %vm1263, %v1250, 0
        %1270 = vmatprep.subr.bf16.mxu0 0
        %1271 = vmatpush1.bf16.msra.mxu0 %v1259
        %1272 = vmatprep.subr.bf16.mxu0 0
        %1273 = vmatpush1.bf16.msra.mxu0 %v1260
        %1274 = vmatprep.subr.bf16.mxu0 0
        %1275 = vmatpush1.bf16.msra.mxu0 0
        %1276 = vmatprep.subr.bf16.mxu0 0
        %1277 = vmatpush1.bf16.msra.mxu0 0
        %1278 = vmatprep.subr.bf16.mxu0 0
        %1279 = vmatpush1.bf16.msra.mxu0 0
        %1280 = vmatprep.subr.bf16.mxu0 0
        %1281 = vmatpush1.bf16.msra.mxu0 0
        %1282 = vmatprep.subr.bf16.mxu0 0
        %1283 = vmatpush1.bf16.msra.mxu0 0
        %1284 = vmatprep.subr.bf16.mxu0 0
        %1285 = vmatpush1.bf16.msra.mxu0 0
        %1286 = vmatprep.subr.bf16.mxu0 0
        %1287 = vmatpush1.bf16.msra.mxu0 0
        %1288 = vmatprep.subr.bf16.mxu0 0
        %1289 = vmatpush1.bf16.msra.mxu0 0
        %1290 = vmatprep.subr.bf16.mxu0 0
        %1291 = vmatpush1.bf16.msra.mxu0 0
        %1292 = vmatprep.subr.bf16.mxu0 0
        %1293 = vmatpush1.bf16.msra.mxu0 0
        %1294 = vmatprep.subr.bf16.mxu0 0
        %1295 = vmatpush1.bf16.msra.mxu0 0
        %1296 = vmatprep.subr.bf16.mxu0 0
        %1297 = vmatpush1.bf16.msra.mxu0 0
        %1298 = vmatprep.subr.bf16.mxu0 0
        %1299 = vmatpush1.bf16.msra.mxu0 0
        %1300 = vmatprep.subr.bf16.mxu0 0
        %1301 = vmatpush1.bf16.msra.mxu0 0
        %1302 = vmatprep.mubr.bf16.mxu0 0
        %1303 = vmatmul.mubr.bf16.gmra.mrb[0].mxu0 %v1265
        %v1304 = vpop.f32.mrb[0].mxu0
        %v1305 = vadd.f32 0.0, %v1304
        %v1306 = vpop.f32.mrb[0].mxu0
        %v1307 = vpop.f32.mrb[0].mxu0
        %v1308 = vadd.f32 0.0, %v1307
        %v1309 = vpop.f32.mrb[0].mxu0
        %1310 = vmatprep.mubr.bf16.mxu0 0
        %1311 = vmatmul.mubr.bf16.gmra.mrb[0].mxu0 %v1268
        %v1312 = vpop.f32.mrb[0].mxu0
        %v1313 = vadd.f32 0.0, %v1312
        %v1314 = vpop.f32.mrb[0].mxu0
        %v1315 = vpop.f32.mrb[0].mxu0
        %v1316 = vadd.f32 0.0, %v1315
        %v1317 = vpop.f32.mrb[0].mxu0
        %1318 = vdwg.mxu0
        %v1319 = vpack.c.bf16 %v1308, %v1305
        %1321 = vrot.lane.b32.xlu0 %v1319, 96
        %v1322 = vpop.permute.xlu0 %1321
        %vm1323 = vcmask 130048
        %v1325 = vsel %vm1323, %v1319, 0
        %v1328 = vsel %vm1323, %v1322, 0
        %1330 = vmatprep.subr.bf16.mxu0 0
        %1331 = vmatpush1.bf16.xpose.msra.mxu0 %v1328
        %1332 = vmatprep.subr.bf16.mxu0 0
        %1333 = vmatpush1.bf16.xpose.msra.mxu0 0
        %1334 = vmatprep.subr.bf16.mxu0 0
        %1335 = vmatpush1.bf16.xpose.msra.mxu0 0
        %1336 = vmatprep.subr.bf16.mxu0 0
        %1337 = vmatpush1.bf16.xpose.msra.mxu0 0
        %1338 = vmatprep.subr.bf16.mxu0 0
        %1339 = vmatpush1.bf16.xpose.msra.mxu0 0
        %1340 = vmatprep.subr.bf16.mxu0 0
        %1341 = vmatpush1.bf16.xpose.msra.mxu0 0
        %1342 = vmatprep.subr.bf16.mxu0 0
        %1343 = vmatpush1.bf16.xpose.msra.mxu0 0
        %1344 = vmatprep.subr.bf16.mxu0 0
        %1345 = vmatpush1.bf16.xpose.msra.mxu0 0
        %1346 = vmatprep.subr.bf16.mxu0 0
        %1347 = vmatpush1.bf16.xpose.msra.mxu0 0
        %1348 = vmatprep.subr.bf16.mxu0 0
        %1349 = vmatpush1.bf16.xpose.msra.mxu0 0
        %1350 = vmatprep.subr.bf16.mxu0 0
        %1351 = vmatpush1.bf16.xpose.msra.mxu0 0
        %1352 = vmatprep.subr.bf16.mxu0 0
        %1353 = vmatpush1.bf16.xpose.msra.mxu0 0
        %1354 = vmatprep.subr.bf16.mxu0 0
        %1355 = vmatpush1.bf16.xpose.msra.mxu0 0
        %1356 = vmatprep.subr.bf16.mxu0 0
        %1357 = vmatpush1.bf16.xpose.msra.mxu0 0
        %1358 = vmatprep.subr.bf16.mxu0 0
        %1359 = vmatpush1.bf16.xpose.msra.mxu0 0
        %1360 = vmatprep.subr.bf16.mxu0 0
        %1361 = vmatpush1.bf16.xpose.msra.mxu0 0
        %1362 = vmatprep.mubr.bf16.mxu0 0
        %1363 = vmatmul.mubr.bf16.gmra.mrb[0].mxu0 %v1325
        %v1364 = vpop.f32.mrb[0].mxu0
        %v1365 = vadd.f32 0.0, %v1364
        %v1366 = vpop.f32.mrb[0].mxu0
        %v1367 = vpop.f32.mrb[0].mxu0
        %v1368 = vadd.f32 0.0, %v1367
        %v1369 = vpop.f32.mrb[0].mxu0
        %1370 = vdwg.mxu0
        %v1371 = vmul.f32 %v1365, 0.25
        %v1372 = vmul.f32 %v1368, 0.25
        %v1373 = vlaneseq
        %v1374 = vshrl.u32 %v1373, 7
        %v1375 = vsub.s32 0, %v1374
        %v1376 = vrot.slane %v1244, %v1375
        %v1377 = vadd.f32 %v1371, %v1376
        %v1378 = vadd.f32 %v1372, %v1376
        %v1379 = vsel %vm1323, %v1377, -inf
        %1380 = vmax.xlane.f32.xlu0 %v1379
        %v1381 = vpop.xlane.xlu0 %1380
        %v1382 = vsel %vm1323, %v1378, -inf
        %1383 = vmax.xlane.f32.xlu0 %v1382
        %v1384 = vpop.xlane.xlu0 %1383
        %v1385 = vsub.f32 %v1377, %v1381
        %v1386 = vsub.f32 %v1378, %v1384
        %v1387 = vmul.f32 %v1385, 1.442695
        %v1388 = vpow.pop %v1387
        %v1389 = vmul.f32 %v1386, 1.442695
        %v1390 = vpow.pop %v1389
        %v1391 = vsel %vm1323, %v1388, 0.0
        %1392 = vadd.xlane.f32.xlu0 %v1391
        %v1393 = vpop.xlane.xlu0 %1392
        %v1394 = vsel %vm1323, %v1390, 0.0
        %1395 = vadd.xlane.f32.xlu0 %v1394
        %v1396 = vpop.xlane.xlu0 %1395
        %v1397 = vrcp.pop %v1393
        %v1398 = vrcp.pop %v1396
        %v1399 = vmul.f32 %v1388, %v1397
        %v1400 = vmul.f32 %v1390, %v1398
        %v1401 = vpack.c.bf16 %v1400, %v1399
        %1402 = vrot.lane.b32.xlu0 %v1319, 64
        %v1403 = vpop.permute.xlu0 %1402
        %v1406 = vsel %vm1323, %v1401, 0
        %1408 = vmatprep.subr.bf16.mxu0 0
        %1409 = vmatpush1.bf16.msra.mxu0 %v1403
        %1410 = vmatprep.subr.bf16.mxu0 0
        %1411 = vmatpush1.bf16.msra.mxu0 0
        %1412 = vmatprep.subr.bf16.mxu0 0
        %1413 = vmatpush1.bf16.msra.mxu0 0
        %1414 = vmatprep.subr.bf16.mxu0 0
        %1415 = vmatpush1.bf16.msra.mxu0 0
        %1416 = vmatprep.subr.bf16.mxu0 0
        %1417 = vmatpush1.bf16.msra.mxu0 0
        %1418 = vmatprep.subr.bf16.mxu0 0
        %1419 = vmatpush1.bf16.msra.mxu0 0
        %1420 = vmatprep.subr.bf16.mxu0 0
        %1421 = vmatpush1.bf16.msra.mxu0 0
        %1422 = vmatprep.subr.bf16.mxu0 0
        %1423 = vmatpush1.bf16.msra.mxu0 0
        %1424 = vmatprep.subr.bf16.mxu0 0
        %1425 = vmatpush1.bf16.msra.mxu0 0
        %1426 = vmatprep.subr.bf16.mxu0 0
        %1427 = vmatpush1.bf16.msra.mxu0 0
        %1428 = vmatprep.subr.bf16.mxu0 0
        %1429 = vmatpush1.bf16.msra.mxu0 0
        %1430 = vmatprep.subr.bf16.mxu0 0
        %1431 = vmatpush1.bf16.msra.mxu0 0
        %1432 = vmatprep.subr.bf16.mxu0 0
        %1433 = vmatpush1.bf16.msra.mxu0 0
        %1434 = vmatprep.subr.bf16.mxu0 0
        %1435 = vmatpush1.bf16.msra.mxu0 0
        %1436 = vmatprep.subr.bf16.mxu0 0
        %1437 = vmatpush1.bf16.msra.mxu0 0
        %1438 = vmatprep.subr.bf16.mxu0 0
        %1439 = vmatpush1.bf16.msra.mxu0 0
        %1440 = vmatprep.mubr.bf16.mxu0 0
        %1441 = vmatmul.mubr.bf16.gmra.mrb[0].mxu0 %v1406
        %v1442 = vpop.f32.mrb[0].mxu0
        %v1443 = vadd.f32 0.0, %v1442
        %v1444 = vpop.f32.mrb[0].mxu0
        %v1445 = vpop.f32.mrb[0].mxu0
        %v1446 = vadd.f32 0.0, %v1445
        %v1447 = vpop.f32.mrb[0].mxu0
        %1448 = vdwg.mxu0
        %v1449 = vpack.c.bf16 %v1446, %v1443
        %1450 = vrot.lane.b32.xlu0 %v1319, 112
        %v1451 = vpop.permute.xlu0 %1450
        %1452 = vrot.lane.b32.xlu0 %v1319, 80
        %v1453 = vpop.permute.xlu0 %1452
        %v1455 = vsel %vm1323, %v1451, 0
        %v1458 = vsel %vm1323, %v1453, 0
        %1460 = vmatprep.subr.bf16.mxu0 0
        %1461 = vmatpush1.bf16.xpose.msra.mxu0 %v1458
        %1462 = vmatprep.subr.bf16.mxu0 0
        %1463 = vmatpush1.bf16.xpose.msra.mxu0 0
        %1464 = vmatprep.subr.bf16.mxu0 0
        %1465 = vmatpush1.bf16.xpose.msra.mxu0 0
        %1466 = vmatprep.subr.bf16.mxu0 0
        %1467 = vmatpush1.bf16.xpose.msra.mxu0 0
        %1468 = vmatprep.subr.bf16.mxu0 0
        %1469 = vmatpush1.bf16.xpose.msra.mxu0 0
        %1470 = vmatprep.subr.bf16.mxu0 0
        %1471 = vmatpush1.bf16.xpose.msra.mxu0 0
        %1472 = vmatprep.subr.bf16.mxu0 0
        %1473 = vmatpush1.bf16.xpose.msra.mxu0 0
        %1474 = vmatprep.subr.bf16.mxu0 0
        %1475 = vmatpush1.bf16.xpose.msra.mxu0 0
        %1476 = vmatprep.subr.bf16.mxu0 0
        %1477 = vmatpush1.bf16.xpose.msra.mxu0 0
        %1478 = vmatprep.subr.bf16.mxu0 0
        %1479 = vmatpush1.bf16.xpose.msra.mxu0 0
        %1480 = vmatprep.subr.bf16.mxu0 0
        %1481 = vmatpush1.bf16.xpose.msra.mxu0 0
        %1482 = vmatprep.subr.bf16.mxu0 0
        %1483 = vmatpush1.bf16.xpose.msra.mxu0 0
        %1484 = vmatprep.subr.bf16.mxu0 0
        %1485 = vmatpush1.bf16.xpose.msra.mxu0 0
        %1486 = vmatprep.subr.bf16.mxu0 0
        %1487 = vmatpush1.bf16.xpose.msra.mxu0 0
        %1488 = vmatprep.subr.bf16.mxu0 0
        %1489 = vmatpush1.bf16.xpose.msra.mxu0 0
        %1490 = vmatprep.subr.bf16.mxu0 0
        %1491 = vmatpush1.bf16.xpose.msra.mxu0 0
        %1492 = vmatprep.mubr.bf16.mxu0 0
        %1493 = vmatmul.mubr.bf16.gmra.mrb[0].mxu0 %v1455
        %v1494 = vpop.f32.mrb[0].mxu0
        %v1495 = vadd.f32 0.0, %v1494
        %v1496 = vpop.f32.mrb[0].mxu0
        %v1497 = vpop.f32.mrb[0].mxu0
        %v1498 = vadd.f32 0.0, %v1497
        %v1499 = vpop.f32.mrb[0].mxu0
        %1500 = vdwg.mxu0
        %v1501 = vmul.f32 %v1495, 0.25
        %v1502 = vmul.f32 %v1498, 0.25
        %v1503 = vadd.f32 %v1501, %v1376
        %v1504 = vadd.f32 %v1502, %v1376
        %v1505 = vsel %vm1323, %v1503, -inf
        %1506 = vmax.xlane.f32.xlu0 %v1505
        %v1507 = vpop.xlane.xlu0 %1506
        %v1508 = vsel %vm1323, %v1504, -inf
        %1509 = vmax.xlane.f32.xlu0 %v1508
        %v1510 = vpop.xlane.xlu0 %1509
        %v1511 = vsub.f32 %v1503, %v1507
        %v1512 = vsub.f32 %v1504, %v1510
        %v1513 = vmul.f32 %v1511, 1.442695
        %v1514 = vpow.pop %v1513
        %v1515 = vmul.f32 %v1512, 1.442695
        %v1516 = vpow.pop %v1515
        %v1517 = vsel %vm1323, %v1514, 0.0
        %1518 = vadd.xlane.f32.xlu0 %v1517
        %v1519 = vpop.xlane.xlu0 %1518
        %v1520 = vsel %vm1323, %v1516, 0.0
        %1521 = vadd.xlane.f32.xlu0 %v1520
        %v1522 = vpop.xlane.xlu0 %1521
        %v1523 = vrcp.pop %v1519
        %v1524 = vrcp.pop %v1522
        %v1525 = vmul.f32 %v1514, %v1523
        %v1526 = vmul.f32 %v1516, %v1524
        %v1527 = vpack.c.bf16 %v1526, %v1525
        %1528 = vrot.lane.b32.xlu0 %v1319, 48
        %v1529 = vpop.permute.xlu0 %1528
        %v1532 = vsel %vm1323, %v1527, 0
        %1534 = vmatprep.subr.bf16.mxu0 0
        %1535 = vmatpush1.bf16.msra.mxu0 %v1529
        %1536 = vmatprep.subr.bf16.mxu0 0
        %1537 = vmatpush1.bf16.msra.mxu0 0
        %1538 = vmatprep.subr.bf16.mxu0 0
        %1539 = vmatpush1.bf16.msra.mxu0 0
        %1540 = vmatprep.subr.bf16.mxu0 0
        %1541 = vmatpush1.bf16.msra.mxu0 0
        %1542 = vmatprep.subr.bf16.mxu0 0
        %1543 = vmatpush1.bf16.msra.mxu0 0
        %1544 = vmatprep.subr.bf16.mxu0 0
        %1545 = vmatpush1.bf16.msra.mxu0 0
        %1546 = vmatprep.subr.bf16.mxu0 0
        %1547 = vmatpush1.bf16.msra.mxu0 0
        %1548 = vmatprep.subr.bf16.mxu0 0
        %1549 = vmatpush1.bf16.msra.mxu0 0
        %1550 = vmatprep.subr.bf16.mxu0 0
        %1551 = vmatpush1.bf16.msra.mxu0 0
        %1552 = vmatprep.subr.bf16.mxu0 0
        %1553 = vmatpush1.bf16.msra.mxu0 0
        %1554 = vmatprep.subr.bf16.mxu0 0
        %1555 = vmatpush1.bf16.msra.mxu0 0
        %1556 = vmatprep.subr.bf16.mxu0 0
        %1557 = vmatpush1.bf16.msra.mxu0 0
        %1558 = vmatprep.subr.bf16.mxu0 0
        %1559 = vmatpush1.bf16.msra.mxu0 0
        %1560 = vmatprep.subr.bf16.mxu0 0
        %1561 = vmatpush1.bf16.msra.mxu0 0
        %1562 = vmatprep.subr.bf16.mxu0 0
        %1563 = vmatpush1.bf16.msra.mxu0 0
        %1564 = vmatprep.subr.bf16.mxu0 0
        %1565 = vmatpush1.bf16.msra.mxu0 0
        %1566 = vmatprep.mubr.bf16.mxu0 0
        %1567 = vmatmul.mubr.bf16.gmra.mrb[0].mxu0 %v1532
        %v1568 = vpop.f32.mrb[0].mxu0
        %v1569 = vadd.f32 0.0, %v1568
        %v1570 = vpop.f32.mrb[0].mxu0
        %v1571 = vpop.f32.mrb[0].mxu0
        %v1572 = vadd.f32 0.0, %v1571
        %v1573 = vpop.f32.mrb[0].mxu0
        %1574 = vdwg.mxu0
        %v1575 = vpack.c.bf16 %v1572, %v1569
        %v1578 = vunpack.c.l.b16 %v1224
        %v1579 = vunpack.c.l.b16 %v1225
        %v1580 = vpack.c.b16 %v1579, %v1578
        %v1583 = vsel %vm1323, %v1575, 0
        %1585 = vmatprep.subr.bf16.mxu0 0
        %1586 = vmatpush1.bf16.msra.mxu0 %v1580
        %1587 = vmatprep.subr.bf16.mxu0 0
        %1588 = vmatpush1.bf16.msra.mxu0 0
        %1589 = vmatprep.subr.bf16.mxu0 0
        %1590 = vmatpush1.bf16.msra.mxu0 0
        %1591 = vmatprep.subr.bf16.mxu0 0
        %1592 = vmatpush1.bf16.msra.mxu0 0
        %1593 = vmatprep.subr.bf16.mxu0 0
        %1594 = vmatpush1.bf16.msra.mxu0 0
        %1595 = vmatprep.subr.bf16.mxu0 0
        %1596 = vmatpush1.bf16.msra.mxu0 0
        %1597 = vmatprep.subr.bf16.mxu0 0
        %1598 = vmatpush1.bf16.msra.mxu0 0
        %1599 = vmatprep.subr.bf16.mxu0 0
        %1600 = vmatpush1.bf16.msra.mxu0 0
        %1601 = vmatprep.subr.bf16.mxu0 0
        %1602 = vmatpush1.bf16.msra.mxu0 0
        %1603 = vmatprep.subr.bf16.mxu0 0
        %1604 = vmatpush1.bf16.msra.mxu0 0
        %1605 = vmatprep.subr.bf16.mxu0 0
        %1606 = vmatpush1.bf16.msra.mxu0 0
        %1607 = vmatprep.subr.bf16.mxu0 0
        %1608 = vmatpush1.bf16.msra.mxu0 0
        %1609 = vmatprep.subr.bf16.mxu0 0
        %1610 = vmatpush1.bf16.msra.mxu0 0
        %1611 = vmatprep.subr.bf16.mxu0 0
        %1612 = vmatpush1.bf16.msra.mxu0 0
        %1613 = vmatprep.subr.bf16.mxu0 0
        %1614 = vmatpush1.bf16.msra.mxu0 0
        %1615 = vmatprep.subr.bf16.mxu0 0
        %1616 = vmatpush1.bf16.msra.mxu0 0
        %1617 = vmatprep.mubr.bf16.mxu0 0
        %1618 = vmatmul.mubr.bf16.gmra.mrb[0].mxu0 %v1583
        %v1619 = vpop.f32.mrb[0].mxu0
        %v1620 = vadd.f32 0.0, %v1619
        %v1621 = vpop.f32.mrb[0].mxu0
        %v1622 = vpop.f32.mrb[0].mxu0
        %v1623 = vadd.f32 0.0, %v1622
        %v1624 = vpop.f32.mrb[0].mxu0
        %1625 = vdwg.mxu0
        %v1628 = vunpack.c.l.b16 %v1222
        %v1629 = vunpack.c.l.b16 %v1223
        %v1630 = vpack.c.b16 %v1629, %v1628
        %v1633 = vsel %vm1323, %v1449, 0
        %1635 = vmatprep.subr.bf16.mxu0 0
        %1636 = vmatpush1.bf16.msra.mxu0 %v1630
        %1637 = vmatprep.subr.bf16.mxu0 0
        %1638 = vmatpush1.bf16.msra.mxu0 0
        %1639 = vmatprep.subr.bf16.mxu0 0
        %1640 = vmatpush1.bf16.msra.mxu0 0
        %1641 = vmatprep.subr.bf16.mxu0 0
        %1642 = vmatpush1.bf16.msra.mxu0 0
        %1643 = vmatprep.subr.bf16.mxu0 0
        %1644 = vmatpush1.bf16.msra.mxu0 0
        %1645 = vmatprep.subr.bf16.mxu0 0
        %1646 = vmatpush1.bf16.msra.mxu0 0
        %1647 = vmatprep.subr.bf16.mxu0 0
        %1648 = vmatpush1.bf16.msra.mxu0 0
        %1649 = vmatprep.subr.bf16.mxu0 0
        %1650 = vmatpush1.bf16.msra.mxu0 0
        %1651 = vmatprep.subr.bf16.mxu0 0
        %1652 = vmatpush1.bf16.msra.mxu0 0
        %1653 = vmatprep.subr.bf16.mxu0 0
        %1654 = vmatpush1.bf16.msra.mxu0 0
        %1655 = vmatprep.subr.bf16.mxu0 0
        %1656 = vmatpush1.bf16.msra.mxu0 0
        %1657 = vmatprep.subr.bf16.mxu0 0
        %1658 = vmatpush1.bf16.msra.mxu0 0
        %1659 = vmatprep.subr.bf16.mxu0 0
        %1660 = vmatpush1.bf16.msra.mxu0 0
        %1661 = vmatprep.subr.bf16.mxu0 0
        %1662 = vmatpush1.bf16.msra.mxu0 0
        %1663 = vmatprep.subr.bf16.mxu0 0
        %1664 = vmatpush1.bf16.msra.mxu0 0
        %1665 = vmatprep.subr.bf16.mxu0 0
        %1666 = vmatpush1.bf16.msra.mxu0 0
        %1667 = vmatprep.mubr.bf16.mxu0 0
        %1668 = vmatmul.mubr.bf16.gmra.mrb[0].mxu0 %v1633
        %v1669 = vpop.f32.mrb[0].mxu0
        %v1670 = vadd.f32 %v1620, %v1669
        %v1671 = vpop.f32.mrb[0].mxu0
        %v1672 = vpop.f32.mrb[0].mxu0
        %v1673 = vadd.f32 %v1623, %v1672
        %v1674 = vpop.f32.mrb[0].mxu0
        %1675 = vdwg.mxu0
        %v1676 = vadd.f32 %v1245, %v1670
        %v1677 = vadd.f32 %v1246, %v1673
        %1678 = vst.msk [vmem:[#allocation2] sm:$0xff] %vm1263, %v1676
        %1679 = vst.msk [vmem:[#allocation2 + $0x8] sm:$0xff] %vm1263, %v1677
        %v1680 = vpack.c.bf16 %v1316, %v1313
        %1682 = vrot.lane.b32.xlu0 %v1680, 96
        %v1683 = vpop.permute.xlu0 %1682
        %v1685 = vsel %vm1323, %v1680, 0
        %v1688 = vsel %vm1323, %v1683, 0
        %1690 = vmatprep.subr.bf16.mxu0 0
        %1691 = vmatpush1.bf16.xpose.msra.mxu0 %v1688
        %1692 = vmatprep.subr.bf16.mxu0 0
        %1693 = vmatpush1.bf16.xpose.msra.mxu0 0
        %1694 = vmatprep.subr.bf16.mxu0 0
        %1695 = vmatpush1.bf16.xpose.msra.mxu0 0
        %1696 = vmatprep.subr.bf16.mxu0 0
        %1697 = vmatpush1.bf16.xpose.msra.mxu0 0
        %1698 = vmatprep.subr.bf16.mxu0 0
        %1699 = vmatpush1.bf16.xpose.msra.mxu0 0
        %1700 = vmatprep.subr.bf16.mxu0 0
        %1701 = vmatpush1.bf16.xpose.msra.mxu0 0
        %1702 = vmatprep.subr.bf16.mxu0 0
        %1703 = vmatpush1.bf16.xpose.msra.mxu0 0
        %1704 = vmatprep.subr.bf16.mxu0 0
        %1705 = vmatpush1.bf16.xpose.msra.mxu0 0
        %1706 = vmatprep.subr.bf16.mxu0 0
        %1707 = vmatpush1.bf16.xpose.msra.mxu0 0
        %1708 = vmatprep.subr.bf16.mxu0 0
        %1709 = vmatpush1.bf16.xpose.msra.mxu0 0
        %1710 = vmatprep.subr.bf16.mxu0 0
        %1711 = vmatpush1.bf16.xpose.msra.mxu0 0
        %1712 = vmatprep.subr.bf16.mxu0 0
        %1713 = vmatpush1.bf16.xpose.msra.mxu0 0
        %1714 = vmatprep.subr.bf16.mxu0 0
        %1715 = vmatpush1.bf16.xpose.msra.mxu0 0
        %1716 = vmatprep.subr.bf16.mxu0 0
        %1717 = vmatpush1.bf16.xpose.msra.mxu0 0
        %1718 = vmatprep.subr.bf16.mxu0 0
        %1719 = vmatpush1.bf16.xpose.msra.mxu0 0
        %1720 = vmatprep.subr.bf16.mxu0 0
        %1721 = vmatpush1.bf16.xpose.msra.mxu0 0
        %1722 = vmatprep.mubr.bf16.mxu0 0
        %1723 = vmatmul.mubr.bf16.gmra.mrb[0].mxu0 %v1685
        %v1724 = vpop.f32.mrb[0].mxu0
        %v1725 = vadd.f32 0.0, %v1724
        %v1726 = vpop.f32.mrb[0].mxu0
        %v1727 = vpop.f32.mrb[0].mxu0
        %v1728 = vadd.f32 0.0, %v1727
        %v1729 = vpop.f32.mrb[0].mxu0
        %1730 = vdwg.mxu0
        %v1731 = vmul.f32 %v1725, 0.25
        %v1732 = vmul.f32 %v1728, 0.25
        %v1733 = vlaneseq
        %v1734 = vshrl.u32 %v1733, 7
        %v1735 = vsub.s32 1, %v1734
        %v1736 = vrot.slane %v1244, %v1735
        %v1737 = vadd.f32 %v1731, %v1736
        %v1738 = vadd.f32 %v1732, %v1736
        %v1739 = vsel %vm1323, %v1737, -inf
        %1740 = vmax.xlane.f32.xlu0 %v1739
        %v1741 = vpop.xlane.xlu0 %1740
        %v1742 = vsel %vm1323, %v1738, -inf
        %1743 = vmax.xlane.f32.xlu0 %v1742
        %v1744 = vpop.xlane.xlu0 %1743
        %v1745 = vsub.f32 %v1737, %v1741
        %v1746 = vsub.f32 %v1738, %v1744
        %v1747 = vmul.f32 %v1745, 1.442695
        %v1748 = vpow.pop %v1747
        %v1749 = vmul.f32 %v1746, 1.442695
        %v1750 = vpow.pop %v1749
        %v1751 = vsel %vm1323, %v1748, 0.0
        %1752 = vadd.xlane.f32.xlu0 %v1751
        %v1753 = vpop.xlane.xlu0 %1752
        %v1754 = vsel %vm1323, %v1750, 0.0
        %1755 = vadd.xlane.f32.xlu0 %v1754
        %v1756 = vpop.xlane.xlu0 %1755
        %v1757 = vrcp.pop %v1753
        %v1758 = vrcp.pop %v1756
        %v1759 = vmul.f32 %v1748, %v1757
        %v1760 = vmul.f32 %v1750, %v1758
        %v1761 = vpack.c.bf16 %v1760, %v1759
        %1762 = vrot.lane.b32.xlu0 %v1680, 64
        %v1763 = vpop.permute.xlu0 %1762
        %v1766 = vsel %vm1323, %v1761, 0
        %1768 = vmatprep.subr.bf16.mxu0 0
        %1769 = vmatpush1.bf16.msra.mxu0 %v1763
        %1770 = vmatprep.subr.bf16.mxu0 0
        %1771 = vmatpush1.bf16.msra.mxu0 0
        %1772 = vmatprep.subr.bf16.mxu0 0
        %1773 = vmatpush1.bf16.msra.mxu0 0
        %1774 = vmatprep.subr.bf16.mxu0 0
        %1775 = vmatpush1.bf16.msra.mxu0 0
        %1776 = vmatprep.subr.bf16.mxu0 0
        %1777 = vmatpush1.bf16.msra.mxu0 0
        %1778 = vmatprep.subr.bf16.mxu0 0
        %1779 = vmatpush1.bf16.msra.mxu0 0
        %1780 = vmatprep.subr.bf16.mxu0 0
        %1781 = vmatpush1.bf16.msra.mxu0 0
        %1782 = vmatprep.subr.bf16.mxu0 0
        %1783 = vmatpush1.bf16.msra.mxu0 0
        %1784 = vmatprep.subr.bf16.mxu0 0
        %1785 = vmatpush1.bf16.msra.mxu0 0
        %1786 = vmatprep.subr.bf16.mxu0 0
        %1787 = vmatpush1.bf16.msra.mxu0 0
        %1788 = vmatprep.subr.bf16.mxu0 0
        %1789 = vmatpush1.bf16.msra.mxu0 0
        %1790 = vmatprep.subr.bf16.mxu0 0
        %1791 = vmatpush1.bf16.msra.mxu0 0
        %1792 = vmatprep.subr.bf16.mxu0 0
        %1793 = vmatpush1.bf16.msra.mxu0 0
        %1794 = vmatprep.subr.bf16.mxu0 0
        %1795 = vmatpush1.bf16.msra.mxu0 0
        %1796 = vmatprep.subr.bf16.mxu0 0
        %1797 = vmatpush1.bf16.msra.mxu0 0
        %1798 = vmatprep.subr.bf16.mxu0 0
        %1799 = vmatpush1.bf16.msra.mxu0 0
        %1800 = vmatprep.mubr.bf16.mxu0 0
        %1801 = vmatmul.mubr.bf16.gmra.mrb[0].mxu0 %v1766
        %v1802 = vpop.f32.mrb[0].mxu0
        %v1803 = vadd.f32 0.0, %v1802
        %v1804 = vpop.f32.mrb[0].mxu0
        %v1805 = vpop.f32.mrb[0].mxu0
        %v1806 = vadd.f32 0.0, %v1805
        %v1807 = vpop.f32.mrb[0].mxu0
        %1808 = vdwg.mxu0
        %v1809 = vpack.c.bf16 %v1806, %v1803
        %1810 = vrot.lane.b32.xlu0 %v1680, 112
        %v1811 = vpop.permute.xlu0 %1810
        %1812 = vrot.lane.b32.xlu0 %v1680, 80
        %v1813 = vpop.permute.xlu0 %1812
        %v1815 = vsel %vm1323, %v1811, 0
        %v1818 = vsel %vm1323, %v1813, 0
        %1820 = vmatprep.subr.bf16.mxu0 0
        %1821 = vmatpush1.bf16.xpose.msra.mxu0 %v1818
        %1822 = vmatprep.subr.bf16.mxu0 0
        %1823 = vmatpush1.bf16.xpose.msra.mxu0 0
        %1824 = vmatprep.subr.bf16.mxu0 0
        %1825 = vmatpush1.bf16.xpose.msra.mxu0 0
        %1826 = vmatprep.subr.bf16.mxu0 0
        %1827 = vmatpush1.bf16.xpose.msra.mxu0 0
        %1828 = vmatprep.subr.bf16.mxu0 0
        %1829 = vmatpush1.bf16.xpose.msra.mxu0 0
        %1830 = vmatprep.subr.bf16.mxu0 0
        %1831 = vmatpush1.bf16.xpose.msra.mxu0 0
        %1832 = vmatprep.subr.bf16.mxu0 0
        %1833 = vmatpush1.bf16.xpose.msra.mxu0 0
        %1834 = vmatprep.subr.bf16.mxu0 0
        %1835 = vmatpush1.bf16.xpose.msra.mxu0 0
        %1836 = vmatprep.subr.bf16.mxu0 0
        %1837 = vmatpush1.bf16.xpose.msra.mxu0 0
        %1838 = vmatprep.subr.bf16.mxu0 0
        %1839 = vmatpush1.bf16.xpose.msra.mxu0 0
        %1840 = vmatprep.subr.bf16.mxu0 0
        %1841 = vmatpush1.bf16.xpose.msra.mxu0 0
        %1842 = vmatprep.subr.bf16.mxu0 0
        %1843 = vmatpush1.bf16.xpose.msra.mxu0 0
        %1844 = vmatprep.subr.bf16.mxu0 0
        %1845 = vmatpush1.bf16.xpose.msra.mxu0 0
        %1846 = vmatprep.subr.bf16.mxu0 0
        %1847 = vmatpush1.bf16.xpose.msra.mxu0 0
        %1848 = vmatprep.subr.bf16.mxu0 0
        %1849 = vmatpush1.bf16.xpose.msra.mxu0 0
        %1850 = vmatprep.subr.bf16.mxu0 0
        %1851 = vmatpush1.bf16.xpose.msra.mxu0 0
        %1852 = vmatprep.mubr.bf16.mxu0 0
        %1853 = vmatmul.mubr.bf16.gmra.mrb[0].mxu0 %v1815
        %v1854 = vpop.f32.mrb[0].mxu0
        %v1855 = vadd.f32 0.0, %v1854
        %v1856 = vpop.f32.mrb[0].mxu0
        %v1857 = vpop.f32.mrb[0].mxu0
        %v1858 = vadd.f32 0.0, %v1857
        %v1859 = vpop.f32.mrb[0].mxu0
        %1860 = vdwg.mxu0
        %v1861 = vmul.f32 %v1855, 0.25
        %v1862 = vmul.f32 %v1858, 0.25
        %v1863 = vadd.f32 %v1861, %v1736
        %v1864 = vadd.f32 %v1862, %v1736
        %v1865 = vsel %vm1323, %v1863, -inf
        %1866 = vmax.xlane.f32.xlu0 %v1865
        %v1867 = vpop.xlane.xlu0 %1866
        %v1868 = vsel %vm1323, %v1864, -inf
        %1869 = vmax.xlane.f32.xlu0 %v1868
        %v1870 = vpop.xlane.xlu0 %1869
        %v1871 = vsub.f32 %v1863, %v1867
        %v1872 = vsub.f32 %v1864, %v1870
        %v1873 = vmul.f32 %v1871, 1.442695
        %v1874 = vpow.pop %v1873
        %v1875 = vmul.f32 %v1872, 1.442695
        %v1876 = vpow.pop %v1875
        %v1877 = vsel %vm1323, %v1874, 0.0
        %1878 = vadd.xlane.f32.xlu0 %v1877
        %v1879 = vpop.xlane.xlu0 %1878
        %v1880 = vsel %vm1323, %v1876, 0.0
        %1881 = vadd.xlane.f32.xlu0 %v1880
        %v1882 = vpop.xlane.xlu0 %1881
        %v1883 = vrcp.pop %v1879
        %v1884 = vrcp.pop %v1882
        %v1885 = vmul.f32 %v1874, %v1883
        %v1886 = vmul.f32 %v1876, %v1884
        %v1887 = vpack.c.bf16 %v1886, %v1885
        %1888 = vrot.lane.b32.xlu0 %v1680, 48
        %v1889 = vpop.permute.xlu0 %1888
        %v1892 = vsel %vm1323, %v1887, 0
        %1894 = vmatprep.subr.bf16.mxu0 0
        %1895 = vmatpush1.bf16.msra.mxu0 %v1889
        %1896 = vmatprep.subr.bf16.mxu0 0
        %1897 = vmatpush1.bf16.msra.mxu0 0
        %1898 = vmatprep.subr.bf16.mxu0 0
        %1899 = vmatpush1.bf16.msra.mxu0 0
        %1900 = vmatprep.subr.bf16.mxu0 0
        %1901 = vmatpush1.bf16.msra.mxu0 0
        %1902 = vmatprep.subr.bf16.mxu0 0
        %1903 = vmatpush1.bf16.msra.mxu0 0
        %1904 = vmatprep.subr.bf16.mxu0 0
        %1905 = vmatpush1.bf16.msra.mxu0 0
        %1906 = vmatprep.subr.bf16.mxu0 0
        %1907 = vmatpush1.bf16.msra.mxu0 0
        %1908 = vmatprep.subr.bf16.mxu0 0
        %1909 = vmatpush1.bf16.msra.mxu0 0
        %1910 = vmatprep.subr.bf16.mxu0 0
        %1911 = vmatpush1.bf16.msra.mxu0 0
        %1912 = vmatprep.subr.bf16.mxu0 0
        %1913 = vmatpush1.bf16.msra.mxu0 0
        %1914 = vmatprep.subr.bf16.mxu0 0
        %1915 = vmatpush1.bf16.msra.mxu0 0
        %1916 = vmatprep.subr.bf16.mxu0 0
        %1917 = vmatpush1.bf16.msra.mxu0 0
        %1918 = vmatprep.subr.bf16.mxu0 0
        %1919 = vmatpush1.bf16.msra.mxu0 0
        %1920 = vmatprep.subr.bf16.mxu0 0
        %1921 = vmatpush1.bf16.msra.mxu0 0
        %1922 = vmatprep.subr.bf16.mxu0 0
        %1923 = vmatpush1.bf16.msra.mxu0 0
        %1924 = vmatprep.subr.bf16.mxu0 0
        %1925 = vmatpush1.bf16.msra.mxu0 0
        %1926 = vmatprep.mubr.bf16.mxu0 0
        %1927 = vmatmul.mubr.bf16.gmra.mrb[0].mxu0 %v1892
        %v1928 = vpop.f32.mrb[0].mxu0
        %v1929 = vadd.f32 0.0, %v1928
        %v1930 = vpop.f32.mrb[0].mxu0
        %v1931 = vpop.f32.mrb[0].mxu0
        %v1932 = vadd.f32 0.0, %v1931
        %v1933 = vpop.f32.mrb[0].mxu0
        %1934 = vdwg.mxu0
        %v1935 = vpack.c.bf16 %v1932, %v1929
        %v1937 = vsel %vm1323, %v1935, 0
        %1939 = vmatprep.subr.bf16.mxu0 0
        %1940 = vmatpush1.bf16.msra.mxu0 %v1580
        %1941 = vmatprep.subr.bf16.mxu0 0
        %1942 = vmatpush1.bf16.msra.mxu0 0
        %1943 = vmatprep.subr.bf16.mxu0 0
        %1944 = vmatpush1.bf16.msra.mxu0 0
        %1945 = vmatprep.subr.bf16.mxu0 0
        %1946 = vmatpush1.bf16.msra.mxu0 0
        %1947 = vmatprep.subr.bf16.mxu0 0
        %1948 = vmatpush1.bf16.msra.mxu0 0
        %1949 = vmatprep.subr.bf16.mxu0 0
        %1950 = vmatpush1.bf16.msra.mxu0 0
        %1951 = vmatprep.subr.bf16.mxu0 0
        %1952 = vmatpush1.bf16.msra.mxu0 0
        %1953 = vmatprep.subr.bf16.mxu0 0
        %1954 = vmatpush1.bf16.msra.mxu0 0
        %1955 = vmatprep.subr.bf16.mxu0 0
        %1956 = vmatpush1.bf16.msra.mxu0 0
        %1957 = vmatprep.subr.bf16.mxu0 0
        %1958 = vmatpush1.bf16.msra.mxu0 0
        %1959 = vmatprep.subr.bf16.mxu0 0
        %1960 = vmatpush1.bf16.msra.mxu0 0
        %1961 = vmatprep.subr.bf16.mxu0 0
        %1962 = vmatpush1.bf16.msra.mxu0 0
        %1963 = vmatprep.subr.bf16.mxu0 0
        %1964 = vmatpush1.bf16.msra.mxu0 0
        %1965 = vmatprep.subr.bf16.mxu0 0
        %1966 = vmatpush1.bf16.msra.mxu0 0
        %1967 = vmatprep.subr.bf16.mxu0 0
        %1968 = vmatpush1.bf16.msra.mxu0 0
        %1969 = vmatprep.subr.bf16.mxu0 0
        %1970 = vmatpush1.bf16.msra.mxu0 0
        %1971 = vmatprep.mubr.bf16.mxu0 0
        %1972 = vmatmul.mubr.bf16.gmra.mrb[0].mxu0 %v1937
        %v1973 = vpop.f32.mrb[0].mxu0
        %v1974 = vadd.f32 0.0, %v1973
        %v1975 = vpop.f32.mrb[0].mxu0
        %v1976 = vpop.f32.mrb[0].mxu0
        %v1977 = vadd.f32 0.0, %v1976
        %v1978 = vpop.f32.mrb[0].mxu0
        %1979 = vdwg.mxu0
        %v1981 = vsel %vm1323, %v1809, 0
        %1983 = vmatprep.subr.bf16.mxu0 0
        %1984 = vmatpush1.bf16.msra.mxu0 %v1630
        %1985 = vmatprep.subr.bf16.mxu0 0
        %1986 = vmatpush1.bf16.msra.mxu0 0
        %1987 = vmatprep.subr.bf16.mxu0 0
        %1988 = vmatpush1.bf16.msra.mxu0 0
        %1989 = vmatprep.subr.bf16.mxu0 0
        %1990 = vmatpush1.bf16.msra.mxu0 0
        %1991 = vmatprep.subr.bf16.mxu0 0
        %1992 = vmatpush1.bf16.msra.mxu0 0
        %1993 = vmatprep.subr.bf16.mxu0 0
        %1994 = vmatpush1.bf16.msra.mxu0 0
        %1995 = vmatprep.subr.bf16.mxu0 0
        %1996 = vmatpush1.bf16.msra.mxu0 0
        %1997 = vmatprep.subr.bf16.mxu0 0
        %1998 = vmatpush1.bf16.msra.mxu0 0
        %1999 = vmatprep.subr.bf16.mxu0 0
        %2000 = vmatpush1.bf16.msra.mxu0 0
        %2001 = vmatprep.subr.bf16.mxu0 0
        %2002 = vmatpush1.bf16.msra.mxu0 0
        %2003 = vmatprep.subr.bf16.mxu0 0
        %2004 = vmatpush1.bf16.msra.mxu0 0
        %2005 = vmatprep.subr.bf16.mxu0 0
        %2006 = vmatpush1.bf16.msra.mxu0 0
        %2007 = vmatprep.subr.bf16.mxu0 0
        %2008 = vmatpush1.bf16.msra.mxu0 0
        %2009 = vmatprep.subr.bf16.mxu0 0
        %2010 = vmatpush1.bf16.msra.mxu0 0
        %2011 = vmatprep.subr.bf16.mxu0 0
        %2012 = vmatpush1.bf16.msra.mxu0 0
        %2013 = vmatprep.subr.bf16.mxu0 0
        %2014 = vmatpush1.bf16.msra.mxu0 0
        %2015 = vmatprep.mubr.bf16.mxu0 0
        %2016 = vmatmul.mubr.bf16.gmra.mrb[0].mxu0 %v1981
        %v2017 = vpop.f32.mrb[0].mxu0
        %v2018 = vadd.f32 %v1974, %v2017
        %v2019 = vpop.f32.mrb[0].mxu0
        %v2020 = vpop.f32.mrb[0].mxu0
        %v2021 = vadd.f32 %v1977, %v2020
        %v2022 = vpop.f32.mrb[0].mxu0
        %2023 = vdwg.mxu0
        %v2024 = vadd.f32 %v1247, %v2018
        %v2025 = vadd.f32 %v1248, %v2021
        %2026 = vst.msk [vmem:[#allocation2 + $0x10] sm:$0xff] %vm1263, %v2024
        %2027 = vst.msk [vmem:[#allocation2 + $0x18] sm:$0xff] %vm1263, %v2025
        %v2028 = vld [vmem:[#allocation2] sm:$0xff]
        %v2029 = vld [vmem:[#allocation2 + $0x8] sm:$0xff]
        %v2030 = vld [vmem:[#allocation2 + $0x10] sm:$0xff]
        %v2031 = vld [vmem:[#allocation2 + $0x18] sm:$0xff]
        %v2032 = vsel %vm1263, %v2028, 0.0
        %2033 = vadd.xlane.f32.xlu0 %v2032
        %v2034 = vpop.xlane.xlu0 %2033
        %v2035 = vsel %vm1263, %v2029, 0.0
        %2036 = vadd.xlane.f32.xlu0 %v2035
        %v2037 = vpop.xlane.xlu0 %2036
        %v2038 = vsel %vm1263, %v2030, 0.0
        %2039 = vadd.xlane.f32.xlu0 %v2038
        %v2040 = vpop.xlane.xlu0 %2039
        %v2041 = vsel %vm1263, %v2031, 0.0
        %2042 = vadd.xlane.f32.xlu0 %v2041
        %v2043 = vpop.xlane.xlu0 %2042
        %v2044 = vrcp.pop 32.0
        %v2045 = vmul.f32 %v2034, %v2044
        %v2046 = vmul.f32 %v2037, %v2044
        %v2047 = vmul.f32 %v2040, %v2044
        %v2048 = vmul.f32 %v2043, %v2044
        %v2049 = vsub.f32 %v2028, %v2045
        %v2050 = vsub.f32 %v2029, %v2046
        %v2051 = vsub.f32 %v2030, %v2047
        %v2052 = vsub.f32 %v2031, %v2048
        %v2053 = vmul.f32 %v2049, %v2049
        %v2054 = vmul.f32 %v2050, %v2050
        %v2055 = vmul.f32 %v2051, %v2051
        %v2056 = vmul.f32 %v2052, %v2052
        %v2057 = vsel %vm1263, %v2053, 0.0
        %2058 = vadd.xlane.f32.xlu0 %v2057
        %v2059 = vpop.xlane.xlu0 %2058
        %v2060 = vsel %vm1263, %v2054, 0.0
        %2061 = vadd.xlane.f32.xlu0 %v2060
        %v2062 = vpop.xlane.xlu0 %2061
        %v2063 = vsel %vm1263, %v2055, 0.0
        %2064 = vadd.xlane.f32.xlu0 %v2063
        %v2065 = vpop.xlane.xlu0 %2064
        %v2066 = vsel %vm1263, %v2056, 0.0
        %2067 = vadd.xlane.f32.xlu0 %v2066
        %v2068 = vpop.xlane.xlu0 %2067
        %v2069 = vmul.f32 %v2059, %v2044
        %v2070 = vmul.f32 %v2062, %v2044
        %v2071 = vmul.f32 %v2065, %v2044
        %v2072 = vmul.f32 %v2068, %v2044
        %v2073 = vadd.f32 %v2069, 1e-05
        %v2074 = vadd.f32 %v2070, 1e-05
        %v2075 = vadd.f32 %v2071, 1e-05
        %v2076 = vadd.f32 %v2072, 1e-05
        %v2077 = vrsqrt.pop %v2073
        %v2078 = vrsqrt.pop %v2074
        %v2079 = vrsqrt.pop %v2075
        %v2080 = vrsqrt.pop %v2076
        %v2081 = vmul.f32 %v2049, %v2077
        %v2082 = vmul.f32 %v2050, %v2078
        %v2083 = vmul.f32 %v2051, %v2079
        %v2084 = vmul.f32 %v2052, %v2080
        %v2086 = vlaneseq
        %v2087 = vshrl.u32 %v2086, 7
        %v2088 = vsub.s32 0, %v2087
        %v2089 = vrot.slane %v1226, %v2088
        %v2091 = vmul.f32 %v2081, %v2089
        %v2092 = vmul.f32 %v2082, %v2089
        %v2093 = vmul.f32 %v2083, %v2089
        %v2094 = vmul.f32 %v2084, %v2089
        %v2096 = vlaneseq
        %v2097 = vshrl.u32 %v2096, 7
        %v2098 = vsub.s32 0, %v2097
        %v2099 = vrot.slane %v1227, %v2098
        %v2101 = vadd.f32 %v2091, %v2099
        %v2102 = vadd.f32 %v2092, %v2099
        %v2103 = vadd.f32 %v2093, %v2099
        %v2104 = vadd.f32 %v2094, %v2099
        %v2105 = vpack.c.bf16 %v2102, %v2101
        %v2106 = vpack.c.bf16 %v2104, %v2103
        %v2108 = vlaneseq
        %v2109 = vshrl.u32 %v2108, 7
        %v2110 = vsub.s32 0, %v2109
        %v2111 = vrot.slane %v1232, %v2110
        %v2117 = vunpack.c.l.b16 %v1228
        %v2118 = vunpack.c.l.b16 %v1229
        %v2119 = vunpack.c.l.b16 %v1230
        %v2120 = vunpack.c.l.b16 %v1231
        %v2121 = vpack.c.b16 %v2118, %v2117
        %v2122 = vpack.c.b16 %v2120, %v2119
        %v2126 = vsel %vm1263, %v2105, 0
        %v2129 = vsel %vm1263, %v2106, 0
        %2131 = vmatprep.subr.bf16.mxu0 0
        %2132 = vmatpush1.bf16.msra.mxu0 %v2121
        %2133 = vmatprep.subr.bf16.mxu0 0
        %2134 = vmatpush1.bf16.msra.mxu0 %v2122
        %2135 = vmatprep.subr.bf16.mxu0 0
        %2136 = vmatpush1.bf16.msra.mxu0 0
        %2137 = vmatprep.subr.bf16.mxu0 0
        %2138 = vmatpush1.bf16.msra.mxu0 0
        %2139 = vmatprep.subr.bf16.mxu0 0
        %2140 = vmatpush1.bf16.msra.mxu0 0
        %2141 = vmatprep.subr.bf16.mxu0 0
        %2142 = vmatpush1.bf16.msra.mxu0 0
        %2143 = vmatprep.subr.bf16.mxu0 0
        %2144 = vmatpush1.bf16.msra.mxu0 0
        %2145 = vmatprep.subr.bf16.mxu0 0
        %2146 = vmatpush1.bf16.msra.mxu0 0
        %2147 = vmatprep.subr.bf16.mxu0 0
        %2148 = vmatpush1.bf16.msra.mxu0 0
        %2149 = vmatprep.subr.bf16.mxu0 0
        %2150 = vmatpush1.bf16.msra.mxu0 0
        %2151 = vmatprep.subr.bf16.mxu0 0
        %2152 = vmatpush1.bf16.msra.mxu0 0
        %2153 = vmatprep.subr.bf16.mxu0 0
        %2154 = vmatpush1.bf16.msra.mxu0 0
        %2155 = vmatprep.subr.bf16.mxu0 0
        %2156 = vmatpush1.bf16.msra.mxu0 0
        %2157 = vmatprep.subr.bf16.mxu0 0
        %2158 = vmatpush1.bf16.msra.mxu0 0
        %2159 = vmatprep.subr.bf16.mxu0 0
        %2160 = vmatpush1.bf16.msra.mxu0 0
        %2161 = vmatprep.subr.bf16.mxu0 0
        %2162 = vmatpush1.bf16.msra.mxu0 0
        %2163 = vmatprep.mubr.bf16.mxu0 0
        %2164 = vmatmul.mubr.bf16.gmra.mrb[0].mxu0 %v2126
        %v2165 = vpop.f32.mrb[0].mxu0
        %v2166 = vadd.f32 %v2111, %v2165
        %v2167 = vpop.f32.mrb[0].mxu0
        %v2168 = vpop.f32.mrb[0].mxu0
        %v2169 = vadd.f32 %v2111, %v2168
        %v2170 = vpop.f32.mrb[0].mxu0
        %2171 = vmatprep.mubr.bf16.mxu0 0
        %2172 = vmatmul.mubr.bf16.gmra.mrb[0].mxu0 %v2129
        %v2173 = vpop.f32.mrb[0].mxu0
        %v2174 = vadd.f32 %v2111, %v2173
        %v2175 = vpop.f32.mrb[0].mxu0
        %v2176 = vpop.f32.mrb[0].mxu0
        %v2177 = vadd.f32 %v2111, %v2176
        %v2178 = vpop.f32.mrb[0].mxu0
        %2179 = vdwg.mxu0
        %v2180 = vmax.f32 %v2166, 0.0
        %v2181 = vmax.f32 %v2169, 0.0
        %v2182 = vmax.f32 %v2174, 0.0
        %v2183 = vmax.f32 %v2177, 0.0
        %v2184 = vpack.c.bf16 %v2181, %v2180
        %v2185 = vpack.c.bf16 %v2183, %v2182
        %v2187 = vlaneseq
        %v2188 = vshrl.u32 %v2187, 7
        %v2189 = vsub.s32 0, %v2188
        %v2190 = vrot.slane %v1241, %v2189
        %v2200 = vunpack.c.l.b16 %v1233
        %v2201 = vunpack.c.l.b16 %v1234
        %v2202 = vunpack.c.l.b16 %v1235
        %v2203 = vunpack.c.l.b16 %v1236
        %v2204 = vunpack.c.l.b16 %v1237
        %v2205 = vunpack.c.l.b16 %v1238
        %v2206 = vunpack.c.l.b16 %v1239
        %v2207 = vunpack.c.l.b16 %v1240
        %v2208 = vpack.c.b16 %v2201, %v2200
        %v2209 = vpack.c.b16 %v2203, %v2202
        %v2210 = vpack.c.b16 %v2205, %v2204
        %v2211 = vpack.c.b16 %v2207, %v2206
        %vm2216 = vcmask 523264
        %v2218 = vsel %vm2216, %v2184, 0
        %v2221 = vsel %vm2216, %v2185, 0
        %2223 = vmatprep.subr.bf16.mxu0 0
        %2224 = vmatpush1.bf16.msra.mxu0 %v2208
        %2225 = vmatprep.subr.bf16.mxu0 0
        %2226 = vmatpush1.bf16.msra.mxu0 %v2209
        %2227 = vmatprep.subr.bf16.mxu0 0
        %2228 = vmatpush1.bf16.msra.mxu0 %v2210
        %2229 = vmatprep.subr.bf16.mxu0 0
        %2230 = vmatpush1.bf16.msra.mxu0 %v2211
        %2231 = vmatprep.subr.bf16.mxu0 0
        %2232 = vmatpush1.bf16.msra.mxu0 0
        %2233 = vmatprep.subr.bf16.mxu0 0
        %2234 = vmatpush1.bf16.msra.mxu0 0
        %2235 = vmatprep.subr.bf16.mxu0 0
        %2236 = vmatpush1.bf16.msra.mxu0 0
        %2237 = vmatprep.subr.bf16.mxu0 0
        %2238 = vmatpush1.bf16.msra.mxu0 0
        %2239 = vmatprep.subr.bf16.mxu0 0
        %2240 = vmatpush1.bf16.msra.mxu0 0
        %2241 = vmatprep.subr.bf16.mxu0 0
        %2242 = vmatpush1.bf16.msra.mxu0 0
        %2243 = vmatprep.subr.bf16.mxu0 0
        %2244 = vmatpush1.bf16.msra.mxu0 0
        %2245 = vmatprep.subr.bf16.mxu0 0
        %2246 = vmatpush1.bf16.msra.mxu0 0
        %2247 = vmatprep.subr.bf16.mxu0 0
        %2248 = vmatpush1.bf16.msra.mxu0 0
        %2249 = vmatprep.subr.bf16.mxu0 0
        %2250 = vmatpush1.bf16.msra.mxu0 0
        %2251 = vmatprep.subr.bf16.mxu0 0
        %2252 = vmatpush1.bf16.msra.mxu0 0
        %2253 = vmatprep.subr.bf16.mxu0 0
        %2254 = vmatpush1.bf16.msra.mxu0 0
        %2255 = vmatprep.mubr.bf16.mxu0 0
        %2256 = vmatmul.mubr.bf16.gmra.mrb[0].mxu0 %v2218
        %v2257 = vpop.f32.mrb[0].mxu0
        %v2258 = vadd.f32 %v2190, %v2257
        %v2259 = vpop.f32.mrb[0].mxu0
        %v2260 = vpop.f32.mrb[0].mxu0
        %v2261 = vadd.f32 %v2190, %v2260
        %v2262 = vpop.f32.mrb[0].mxu0
        %2263 = vmatprep.mubr.bf16.mxu0 0
        %2264 = vmatmul.mubr.bf16.gmra.mrb[0].mxu0 %v2221
        %v2265 = vpop.f32.mrb[0].mxu0
        %v2266 = vadd.f32 %v2190, %v2265
        %v2267 = vpop.f32.mrb[0].mxu0
        %v2268 = vpop.f32.mrb[0].mxu0
        %v2269 = vadd.f32 %v2190, %v2268
        %v2270 = vpop.f32.mrb[0].mxu0
        %2271 = vdwg.mxu0
        %v2272 = vadd.f32 %v2101, %v2258
        %v2273 = vadd.f32 %v2102, %v2261
        %v2274 = vadd.f32 %v2103, %v2266
        %v2275 = vadd.f32 %v2104, %v2269
        %v2276 = vsel %vm1263, %v2272, 0.0
        %2277 = vadd.xlane.f32.xlu0 %v2276
        %v2278 = vpop.xlane.xlu0 %2277
        %v2279 = vsel %vm1263, %v2273, 0.0
        %2280 = vadd.xlane.f32.xlu0 %v2279
        %v2281 = vpop.xlane.xlu0 %2280
        %v2282 = vsel %vm1263, %v2274, 0.0
        %2283 = vadd.xlane.f32.xlu0 %v2282
        %v2284 = vpop.xlane.xlu0 %2283
        %v2285 = vsel %vm1263, %v2275, 0.0
        %2286 = vadd.xlane.f32.xlu0 %v2285
        %v2287 = vpop.xlane.xlu0 %2286
        %v2288 = vmul.f32 %v2278, %v2044
        %v2289 = vmul.f32 %v2281, %v2044
        %v2290 = vmul.f32 %v2284, %v2044
        %v2291 = vmul.f32 %v2287, %v2044
        %v2292 = vsub.f32 %v2272, %v2288
        %v2293 = vsub.f32 %v2273, %v2289
        %v2294 = vsub.f32 %v2274, %v2290
        %v2295 = vsub.f32 %v2275, %v2291
        %v2296 = vmul.f32 %v2292, %v2292
        %v2297 = vmul.f32 %v2293, %v2293
        %v2298 = vmul.f32 %v2294, %v2294
        %v2299 = vmul.f32 %v2295, %v2295
        %v2300 = vsel %vm1263, %v2296, 0.0
        %2301 = vadd.xlane.f32.xlu0 %v2300
        %v2302 = vpop.xlane.xlu0 %2301
        %v2303 = vsel %vm1263, %v2297, 0.0
        %2304 = vadd.xlane.f32.xlu0 %v2303
        %v2305 = vpop.xlane.xlu0 %2304
        %v2306 = vsel %vm1263, %v2298, 0.0
        %2307 = vadd.xlane.f32.xlu0 %v2306
        %v2308 = vpop.xlane.xlu0 %2307
        %v2309 = vsel %vm1263, %v2299, 0.0
        %2310 = vadd.xlane.f32.xlu0 %v2309
        %v2311 = vpop.xlane.xlu0 %2310
        %v2312 = vmul.f32 %v2302, %v2044
        %v2313 = vmul.f32 %v2305, %v2044
        %v2314 = vmul.f32 %v2308, %v2044
        %v2315 = vmul.f32 %v2311, %v2044
        %v2316 = vadd.f32 %v2312, 1e-05
        %v2317 = vadd.f32 %v2313, 1e-05
        %v2318 = vadd.f32 %v2314, 1e-05
        %v2319 = vadd.f32 %v2315, 1e-05
        %v2320 = vrsqrt.pop %v2316
        %v2321 = vrsqrt.pop %v2317
        %v2322 = vrsqrt.pop %v2318
        %v2323 = vrsqrt.pop %v2319
        %v2324 = vmul.f32 %v2292, %v2320
        %v2325 = vmul.f32 %v2293, %v2321
        %v2326 = vmul.f32 %v2294, %v2322
        %v2327 = vmul.f32 %v2295, %v2323
        %v2329 = vlaneseq
        %v2330 = vshrl.u32 %v2329, 7
        %v2331 = vsub.s32 0, %v2330
        %v2332 = vrot.slane %v1242, %v2331
        %v2334 = vmul.f32 %v2324, %v2332
        %v2335 = vmul.f32 %v2325, %v2332
        %v2336 = vmul.f32 %v2326, %v2332
        %v2337 = vmul.f32 %v2327, %v2332
        %v2339 = vlaneseq
        %v2340 = vshrl.u32 %v2339, 7
        %v2341 = vsub.s32 0, %v2340
        %v2342 = vrot.slane %v1243, %v2341
        %v2344 = vadd.f32 %v2334, %v2342
        %v2345 = vadd.f32 %v2335, %v2342
        %v2346 = vadd.f32 %v2336, %v2342
        %v2347 = vadd.f32 %v2337, %v2342
        %2348 = vst.msk [vmem:[#allocation2] sm:$0xff] %vm1263, %v2344
        %2349 = vst.msk [vmem:[#allocation2 + $0x8] sm:$0xff] %vm1263, %v2345
        %2350 = vst.msk [vmem:[#allocation2 + $0x10] sm:$0xff] %vm1263, %v2346
        %2351 = vst.msk [vmem:[#allocation2 + $0x18] sm:$0xff] %vm1263, %v2347
        %p2352 = scmp.eq.s32.totalorder %s34, 1
        // Predicated region
        $region113: #{transformer_diffusion_forward.1} parent=107 // pred_check
          %p2353 = pneg %p2352
        $region114: #{transformer_diffusion_forward.1} parent=107 // pred_check_branch
          %2355 = sbr.rel (%p2353) target = $region116
        $region115: #{transformer_diffusion_forward.1} parent=107 // pred_region
          %v2356 = vld [vmem:[#allocation2] sm:$0xff]
          %v2357 = vld [vmem:[#allocation2 + $0x8] sm:$0xff]
          %v2358 = vld [vmem:[#allocation2 + $0x10] sm:$0xff]
          %v2359 = vld [vmem:[#allocation2 + $0x18] sm:$0xff]
          %v2360 = vld [vmem:[%s20] sm:$0xf]
          %v2361 = vld [vmem:[%s20 + $0x4] sm:$0xf]
          %v2362 = vld [vmem:[%s20 + $0x8] sm:$0xf]
          %v2363 = vld [vmem:[%s20 + $0xc] sm:$0xf]
          %v2364 = vpack.c.bf16 %v2357, %v2356
          %v2365 = vpack.c.bf16 %v2359, %v2358
          %v2366 = vld [vmem:[%s21] sm:$0x1]
          %v2368 = vlaneseq
          %v2369 = vshrl.u32 %v2368, 7
          %v2370 = vsub.s32 0, %v2369
          %v2371 = vrot.slane %v2366, %v2370
          %v2377 = vunpack.c.l.b16 %v2360
          %v2378 = vunpack.c.l.b16 %v2361
          %v2379 = vunpack.c.l.b16 %v2362
          %v2380 = vunpack.c.l.b16 %v2363
          %v2381 = vpack.c.b16 %v2378, %v2377
          %v2382 = vpack.c.b16 %v2380, %v2379
          %v2386 = vsel %vm1263, %v2364, 0
          %v2389 = vsel %vm1263, %v2365, 0
          %2391 = vmatprep.subr.bf16.mxu0 0
          %2392 = vmatpush1.bf16.msra.mxu0 %v2381
          %2393 = vmatprep.subr.bf16.mxu0 0
          %2394 = vmatpush1.bf16.msra.mxu0 %v2382
          %2395 = vmatprep.subr.bf16.mxu0 0
          %2396 = vmatpush1.bf16.msra.mxu0 0
          %2397 = vmatprep.subr.bf16.mxu0 0
          %2398 = vmatpush1.bf16.msra.mxu0 0
          %2399 = vmatprep.subr.bf16.mxu0 0
          %2400 = vmatpush1.bf16.msra.mxu0 0
          %2401 = vmatprep.subr.bf16.mxu0 0
          %2402 = vmatpush1.bf16.msra.mxu0 0
          %2403 = vmatprep.subr.bf16.mxu0 0
          %2404 = vmatpush1.bf16.msra.mxu0 0
          %2405 = vmatprep.subr.bf16.mxu0 0
          %2406 = vmatpush1.bf16.msra.mxu0 0
          %2407 = vmatprep.subr.bf16.mxu0 0
          %2408 = vmatpush1.bf16.msra.mxu0 0
          %2409 = vmatprep.subr.bf16.mxu0 0
          %2410 = vmatpush1.bf16.msra.mxu0 0
          %2411 = vmatprep.subr.bf16.mxu0 0
          %2412 = vmatpush1.bf16.msra.mxu0 0
          %2413 = vmatprep.subr.bf16.mxu0 0
          %2414 = vmatpush1.bf16.msra.mxu0 0
          %2415 = vmatprep.subr.bf16.mxu0 0
          %2416 = vmatpush1.bf16.msra.mxu0 0
          %2417 = vmatprep.subr.bf16.mxu0 0
          %2418 = vmatpush1.bf16.msra.mxu0 0
          %2419 = vmatprep.subr.bf16.mxu0 0
          %2420 = vmatpush1.bf16.msra.mxu0 0
          %2421 = vmatprep.subr.bf16.mxu0 0
          %2422 = vmatpush1.bf16.msra.mxu0 0
          %2423 = vmatprep.mubr.bf16.mxu0 0
          %2424 = vmatmul.mubr.bf16.gmra.mrb[0].mxu0 %v2386
          %v2425 = vpop.f32.mrb[0].mxu0
          %v2426 = vadd.f32 %v2371, %v2425
          %v2427 = vpop.f32.mrb[0].mxu0
          %v2428 = vpop.f32.mrb[0].mxu0
          %v2429 = vadd.f32 %v2371, %v2428
          %v2430 = vpop.f32.mrb[0].mxu0
          %2431 = vmatprep.mubr.bf16.mxu0 0
          %2432 = vmatmul.mubr.bf16.gmra.mrb[0].mxu0 %v2389
          %v2433 = vpop.f32.mrb[0].mxu0
          %v2434 = vadd.f32 %v2371, %v2433
          %v2435 = vpop.f32.mrb[0].mxu0
          %v2436 = vpop.f32.mrb[0].mxu0
          %v2437 = vadd.f32 %v2371, %v2436
          %v2438 = vpop.f32.mrb[0].mxu0
          %2439 = vdwg.mxu0
          %vm2440 = vcmask 130049
          %2441 = vst.msk [vmem:[#allocation3 - $0x1] sm:$0xfe] %vm2440, %v2426
          %vm2442 = vcmask 122880
          %2443 = vst.msk [vmem:[#allocation3 + $0x7] sm:$0x1] %vm2442, %v2429
          %s2444 = scalar_lea.vmem [#allocation3], 8
          %2445 = vst.msk [vmem:[%s2444 - $0x1] sm:$0xfe] %vm2440, %v2434
          %2446 = vst.msk [vmem:[%s2444 + $0x7] sm:$0x1] %vm2442, %v2437
        $region116: #{transformer_diffusion_forward.1} parent=107 // pred_fallthru
          _
        // Predicated region
        $region117: #{transformer_diffusion_forward.1} parent=107 // pred_check
          %p2447 = pneg %p559
        $region118: #{transformer_diffusion_forward.1} parent=107 // pred_check_branch
          %2449 = sbr.rel (%p2447) target = $region120
        $region119: #{transformer_diffusion_forward.1} parent=107 // pred_region
          %s2451 = ssub.s32 256, 256
          %2452 = vsyncadd [#allocation4], %s2451
          %s2453 = sshll.u32 [#allocation3], 4
          %s2454 = int_to_ptr.vmem [resolvable:$true] %s2453
          %2459 = dma.vmem_to_hbm [thread:$0]  %s2454, 256, %s22, [#allocation4], 128, 128, 8
        $region120: #{transformer_diffusion_forward.1} parent=107 // pred_fallthru
          _
        // Predicated region
        $region121: #{transformer_diffusion_forward.1} parent=107 // pred_check
          %p2460 = pneg %p559
        $region122: #{transformer_diffusion_forward.1} parent=107 // pred_check_branch
          %2462 = sbr.rel (%p2460) target = $region124
        $region123: #{transformer_diffusion_forward.1} parent=107 // pred_region
          %2463 = dma.done [#allocation4], 256
        $region124: #{transformer_diffusion_forward.1} parent=107 // pred_fallthru
          _
      $region108: #{transformer_diffusion_forward.1} parent=5 // pred_fallthru
        _
      %p2464 = scmp.le.s32.totalorder 2, %s29
      // Predicated region
      $region125: #{transformer_diffusion_forward.1} parent=5 // pred_check
        %p2465 = pneg %p2464
      $region126: #{transformer_diffusion_forward.1} parent=5 // pred_check_branch
        %2467 = sbr.rel (%p2465) target = $region128
      $region127: #{transformer_diffusion_forward.1} parent=5 // pred_region
        %s2468 = ssub.s32 %s29, 2
      $region128: #{transformer_diffusion_forward.1} parent=5 // pred_fallthru
        _
    $region6: #{transformer_diffusion_forward.1} parent=1 // loop_footer
      %s33 = sadd.s32 1, %s29
    $region7: #{transformer_diffusion_forward.1} parent=1 // loop_footer_branch
      %28 = sbr.rel target = $region3
    $region8: #{transformer_diffusion_forward.1} parent=1 // loop_exit
      _
    %2469 = vsyncpa [#allocation4], 1
    %s2470 = scalar_lea.sflag [#allocation4], 1
    %2471 = vsyncpa %s2470, 1

</llo_original>
